<compile_context>
chip_gen: v7x
topology: tpu7x:2x2x1
jax: 0.10.0
libtpu: 0.0.40
codegen_flags: <defaults>
</compile_context>

<pallas_src>
import jax
import jax.numpy as jnp
from jax import lax
from jax.experimental import pallas as pl
from jax.experimental.pallas import tpu as pltpu

NHEAD = 3
NLAYERS = 3
LN_EPS = 1e-5
NEG_INF = -1e30

B, S, E, FF, V = 2, 8, 48, 64, 50
HD = E // NHEAD
NL2 = 2 * NLAYERS          # layers 0..2 -> "transformer", 3..5 -> "noise_transformer"
W3E = 3 * E                # fused QKV width (also the bias-slab width)
HEADW = 2 * E + 6          # packed head slab width


# ----------------------------------------------------------------------------
# Fused forward kernel (whole network, single invocation, no grid)
# ----------------------------------------------------------------------------
def net_trans_kernel(x_ref, mask_ref,
                     wqkv_ref, wo_ref, wff1_ref, wff2_ref,
                     bias_ref, head_ref,
                     out_ref):
    f32 = jnp.float32
    bf16 = jnp.bfloat16
    scale = 1.0 / (HD ** 0.5)

    x0 = x_ref[...]            # (B*S, E) embedded tokens (dropout1 = identity, eval)
    mask_add = mask_ref[...]   # (B, S) additive key-padding mask (0 / -1e30)

    def layer_norm(v, w, b):
        mu = jnp.mean(v, axis=-1, keepdims=True)
        var = jnp.mean((v - mu) ** 2, axis=-1, keepdims=True)
        return (v - mu) * lax.rsqrt(var + LN_EPS) * w + b

    def encoder_layer(x, l):
        # Per-layer parameter loads (dynamic index on leading dim, hoisted once).
        wqkv_l = wqkv_ref[l]                    # (E, 3E)  bf16
        wo_l = wo_ref[l]                        # (E, E)   bf16
        wff1_l = wff1_ref[l]                    # (E, FF)  bf16
        wff2_l = wff2_ref[l]                    # (FF, E)  bf16
        bl = bias_ref[l]                        # (8, 3E)  f32
        bqkv = bl[0:1, :]                       # (1, 3E)
        bo = bl[1:2, 0:E]                       # (1, E)
        bff1 = bl[2:3, 0:FF]                    # (1, FF)
        bff2 = bl[3:4, 0:E]                     # (1, E)
        n1w, n1b = bl[4:5, 0:E], bl[5:6, 0:E]
        n2w, n2b = bl[6:7, 0:E], bl[7:8, 0:E]

        # Fused QKV projection for the whole (B*S, E) slab (bf16 MXU, f32 acc).
        qkv = jnp.dot(x.astype(bf16), wqkv_l, preferred_element_type=f32) + bqkv

        attn_rows = []
        for b in range(B):                      # static (B=2)
            m = mask_add[b:b + 1, :]            # (1, S), hoisted out of head loop
            qkv_b = qkv[b * S:(b + 1) * S, :]   # (S, 3E), hoisted row slice
            acc_b = None
            for h in range(NHEAD):              # static (NHEAD=3)
                q = qkv_b[:, h * HD:(h + 1) * HD]
                k = qkv_b[:, E + h * HD:E + (h + 1) * HD]
                v = qkv_b[:, 2 * E + h * HD:2 * E + (h + 1) * HD]
                # scores without transposing k (contract last dims of both)
                s = lax.dot_general(q, k, (((1,), (1,)), ((), ())),
                                    preferred_element_type=f32) * scale + m
                s = s - jnp.max(s, axis=-1, keepdims=True)
                p = jnp.exp(s)
                p = p / jnp.sum(p, axis=-1, keepdims=True)   # exact softmax
                ctx_h = jnp.dot(p, v, preferred_element_type=f32)       # (S, HD)
                # per-head partial output projection (no lane concat)
                part = jnp.dot(ctx_h.astype(bf16),
                               wo_l[h * HD:(h + 1) * HD, :],
                               preferred_element_type=f32)              # (S, E)
                acc_b = part if acc_b is None else acc_b + part
            attn_rows.append(acc_b)
        attn = jnp.concatenate(attn_rows, axis=0) + bo                  # (BS, E)

        y = layer_norm(x + attn, n1w, n1b)
        h1 = jnp.maximum(
            jnp.dot(y.astype(bf16), wff1_l, preferred_element_type=f32) + bff1, 0.0)
        h2 = jnp.dot(h1.astype(bf16), wff2_l, preferred_element_type=f32) + bff2
        return layer_norm(y + h2, n2w, n2b)

    # Both towers advanced inside one loop body -> two independent chains the
    # scheduler can interleave; fori_loop bounds live ranges across layers.
    # TODO(synk): on v7x the two towers could instead be split across the two
    # TensorCores (grid=(2,), "parallel"); at this size single-launch fusion wins.
    def both_towers(l, carry):
        x1, x2 = carry
        x1n = encoder_layer(x1, l)
        x2n = encoder_layer(x2, l + NLAYERS)
        return (x1n, x2n)

    x1, x2 = lax.fori_loop(0, NLAYERS, both_towers, (x0, x0))

    # seq-mean pooling (torch.mean over dim=0 of (S, B, E)) -> (B, E)
    out1 = jnp.concatenate(
        [jnp.mean(x1[b * S:(b + 1) * S], axis=0, keepdims=True) for b in range(B)],
        axis=0)
    out2 = jnp.concatenate(
        [jnp.mean(x2[b * S:(b + 1) * S], axis=0, keepdims=True) for b in range(B)],
        axis=0)

    # Packed head slab: cols [t1_attn_w(E) | t2_attn_w(E) | t1_u(2) | t2_u(2) | clean_w(2)],
    # last row = biases (u layers have no bias -> zeros).
    head = head_ref[...]                 # (E+1, 2E+6) f32
    hw = head[0:E, :]
    hb = head[E:E + 1, :]

    clean = (jnp.dot(out1, hw[:, 2 * E + 4:2 * E + 6], preferred_element_type=jnp.float32)
             + hb[:, 2 * E + 4:2 * E + 6])                               # (B, 2)

    # Both transition attn projections in one matmul on the pooled noise output.
    z = jnp.tanh(jnp.dot(out2, hw[:, 0:2 * E], preferred_element_type=jnp.float32)
                 + hb[:, 0:2 * E])                                       # (B, 2E)
    logit1 = jnp.dot(z[:, 0:E], hw[:, 2 * E:2 * E + 2],
                     preferred_element_type=jnp.float32)                 # (B, 2)
    logit2 = jnp.dot(z[:, E:2 * E], hw[:, 2 * E + 2:2 * E + 4],
                     preferred_element_type=jnp.float32)                 # (B, 2)
    e1 = jnp.exp(logit1)
    p1 = e1 / (jnp.sum(e1, axis=1, keepdims=True) + 1e-9)   # +1e-9 matches reference
    e2 = jnp.exp(logit2)
    p2 = e2 / (jnp.sum(e2, axis=1, keepdims=True) + 1e-9)

    # noisy = clean.unsqueeze(1) @ cat([p1.unsqueeze(2), p2.unsqueeze(2)], 2)
    n0 = jnp.sum(clean * p1, axis=1, keepdims=True)
    n1 = jnp.sum(clean * p2, axis=1, keepdims=True)
    noisy = jnp.concatenate([n0, n1], axis=1)                            # (B, 2)

    out_ref[...] = jnp.concatenate([noisy, clean], axis=0)               # (2B, 2)


# ----------------------------------------------------------------------------
# Wrapper
# ----------------------------------------------------------------------------
def net_trans_forward(tokens, params):
    """tokens: (B, S) int32 token ids. Returns (noisy_logits, clean_logits), each (B, 2)."""
    mask = (tokens == 0)                                   # src_key_padding_mask
    emb = params['embedding'][tokens]                      # glue: embedding gather (B, S, E)
    # Dropout1 (p=0.5) / Dropout2 (p=1.0) are identity in eval mode.
    # TODO(synk): training-mode dropout RNG not implemented (eval-mode forward only).
    add_mask = jnp.where(mask, NEG_INF, 0.0).astype(jnp.float32)         # (B, S)
    x = emb.reshape(B * S, E).astype(jnp.float32)

    cost = pl.CostEstimate(flops=3_200_000, transcendentals=3_000,
                           bytes_accessed=260_000)

    out = pl.pallas_call(
        net_trans_kernel,
        out_shape=jax.ShapeDtypeStruct((2 * B, 2), jnp.float32),
        compiler_params=pltpu.CompilerParams(vmem_limit_bytes=16 * 1024 * 1024),
        cost_estimate=cost,
    )(x, add_mask,
      params['wqkv'], params['wo'], params['wff1'], params['wff2'],
      params['bias_slab'], params['head'])

    noisy = out[:B]
    clean = out[B:]
    return noisy, clean


# ----------------------------------------------------------------------------
# Deterministic parameter construction (synthetic; matches module shapes).
# Weights pre-transposed to (in, out), stacked across both towers, matmul
# weights stored bf16; biases / LayerNorm / head params packed into two slabs.
# ----------------------------------------------------------------------------
def init_params(key, vocab):
    keys = iter(jax.random.split(key, 64))

    def u(shape, a):
        return jax.random.uniform(next(keys), shape, jnp.float32, -a, a)

    a_e = 1.0 / jnp.sqrt(jnp.float32(E))
    a_ff = 1.0 / jnp.sqrt(jnp.float32(FF))

    emb = jax.random.normal(next(keys), (vocab, E), jnp.float32) * 0.1

    # Layers 0..2: "transformer", layers 3..5: "noise_transformer".
    # Fused QKV weight layout: columns [Q(E) | K(E) | V(E)], heads contiguous.
    wqkv = u((NL2, E, 3 * E), a_e)
    bqkv = u((NL2, 3 * E), a_e)
    wo = u((NL2, E, E), a_e)
    bo = u((NL2, E), a_e)
    wff1 = u((NL2, E, FF), a_e)
    bff1 = u((NL2, FF), a_e)
    wff2 = u((NL2, FF, E), a_ff)
    bff2 = u((NL2, E), a_e)

    ones_e = jnp.ones((NL2, E), jnp.float32)
    zeros_e = jnp.zeros((NL2, E), jnp.float32)

    def pad_row(v):
        return jnp.pad(v, ((0, 0), (0, W3E - v.shape[-1])))

    # rows: [bqkv, bo, bff1, bff2, norm1_w, norm1_b, norm2_w, norm2_b]
    bias_slab = jnp.stack([
        bqkv,
        pad_row(bo), pad_row(bff1), pad_row(bff2),
        pad_row(ones_e), pad_row(zeros_e),
        pad_row(ones_e), pad_row(zeros_e),
    ], axis=1)                                           # (NL2, 8, 3E) f32

    # clean_linear: uniform(-0.01, 0.01) weight & bias (pre-transposed).
    clean_w = u((E, 2), 0.01)
    clean_b = u((1, 2), 0.01)
    # TransitionLayer 1 & 2: attn uniform(-0.01,0.01) w, zero b; u no bias.
    t1_w = u((E, E), 0.01)
    t2_w = u((E, E), 0.01)
    t1_b = jnp.zeros((1, E), jnp.float32)
    t2_b = jnp.zeros((1, E), jnp.float32)
    t1_u = u((E, 2), 0.01)
    t2_u = u((E, 2), 0.01)

    head_w = jnp.concatenate([t1_w, t2_w, t1_u, t2_u, clean_w], axis=1)  # (E, 2E+6)
    head_b = jnp.concatenate([t1_b, t2_b, jnp.zeros((1, 4), jnp.float32), clean_b],
                             axis=1)                                     # (1, 2E+6)
    head = jnp.concatenate([head_w, head_b], axis=0)                     # (E+1, 2E+6)

    return dict(
        embedding=emb,
        wqkv=wqkv.astype(jnp.bfloat16),
        wo=wo.astype(jnp.bfloat16),
        wff1=wff1.astype(jnp.bfloat16),
        wff2=wff2.astype(jnp.bfloat16),
        bias_slab=bias_slab,
        head=head,
    )


if __name__ == "__main__":
    root = jax.random.PRNGKey(0)
    pkey, tkey = jax.random.split(root)
    params = init_params(pkey, V)

    tokens = jax.random.randint(tkey, (B, S), 0, V, dtype=jnp.int32)
    tokens = tokens.at[:, 0].set(1)      # guarantee at least one non-pad token per row
    tokens = tokens.at[:, -2:].set(0)    # some padding positions to exercise the mask

    fwd = jax.jit(lambda t: net_trans_forward(t, params))
    noisy_logits, clean_logits = fwd(tokens)
    jax.block_until_ready((noisy_logits, clean_logits))

    assert noisy_logits.shape == (B, 2) and clean_logits.shape == (B, 2)
    assert bool(jnp.all(jnp.isfinite(noisy_logits)))
    assert bool(jnp.all(jnp.isfinite(clean_logits)))
    print("KERNEL_OK")
</pallas_src>

<mosaic_0001>
module attributes {stable_mosaic.version = 11 : i64} {
  func.func @net_trans_kernel(%arg0: memref<16x48xf32, #tpu.memory_space<vmem>>, %arg1: memref<2x8xf32, #tpu.memory_space<vmem>>, %arg2: memref<6x48x144xbf16, #tpu.memory_space<vmem>>, %arg3: memref<6x48x48xbf16, #tpu.memory_space<vmem>>, %arg4: memref<6x48x64xbf16, #tpu.memory_space<vmem>>, %arg5: memref<6x64x48xbf16, #tpu.memory_space<vmem>>, %arg6: memref<6x8x144xf32, #tpu.memory_space<vmem>>, %arg7: memref<49x102xf32, #tpu.memory_space<vmem>>, %arg8: memref<4x2xf32, #tpu.memory_space<vmem>>) attributes {dimension_semantics = [], scalar_prefetch = 0 : i64, scratch_operands = 0 : i64, tpu.core_type = #tpu.core_type<tc>} {
    %c0 = arith.constant 0 : index
    %c0_0 = arith.constant 0 : index
    %0 = vector.load %arg0[%c0, %c0_0] : memref<16x48xf32, #tpu.memory_space<vmem>>, vector<16x48xf32>
    %c0_1 = arith.constant 0 : index
    %c0_2 = arith.constant 0 : index
    %1 = vector.load %arg1[%c0_1, %c0_2] : memref<2x8xf32, #tpu.memory_space<vmem>>, vector<2x8xf32>
    %c0_i32 = arith.constant 0 : i32
    %c3_i32 = arith.constant 3 : i32
    %2 = arith.addi %c0_i32, %c3_i32 : i32
    %c1_i32 = arith.constant 1 : i32
    %3:2 = scf.for %arg9 = %c0_i32 to %2 step %c1_i32 iter_args(%arg10 = %0, %arg11 = %0) -> (vector<16x48xf32>, vector<16x48xf32>)  : i32 {
      %69 = arith.index_cast %arg9 : i32 to index
      %c0_25 = arith.constant 0 : index
      %c0_26 = arith.constant 0 : index
      %70 = vector.load %arg2[%69, %c0_25, %c0_26] : memref<6x48x144xbf16, #tpu.memory_space<vmem>>, vector<1x48x144xbf16>
      %71 = vector.shape_cast %70 : vector<1x48x144xbf16> to vector<48x144xbf16>
      %72 = arith.index_cast %arg9 : i32 to index
      %c0_27 = arith.constant 0 : index
      %c0_28 = arith.constant 0 : index
      %73 = vector.load %arg3[%72, %c0_27, %c0_28] : memref<6x48x48xbf16, #tpu.memory_space<vmem>>, vector<1x48x48xbf16>
      %74 = vector.shape_cast %73 : vector<1x48x48xbf16> to vector<48x48xbf16>
      %75 = arith.index_cast %arg9 : i32 to index
      %c0_29 = arith.constant 0 : index
      %c0_30 = arith.constant 0 : index
      %76 = vector.load %arg4[%75, %c0_29, %c0_30] : memref<6x48x64xbf16, #tpu.memory_space<vmem>>, vector<1x48x64xbf16>
      %77 = vector.shape_cast %76 : vector<1x48x64xbf16> to vector<48x64xbf16>
      %78 = arith.index_cast %arg9 : i32 to index
      %c0_31 = arith.constant 0 : index
      %c0_32 = arith.constant 0 : index
      %79 = vector.load %arg5[%78, %c0_31, %c0_32] : memref<6x64x48xbf16, #tpu.memory_space<vmem>>, vector<1x64x48xbf16>
      %80 = vector.shape_cast %79 : vector<1x64x48xbf16> to vector<64x48xbf16>
      %81 = arith.index_cast %arg9 : i32 to index
      %c0_33 = arith.constant 0 : index
      %c0_34 = arith.constant 0 : index
      %82 = vector.load %arg6[%81, %c0_33, %c0_34] : memref<6x8x144xf32, #tpu.memory_space<vmem>>, vector<1x8x144xf32>
      %83 = vector.shape_cast %82 : vector<1x8x144xf32> to vector<8x144xf32>
      %84 = vector.extract_strided_slice %83 {offsets = [0, 0], sizes = [1, 144], strides = [1, 1]} : vector<8x144xf32> to vector<1x144xf32>
      %85 = vector.extract_strided_slice %83 {offsets = [1, 0], sizes = [1, 48], strides = [1, 1]} : vector<8x144xf32> to vector<1x48xf32>
      %86 = vector.extract_strided_slice %83 {offsets = [2, 0], sizes = [1, 64], strides = [1, 1]} : vector<8x144xf32> to vector<1x64xf32>
      %87 = vector.extract_strided_slice %83 {offsets = [3, 0], sizes = [1, 48], strides = [1, 1]} : vector<8x144xf32> to vector<1x48xf32>
      %88 = vector.extract_strided_slice %83 {offsets = [4, 0], sizes = [1, 48], strides = [1, 1]} : vector<8x144xf32> to vector<1x48xf32>
      %89 = vector.extract_strided_slice %83 {offsets = [5, 0], sizes = [1, 48], strides = [1, 1]} : vector<8x144xf32> to vector<1x48xf32>
      %90 = vector.extract_strided_slice %83 {offsets = [6, 0], sizes = [1, 48], strides = [1, 1]} : vector<8x144xf32> to vector<1x48xf32>
      %91 = vector.extract_strided_slice %83 {offsets = [7, 0], sizes = [1, 48], strides = [1, 1]} : vector<8x144xf32> to vector<1x48xf32>
      %92 = arith.truncf %arg10 : vector<16x48xf32> to vector<16x48xbf16>
      %cst_35 = arith.constant dense<0.000000e+00> : vector<16x144xf32>
      %93 = tpu.matmul %92, %71, %cst_35 {dimension_numbers = #tpu.dot_dimension_numbers<[1], [0], [0], [1], [0, 0, 1, 1], [], []>} : vector<16x48xbf16>, vector<48x144xbf16>, vector<16x144xf32> -> vector<16x144xf32>
      %94 = vector.broadcast %84 : vector<1x144xf32> to vector<16x144xf32>
      %95 = arith.addf %93, %94 : vector<16x144xf32>
      %96 = vector.extract_strided_slice %1 {offsets = [0, 0], sizes = [1, 8], strides = [1, 1]} : vector<2x8xf32> to vector<1x8xf32>
      %97 = vector.extract_strided_slice %95 {offsets = [0, 0], sizes = [8, 144], strides = [1, 1]} : vector<16x144xf32> to vector<8x144xf32>
      %98 = vector.extract_strided_slice %97 {offsets = [0, 0], sizes = [8, 16], strides = [1, 1]} : vector<8x144xf32> to vector<8x16xf32>
      %99 = vector.extract_strided_slice %97 {offsets = [0, 48], sizes = [8, 16], strides = [1, 1]} : vector<8x144xf32> to vector<8x16xf32>
      %100 = vector.extract_strided_slice %97 {offsets = [0, 96], sizes = [8, 16], strides = [1, 1]} : vector<8x144xf32> to vector<8x16xf32>
      %cst_36 = arith.constant dense<0.000000e+00> : vector<8x8xf32>
      %101 = tpu.matmul %98, %99, %cst_36 {dimension_numbers = #tpu.dot_dimension_numbers<[1], [1], [0], [0], [0, 0, 1, 0], [], []>} : vector<8x16xf32>, vector<8x16xf32>, vector<8x8xf32> -> vector<8x8xf32>
      %cst_37 = arith.constant 2.500000e-01 : f32
      %102 = vector.broadcast %cst_37 : f32 to vector<8x8xf32>
      %103 = arith.mulf %101, %102 : vector<8x8xf32>
      %104 = vector.broadcast %96 : vector<1x8xf32> to vector<8x8xf32>
      %105 = arith.addf %103, %104 : vector<8x8xf32>
      %cst_38 = arith.constant dense<0xFF800000> : vector<8xf32>
      %106 = vector.multi_reduction <maximumf>, %105, %cst_38 [1] : vector<8x8xf32> to vector<8xf32>
      %107 = vector.shape_cast %106 : vector<8xf32> to vector<8x1xf32>
      %108 = vector.broadcast %107 : vector<8x1xf32> to vector<8x8xf32>
      %109 = arith.subf %105, %108 : vector<8x8xf32>
      %110 = math.exp %109 : vector<8x8xf32>
      %cst_39 = arith.constant dense<0.000000e+00> : vector<8xf32>
      %111 = vector.multi_reduction <add>, %110, %cst_39 [1] : vector<8x8xf32> to vector<8xf32>
      %112 = vector.shape_cast %111 : vector<8xf32> to vector<8x1xf32>
      %113 = vector.broadcast %112 : vector<8x1xf32> to vector<8x8xf32>
      %114 = arith.divf %110, %113 : vector<8x8xf32>
      %cst_40 = arith.constant dense<0.000000e+00> : vector<8x16xf32>
      %115 = tpu.matmul %114, %100, %cst_40 {dimension_numbers = #tpu.dot_dimension_numbers<[1], [0], [0], [1], [0, 0, 1, 1], [], []>} : vector<8x8xf32>, vector<8x16xf32>, vector<8x16xf32> -> vector<8x16xf32>
      %116 = arith.truncf %115 : vector<8x16xf32> to vector<8x16xbf16>
      %117 = vector.extract_strided_slice %74 {offsets = [0, 0], sizes = [16, 48], strides = [1, 1]} : vector<48x48xbf16> to vector<16x48xbf16>
      %cst_41 = arith.constant dense<0.000000e+00> : vector<8x48xf32>
      %118 = tpu.matmul %116, %117, %cst_41 {dimension_numbers = #tpu.dot_dimension_numbers<[1], [0], [0], [1], [0, 0, 1, 1], [], []>} : vector<8x16xbf16>, vector<16x48xbf16>, vector<8x48xf32> -> vector<8x48xf32>
      %119 = vector.extract_strided_slice %97 {offsets = [0, 16], sizes = [8, 16], strides = [1, 1]} : vector<8x144xf32> to vector<8x16xf32>
      %120 = vector.extract_strided_slice %97 {offsets = [0, 64], sizes = [8, 16], strides = [1, 1]} : vector<8x144xf32> to vector<8x16xf32>
      %121 = vector.extract_strided_slice %97 {offsets = [0, 112], sizes = [8, 16], strides = [1, 1]} : vector<8x144xf32> to vector<8x16xf32>
      %cst_42 = arith.constant dense<0.000000e+00> : vector<8x8xf32>
      %122 = tpu.matmul %119, %120, %cst_42 {dimension_numbers = #tpu.dot_dimension_numbers<[1], [1], [0], [0], [0, 0, 1, 0], [], []>} : vector<8x16xf32>, vector<8x16xf32>, vector<8x8xf32> -> vector<8x8xf32>
      %cst_43 = arith.constant 2.500000e-01 : f32
      %123 = vector.broadcast %cst_43 : f32 to vector<8x8xf32>
      %124 = arith.mulf %122, %123 : vector<8x8xf32>
      %125 = vector.broadcast %96 : vector<1x8xf32> to vector<8x8xf32>
      %126 = arith.addf %124, %125 : vector<8x8xf32>
      %cst_44 = arith.constant dense<0xFF800000> : vector<8xf32>
      %127 = vector.multi_reduction <maximumf>, %126, %cst_44 [1] : vector<8x8xf32> to vector<8xf32>
      %128 = vector.shape_cast %127 : vector<8xf32> to vector<8x1xf32>
      %129 = vector.broadcast %128 : vector<8x1xf32> to vector<8x8xf32>
      %130 = arith.subf %126, %129 : vector<8x8xf32>
      %131 = math.exp %130 : vector<8x8xf32>
      %cst_45 = arith.constant dense<0.000000e+00> : vector<8xf32>
      %132 = vector.multi_reduction <add>, %131, %cst_45 [1] : vector<8x8xf32> to vector<8xf32>
      %133 = vector.shape_cast %132 : vector<8xf32> to vector<8x1xf32>
      %134 = vector.broadcast %133 : vector<8x1xf32> to vector<8x8xf32>
      %135 = arith.divf %131, %134 : vector<8x8xf32>
      %cst_46 = arith.constant dense<0.000000e+00> : vector<8x16xf32>
      %136 = tpu.matmul %135, %121, %cst_46 {dimension_numbers = #tpu.dot_dimension_numbers<[1], [0], [0], [1], [0, 0, 1, 1], [], []>} : vector<8x8xf32>, vector<8x16xf32>, vector<8x16xf32> -> vector<8x16xf32>
      %137 = arith.truncf %136 : vector<8x16xf32> to vector<8x16xbf16>
      %138 = vector.extract_strided_slice %74 {offsets = [16, 0], sizes = [16, 48], strides = [1, 1]} : vector<48x48xbf16> to vector<16x48xbf16>
      %cst_47 = arith.constant dense<0.000000e+00> : vector<8x48xf32>
      %139 = tpu.matmul %137, %138, %cst_47 {dimension_numbers = #tpu.dot_dimension_numbers<[1], [0], [0], [1], [0, 0, 1, 1], [], []>} : vector<8x16xbf16>, vector<16x48xbf16>, vector<8x48xf32> -> vector<8x48xf32>
      %140 = arith.addf %118, %139 : vector<8x48xf32>
      %141 = vector.extract_strided_slice %97 {offsets = [0, 32], sizes = [8, 16], strides = [1, 1]} : vector<8x144xf32> to vector<8x16xf32>
      %142 = vector.extract_strided_slice %97 {offsets = [0, 80], sizes = [8, 16], strides = [1, 1]} : vector<8x144xf32> to vector<8x16xf32>
      %143 = vector.extract_strided_slice %97 {offsets = [0, 128], sizes = [8, 16], strides = [1, 1]} : vector<8x144xf32> to vector<8x16xf32>
      %cst_48 = arith.constant dense<0.000000e+00> : vector<8x8xf32>
      %144 = tpu.matmul %141, %142, %cst_48 {dimension_numbers = #tpu.dot_dimension_numbers<[1], [1], [0], [0], [0, 0, 1, 0], [], []>} : vector<8x16xf32>, vector<8x16xf32>, vector<8x8xf32> -> vector<8x8xf32>
      %cst_49 = arith.constant 2.500000e-01 : f32
      %145 = vector.broadcast %cst_49 : f32 to vector<8x8xf32>
      %146 = arith.mulf %144, %145 : vector<8x8xf32>
      %147 = vector.broadcast %96 : vector<1x8xf32> to vector<8x8xf32>
      %148 = arith.addf %146, %147 : vector<8x8xf32>
      %cst_50 = arith.constant dense<0xFF800000> : vector<8xf32>
      %149 = vector.multi_reduction <maximumf>, %148, %cst_50 [1] : vector<8x8xf32> to vector<8xf32>
      %150 = vector.shape_cast %149 : vector<8xf32> to vector<8x1xf32>
      %151 = vector.broadcast %150 : vector<8x1xf32> to vector<8x8xf32>
      %152 = arith.subf %148, %151 : vector<8x8xf32>
      %153 = math.exp %152 : vector<8x8xf32>
      %cst_51 = arith.constant dense<0.000000e+00> : vector<8xf32>
      %154 = vector.multi_reduction <add>, %153, %cst_51 [1] : vector<8x8xf32> to vector<8xf32>
      %155 = vector.shape_cast %154 : vector<8xf32> to vector<8x1xf32>
      %156 = vector.broadcast %155 : vector<8x1xf32> to vector<8x8xf32>
      %157 = arith.divf %153, %156 : vector<8x8xf32>
      %cst_52 = arith.constant dense<0.000000e+00> : vector<8x16xf32>
      %158 = tpu.matmul %157, %143, %cst_52 {dimension_numbers = #tpu.dot_dimension_numbers<[1], [0], [0], [1], [0, 0, 1, 1], [], []>} : vector<8x8xf32>, vector<8x16xf32>, vector<8x16xf32> -> vector<8x16xf32>
      %159 = arith.truncf %158 : vector<8x16xf32> to vector<8x16xbf16>
      %160 = vector.extract_strided_slice %74 {offsets = [32, 0], sizes = [16, 48], strides = [1, 1]} : vector<48x48xbf16> to vector<16x48xbf16>
      %cst_53 = arith.constant dense<0.000000e+00> : vector<8x48xf32>
      %161 = tpu.matmul %159, %160, %cst_53 {dimension_numbers = #tpu.dot_dimension_numbers<[1], [0], [0], [1], [0, 0, 1, 1], [], []>} : vector<8x16xbf16>, vector<16x48xbf16>, vector<8x48xf32> -> vector<8x48xf32>
      %162 = arith.addf %140, %161 : vector<8x48xf32>
      %163 = vector.extract_strided_slice %1 {offsets = [1, 0], sizes = [1, 8], strides = [1, 1]} : vector<2x8xf32> to vector<1x8xf32>
      %164 = vector.extract_strided_slice %95 {offsets = [8, 0], sizes = [8, 144], strides = [1, 1]} : vector<16x144xf32> to vector<8x144xf32>
      %165 = vector.extract_strided_slice %164 {offsets = [0, 0], sizes = [8, 16], strides = [1, 1]} : vector<8x144xf32> to vector<8x16xf32>
      %166 = vector.extract_strided_slice %164 {offsets = [0, 48], sizes = [8, 16], strides = [1, 1]} : vector<8x144xf32> to vector<8x16xf32>
      %167 = vector.extract_strided_slice %164 {offsets = [0, 96], sizes = [8, 16], strides = [1, 1]} : vector<8x144xf32> to vector<8x16xf32>
      %cst_54 = arith.constant dense<0.000000e+00> : vector<8x8xf32>
      %168 = tpu.matmul %165, %166, %cst_54 {dimension_numbers = #tpu.dot_dimension_numbers<[1], [1], [0], [0], [0, 0, 1, 0], [], []>} : vector<8x16xf32>, vector<8x16xf32>, vector<8x8xf32> -> vector<8x8xf32>
      %cst_55 = arith.constant 2.500000e-01 : f32
      %169 = vector.broadcast %cst_55 : f32 to vector<8x8xf32>
      %170 = arith.mulf %168, %169 : vector<8x8xf32>
      %171 = vector.broadcast %163 : vector<1x8xf32> to vector<8x8xf32>
      %172 = arith.addf %170, %171 : vector<8x8xf32>
      %cst_56 = arith.constant dense<0xFF800000> : vector<8xf32>
      %173 = vector.multi_reduction <maximumf>, %172, %cst_56 [1] : vector<8x8xf32> to vector<8xf32>
      %174 = vector.shape_cast %173 : vector<8xf32> to vector<8x1xf32>
      %175 = vector.broadcast %174 : vector<8x1xf32> to vector<8x8xf32>
      %176 = arith.subf %172, %175 : vector<8x8xf32>
      %177 = math.exp %176 : vector<8x8xf32>
      %cst_57 = arith.constant dense<0.000000e+00> : vector<8xf32>
      %178 = vector.multi_reduction <add>, %177, %cst_57 [1] : vector<8x8xf32> to vector<8xf32>
      %179 = vector.shape_cast %178 : vector<8xf32> to vector<8x1xf32>
      %180 = vector.broadcast %179 : vector<8x1xf32> to vector<8x8xf32>
      %181 = arith.divf %177, %180 : vector<8x8xf32>
      %cst_58 = arith.constant dense<0.000000e+00> : vector<8x16xf32>
      %182 = tpu.matmul %181, %167, %cst_58 {dimension_numbers = #tpu.dot_dimension_numbers<[1], [0], [0], [1], [0, 0, 1, 1], [], []>} : vector<8x8xf32>, vector<8x16xf32>, vector<8x16xf32> -> vector<8x16xf32>
      %183 = arith.truncf %182 : vector<8x16xf32> to vector<8x16xbf16>
      %184 = vector.extract_strided_slice %74 {offsets = [0, 0], sizes = [16, 48], strides = [1, 1]} : vector<48x48xbf16> to vector<16x48xbf16>
      %cst_59 = arith.constant dense<0.000000e+00> : vector<8x48xf32>
      %185 = tpu.matmul %183, %184, %cst_59 {dimension_numbers = #tpu.dot_dimension_numbers<[1], [0], [0], [1], [0, 0, 1, 1], [], []>} : vector<8x16xbf16>, vector<16x48xbf16>, vector<8x48xf32> -> vector<8x48xf32>
      %186 = vector.extract_strided_slice %164 {offsets = [0, 16], sizes = [8, 16], strides = [1, 1]} : vector<8x144xf32> to vector<8x16xf32>
      %187 = vector.extract_strided_slice %164 {offsets = [0, 64], sizes = [8, 16], strides = [1, 1]} : vector<8x144xf32> to vector<8x16xf32>
      %188 = vector.extract_strided_slice %164 {offsets = [0, 112], sizes = [8, 16], strides = [1, 1]} : vector<8x144xf32> to vector<8x16xf32>
      %cst_60 = arith.constant dense<0.000000e+00> : vector<8x8xf32>
      %189 = tpu.matmul %186, %187, %cst_60 {dimension_numbers = #tpu.dot_dimension_numbers<[1], [1], [0], [0], [0, 0, 1, 0], [], []>} : vector<8x16xf32>, vector<8x16xf32>, vector<8x8xf32> -> vector<8x8xf32>
      %cst_61 = arith.constant 2.500000e-01 : f32
      %190 = vector.broadcast %cst_61 : f32 to vector<8x8xf32>
      %191 = arith.mulf %189, %190 : vector<8x8xf32>
      %192 = vector.broadcast %163 : vector<1x8xf32> to vector<8x8xf32>
      %193 = arith.addf %191, %192 : vector<8x8xf32>
      %cst_62 = arith.constant dense<0xFF800000> : vector<8xf32>
      %194 = vector.multi_reduction <maximumf>, %193, %cst_62 [1] : vector<8x8xf32> to vector<8xf32>
      %195 = vector.shape_cast %194 : vector<8xf32> to vector<8x1xf32>
      %196 = vector.broadcast %195 : vector<8x1xf32> to vector<8x8xf32>
      %197 = arith.subf %193, %196 : vector<8x8xf32>
      %198 = math.exp %197 : vector<8x8xf32>
      %cst_63 = arith.constant dense<0.000000e+00> : vector<8xf32>
      %199 = vector.multi_reduction <add>, %198, %cst_63 [1] : vector<8x8xf32> to vector<8xf32>
      %200 = vector.shape_cast %199 : vector<8xf32> to vector<8x1xf32>
      %201 = vector.broadcast %200 : vector<8x1xf32> to vector<8x8xf32>
      %202 = arith.divf %198, %201 : vector<8x8xf32>
      %cst_64 = arith.constant dense<0.000000e+00> : vector<8x16xf32>
      %203 = tpu.matmul %202, %188, %cst_64 {dimension_numbers = #tpu.dot_dimension_numbers<[1], [0], [0], [1], [0, 0, 1, 1], [], []>} : vector<8x8xf32>, vector<8x16xf32>, vector<8x16xf32> -> vector<8x16xf32>
      %204 = arith.truncf %203 : vector<8x16xf32> to vector<8x16xbf16>
      %205 = vector.extract_strided_slice %74 {offsets = [16, 0], sizes = [16, 48], strides = [1, 1]} : vector<48x48xbf16> to vector<16x48xbf16>
      %cst_65 = arith.constant dense<0.000000e+00> : vector<8x48xf32>
      %206 = tpu.matmul %204, %205, %cst_65 {dimension_numbers = #tpu.dot_dimension_numbers<[1], [0], [0], [1], [0, 0, 1, 1], [], []>} : vector<8x16xbf16>, vector<16x48xbf16>, vector<8x48xf32> -> vector<8x48xf32>
      %207 = arith.addf %185, %206 : vector<8x48xf32>
      %208 = vector.extract_strided_slice %164 {offsets = [0, 32], sizes = [8, 16], strides = [1, 1]} : vector<8x144xf32> to vector<8x16xf32>
      %209 = vector.extract_strided_slice %164 {offsets = [0, 80], sizes = [8, 16], strides = [1, 1]} : vector<8x144xf32> to vector<8x16xf32>
      %210 = vector.extract_strided_slice %164 {offsets = [0, 128], sizes = [8, 16], strides = [1, 1]} : vector<8x144xf32> to vector<8x16xf32>
      %cst_66 = arith.constant dense<0.000000e+00> : vector<8x8xf32>
      %211 = tpu.matmul %208, %209, %cst_66 {dimension_numbers = #tpu.dot_dimension_numbers<[1], [1], [0], [0], [0, 0, 1, 0], [], []>} : vector<8x16xf32>, vector<8x16xf32>, vector<8x8xf32> -> vector<8x8xf32>
      %cst_67 = arith.constant 2.500000e-01 : f32
      %212 = vector.broadcast %cst_67 : f32 to vector<8x8xf32>
      %213 = arith.mulf %211, %212 : vector<8x8xf32>
      %214 = vector.broadcast %163 : vector<1x8xf32> to vector<8x8xf32>
      %215 = arith.addf %213, %214 : vector<8x8xf32>
      %cst_68 = arith.constant dense<0xFF800000> : vector<8xf32>
      %216 = vector.multi_reduction <maximumf>, %215, %cst_68 [1] : vector<8x8xf32> to vector<8xf32>
      %217 = vector.shape_cast %216 : vector<8xf32> to vector<8x1xf32>
      %218 = vector.broadcast %217 : vector<8x1xf32> to vector<8x8xf32>
      %219 = arith.subf %215, %218 : vector<8x8xf32>
      %220 = math.exp %219 : vector<8x8xf32>
      %cst_69 = arith.constant dense<0.000000e+00> : vector<8xf32>
      %221 = vector.multi_reduction <add>, %220, %cst_69 [1] : vector<8x8xf32> to vector<8xf32>
      %222 = vector.shape_cast %221 : vector<8xf32> to vector<8x1xf32>
      %223 = vector.broadcast %222 : vector<8x1xf32> to vector<8x8xf32>
      %224 = arith.divf %220, %223 : vector<8x8xf32>
      %cst_70 = arith.constant dense<0.000000e+00> : vector<8x16xf32>
      %225 = tpu.matmul %224, %210, %cst_70 {dimension_numbers = #tpu.dot_dimension_numbers<[1], [0], [0], [1], [0, 0, 1, 1], [], []>} : vector<8x8xf32>, vector<8x16xf32>, vector<8x16xf32> -> vector<8x16xf32>
      %226 = arith.truncf %225 : vector<8x16xf32> to vector<8x16xbf16>
      %227 = vector.extract_strided_slice %74 {offsets = [32, 0], sizes = [16, 48], strides = [1, 1]} : vector<48x48xbf16> to vector<16x48xbf16>
      %cst_71 = arith.constant dense<0.000000e+00> : vector<8x48xf32>
      %228 = tpu.matmul %226, %227, %cst_71 {dimension_numbers = #tpu.dot_dimension_numbers<[1], [0], [0], [1], [0, 0, 1, 1], [], []>} : vector<8x16xbf16>, vector<16x48xbf16>, vector<8x48xf32> -> vector<8x48xf32>
      %229 = arith.addf %207, %228 : vector<8x48xf32>
      %230 = tpu.concatenate %162, %229 in 0 : vector<8x48xf32>, vector<8x48xf32> -> vector<16x48xf32>
      %231 = vector.broadcast %85 : vector<1x48xf32> to vector<16x48xf32>
      %232 = arith.addf %230, %231 : vector<16x48xf32>
      %233 = arith.addf %arg10, %232 : vector<16x48xf32>
      %cst_72 = arith.constant dense<0.000000e+00> : vector<16xf32>
      %234 = vector.multi_reduction <add>, %233, %cst_72 [1] : vector<16x48xf32> to vector<16xf32>
      %235 = vector.shape_cast %234 : vector<16xf32> to vector<16x1xf32>
      %cst_73 = arith.constant 4.800000e+01 : f32
      %236 = vector.broadcast %cst_73 : f32 to vector<16x1xf32>
      %237 = arith.divf %235, %236 : vector<16x1xf32>
      %238 = vector.broadcast %237 : vector<16x1xf32> to vector<16x48xf32>
      %239 = arith.subf %233, %238 : vector<16x48xf32>
      %240 = arith.mulf %239, %239 : vector<16x48xf32>
      %cst_74 = arith.constant dense<0.000000e+00> : vector<16xf32>
      %241 = vector.multi_reduction <add>, %240, %cst_74 [1] : vector<16x48xf32> to vector<16xf32>
      %242 = vector.shape_cast %241 : vector<16xf32> to vector<16x1xf32>
      %cst_75 = arith.constant 4.800000e+01 : f32
      %243 = vector.broadcast %cst_75 : f32 to vector<16x1xf32>
      %244 = arith.divf %242, %243 : vector<16x1xf32>
      %245 = vector.broadcast %237 : vector<16x1xf32> to vector<16x48xf32>
      %246 = arith.subf %233, %245 : vector<16x48xf32>
      %cst_76 = arith.constant 9.99999974E-6 : f32
      %247 = vector.broadcast %cst_76 : f32 to vector<16x1xf32>
      %248 = arith.addf %244, %247 : vector<16x1xf32>
      %249 = math.rsqrt %248 : vector<16x1xf32>
      %250 = vector.broadcast %249 : vector<16x1xf32> to vector<16x48xf32>
      %251 = arith.mulf %246, %250 : vector<16x48xf32>
      %252 = vector.broadcast %88 : vector<1x48xf32> to vector<16x48xf32>
      %253 = arith.mulf %251, %252 : vector<16x48xf32>
      %254 = vector.broadcast %89 : vector<1x48xf32> to vector<16x48xf32>
      %255 = arith.addf %253, %254 : vector<16x48xf32>
      %256 = arith.truncf %255 : vector<16x48xf32> to vector<16x48xbf16>
      %cst_77 = arith.constant dense<0.000000e+00> : vector<16x64xf32>
      %257 = tpu.matmul %256, %77, %cst_77 {dimension_numbers = #tpu.dot_dimension_numbers<[1], [0], [0], [1], [0, 0, 1, 1], [], []>} : vector<16x48xbf16>, vector<48x64xbf16>, vector<16x64xf32> -> vector<16x64xf32>
      %258 = vector.broadcast %86 : vector<1x64xf32> to vector<16x64xf32>
      %259 = arith.addf %257, %258 : vector<16x64xf32>
      %cst_78 = arith.constant 0.000000e+00 : f32
      %260 = vector.broadcast %cst_78 : f32 to vector<16x64xf32>
      %261 = arith.maximumf %259, %260 : vector<16x64xf32>
      %262 = arith.truncf %261 : vector<16x64xf32> to vector<16x64xbf16>
      %cst_79 = arith.constant dense<0.000000e+00> : vector<16x48xf32>
      %263 = tpu.matmul %262, %80, %cst_79 {dimension_numbers = #tpu.dot_dimension_numbers<[1], [0], [0], [1], [0, 0, 1, 1], [], []>} : vector<16x64xbf16>, vector<64x48xbf16>, vector<16x48xf32> -> vector<16x48xf32>
      %264 = vector.broadcast %87 : vector<1x48xf32> to vector<16x48xf32>
      %265 = arith.addf %263, %264 : vector<16x48xf32>
      %266 = arith.addf %255, %265 : vector<16x48xf32>
      %cst_80 = arith.constant dense<0.000000e+00> : vector<16xf32>
      %267 = vector.multi_reduction <add>, %266, %cst_80 [1] : vector<16x48xf32> to vector<16xf32>
      %268 = vector.shape_cast %267 : vector<16xf32> to vector<16x1xf32>
      %cst_81 = arith.constant 4.800000e+01 : f32
      %269 = vector.broadcast %cst_81 : f32 to vector<16x1xf32>
      %270 = arith.divf %268, %269 : vector<16x1xf32>
      %271 = vector.broadcast %270 : vector<16x1xf32> to vector<16x48xf32>
      %272 = arith.subf %266, %271 : vector<16x48xf32>
      %273 = arith.mulf %272, %272 : vector<16x48xf32>
      %cst_82 = arith.constant dense<0.000000e+00> : vector<16xf32>
      %274 = vector.multi_reduction <add>, %273, %cst_82 [1] : vector<16x48xf32> to vector<16xf32>
      %275 = vector.shape_cast %274 : vector<16xf32> to vector<16x1xf32>
      %cst_83 = arith.constant 4.800000e+01 : f32
      %276 = vector.broadcast %cst_83 : f32 to vector<16x1xf32>
      %277 = arith.divf %275, %276 : vector<16x1xf32>
      %278 = vector.broadcast %270 : vector<16x1xf32> to vector<16x48xf32>
      %279 = arith.subf %266, %278 : vector<16x48xf32>
      %cst_84 = arith.constant 9.99999974E-6 : f32
      %280 = vector.broadcast %cst_84 : f32 to vector<16x1xf32>
      %281 = arith.addf %277, %280 : vector<16x1xf32>
      %282 = math.rsqrt %281 : vector<16x1xf32>
      %283 = vector.broadcast %282 : vector<16x1xf32> to vector<16x48xf32>
      %284 = arith.mulf %279, %283 : vector<16x48xf32>
      %285 = vector.broadcast %90 : vector<1x48xf32> to vector<16x48xf32>
      %286 = arith.mulf %284, %285 : vector<16x48xf32>
      %287 = vector.broadcast %91 : vector<1x48xf32> to vector<16x48xf32>
      %288 = arith.addf %286, %287 : vector<16x48xf32>
      %c3_i32_85 = arith.constant 3 : i32
      %289 = arith.addi %arg9, %c3_i32_85 : i32
      %290 = arith.index_cast %289 : i32 to index
      %c0_86 = arith.constant 0 : index
      %c0_87 = arith.constant 0 : index
      %291 = vector.load %arg2[%290, %c0_86, %c0_87] : memref<6x48x144xbf16, #tpu.memory_space<vmem>>, vector<1x48x144xbf16>
      %292 = vector.shape_cast %291 : vector<1x48x144xbf16> to vector<48x144xbf16>
      %293 = arith.index_cast %289 : i32 to index
      %c0_88 = arith.constant 0 : index
      %c0_89 = arith.constant 0 : index
      %294 = vector.load %arg3[%293, %c0_88, %c0_89] : memref<6x48x48xbf16, #tpu.memory_space<vmem>>, vector<1x48x48xbf16>
      %295 = vector.shape_cast %294 : vector<1x48x48xbf16> to vector<48x48xbf16>
      %296 = arith.index_cast %289 : i32 to index
      %c0_90 = arith.constant 0 : index
      %c0_91 = arith.constant 0 : index
      %297 = vector.load %arg4[%296, %c0_90, %c0_91] : memref<6x48x64xbf16, #tpu.memory_space<vmem>>, vector<1x48x64xbf16>
      %298 = vector.shape_cast %297 : vector<1x48x64xbf16> to vector<48x64xbf16>
      %299 = arith.index_cast %289 : i32 to index
      %c0_92 = arith.constant 0 : index
      %c0_93 = arith.constant 0 : index
      %300 = vector.load %arg5[%299, %c0_92, %c0_93] : memref<6x64x48xbf16, #tpu.memory_space<vmem>>, vector<1x64x48xbf16>
      %301 = vector.shape_cast %300 : vector<1x64x48xbf16> to vector<64x48xbf16>
      %302 = arith.index_cast %289 : i32 to index
      %c0_94 = arith.constant 0 : index
      %c0_95 = arith.constant 0 : index
      %303 = vector.load %arg6[%302, %c0_94, %c0_95] : memref<6x8x144xf32, #tpu.memory_space<vmem>>, vector<1x8x144xf32>
      %304 = vector.shape_cast %303 : vector<1x8x144xf32> to vector<8x144xf32>
      %305 = vector.extract_strided_slice %304 {offsets = [0, 0], sizes = [1, 144], strides = [1, 1]} : vector<8x144xf32> to vector<1x144xf32>
      %306 = vector.extract_strided_slice %304 {offsets = [1, 0], sizes = [1, 48], strides = [1, 1]} : vector<8x144xf32> to vector<1x48xf32>
      %307 = vector.extract_strided_slice %304 {offsets = [2, 0], sizes = [1, 64], strides = [1, 1]} : vector<8x144xf32> to vector<1x64xf32>
      %308 = vector.extract_strided_slice %304 {offsets = [3, 0], sizes = [1, 48], strides = [1, 1]} : vector<8x144xf32> to vector<1x48xf32>
      %309 = vector.extract_strided_slice %304 {offsets = [4, 0], sizes = [1, 48], strides = [1, 1]} : vector<8x144xf32> to vector<1x48xf32>
      %310 = vector.extract_strided_slice %304 {offsets = [5, 0], sizes = [1, 48], strides = [1, 1]} : vector<8x144xf32> to vector<1x48xf32>
      %311 = vector.extract_strided_slice %304 {offsets = [6, 0], sizes = [1, 48], strides = [1, 1]} : vector<8x144xf32> to vector<1x48xf32>
      %312 = vector.extract_strided_slice %304 {offsets = [7, 0], sizes = [1, 48], strides = [1, 1]} : vector<8x144xf32> to vector<1x48xf32>
      %313 = arith.truncf %arg11 : vector<16x48xf32> to vector<16x48xbf16>
      %cst_96 = arith.constant dense<0.000000e+00> : vector<16x144xf32>
      %314 = tpu.matmul %313, %292, %cst_96 {dimension_numbers = #tpu.dot_dimension_numbers<[1], [0], [0], [1], [0, 0, 1, 1], [], []>} : vector<16x48xbf16>, vector<48x144xbf16>, vector<16x144xf32> -> vector<16x144xf32>
      %315 = vector.broadcast %305 : vector<1x144xf32> to vector<16x144xf32>
      %316 = arith.addf %314, %315 : vector<16x144xf32>
      %317 = vector.extract_strided_slice %1 {offsets = [0, 0], sizes = [1, 8], strides = [1, 1]} : vector<2x8xf32> to vector<1x8xf32>
      %318 = vector.extract_strided_slice %316 {offsets = [0, 0], sizes = [8, 144], strides = [1, 1]} : vector<16x144xf32> to vector<8x144xf32>
      %319 = vector.extract_strided_slice %318 {offsets = [0, 0], sizes = [8, 16], strides = [1, 1]} : vector<8x144xf32> to vector<8x16xf32>
      %320 = vector.extract_strided_slice %318 {offsets = [0, 48], sizes = [8, 16], strides = [1, 1]} : vector<8x144xf32> to vector<8x16xf32>
      %321 = vector.extract_strided_slice %318 {offsets = [0, 96], sizes = [8, 16], strides = [1, 1]} : vector<8x144xf32> to vector<8x16xf32>
      %cst_97 = arith.constant dense<0.000000e+00> : vector<8x8xf32>
      %322 = tpu.matmul %319, %320, %cst_97 {dimension_numbers = #tpu.dot_dimension_numbers<[1], [1], [0], [0], [0, 0, 1, 0], [], []>} : vector<8x16xf32>, vector<8x16xf32>, vector<8x8xf32> -> vector<8x8xf32>
      %cst_98 = arith.constant 2.500000e-01 : f32
      %323 = vector.broadcast %cst_98 : f32 to vector<8x8xf32>
      %324 = arith.mulf %322, %323 : vector<8x8xf32>
      %325 = vector.broadcast %317 : vector<1x8xf32> to vector<8x8xf32>
      %326 = arith.addf %324, %325 : vector<8x8xf32>
      %cst_99 = arith.constant dense<0xFF800000> : vector<8xf32>
      %327 = vector.multi_reduction <maximumf>, %326, %cst_99 [1] : vector<8x8xf32> to vector<8xf32>
      %328 = vector.shape_cast %327 : vector<8xf32> to vector<8x1xf32>
      %329 = vector.broadcast %328 : vector<8x1xf32> to vector<8x8xf32>
      %330 = arith.subf %326, %329 : vector<8x8xf32>
      %331 = math.exp %330 : vector<8x8xf32>
      %cst_100 = arith.constant dense<0.000000e+00> : vector<8xf32>
      %332 = vector.multi_reduction <add>, %331, %cst_100 [1] : vector<8x8xf32> to vector<8xf32>
      %333 = vector.shape_cast %332 : vector<8xf32> to vector<8x1xf32>
      %334 = vector.broadcast %333 : vector<8x1xf32> to vector<8x8xf32>
      %335 = arith.divf %331, %334 : vector<8x8xf32>
      %cst_101 = arith.constant dense<0.000000e+00> : vector<8x16xf32>
      %336 = tpu.matmul %335, %321, %cst_101 {dimension_numbers = #tpu.dot_dimension_numbers<[1], [0], [0], [1], [0, 0, 1, 1], [], []>} : vector<8x8xf32>, vector<8x16xf32>, vector<8x16xf32> -> vector<8x16xf32>
      %337 = arith.truncf %336 : vector<8x16xf32> to vector<8x16xbf16>
      %338 = vector.extract_strided_slice %295 {offsets = [0, 0], sizes = [16, 48], strides = [1, 1]} : vector<48x48xbf16> to vector<16x48xbf16>
      %cst_102 = arith.constant dense<0.000000e+00> : vector<8x48xf32>
      %339 = tpu.matmul %337, %338, %cst_102 {dimension_numbers = #tpu.dot_dimension_numbers<[1], [0], [0], [1], [0, 0, 1, 1], [], []>} : vector<8x16xbf16>, vector<16x48xbf16>, vector<8x48xf32> -> vector<8x48xf32>
      %340 = vector.extract_strided_slice %318 {offsets = [0, 16], sizes = [8, 16], strides = [1, 1]} : vector<8x144xf32> to vector<8x16xf32>
      %341 = vector.extract_strided_slice %318 {offsets = [0, 64], sizes = [8, 16], strides = [1, 1]} : vector<8x144xf32> to vector<8x16xf32>
      %342 = vector.extract_strided_slice %318 {offsets = [0, 112], sizes = [8, 16], strides = [1, 1]} : vector<8x144xf32> to vector<8x16xf32>
      %cst_103 = arith.constant dense<0.000000e+00> : vector<8x8xf32>
      %343 = tpu.matmul %340, %341, %cst_103 {dimension_numbers = #tpu.dot_dimension_numbers<[1], [1], [0], [0], [0, 0, 1, 0], [], []>} : vector<8x16xf32>, vector<8x16xf32>, vector<8x8xf32> -> vector<8x8xf32>
      %cst_104 = arith.constant 2.500000e-01 : f32
      %344 = vector.broadcast %cst_104 : f32 to vector<8x8xf32>
      %345 = arith.mulf %343, %344 : vector<8x8xf32>
      %346 = vector.broadcast %317 : vector<1x8xf32> to vector<8x8xf32>
      %347 = arith.addf %345, %346 : vector<8x8xf32>
      %cst_105 = arith.constant dense<0xFF800000> : vector<8xf32>
      %348 = vector.multi_reduction <maximumf>, %347, %cst_105 [1] : vector<8x8xf32> to vector<8xf32>
      %349 = vector.shape_cast %348 : vector<8xf32> to vector<8x1xf32>
      %350 = vector.broadcast %349 : vector<8x1xf32> to vector<8x8xf32>
      %351 = arith.subf %347, %350 : vector<8x8xf32>
      %352 = math.exp %351 : vector<8x8xf32>
      %cst_106 = arith.constant dense<0.000000e+00> : vector<8xf32>
      %353 = vector.multi_reduction <add>, %352, %cst_106 [1] : vector<8x8xf32> to vector<8xf32>
      %354 = vector.shape_cast %353 : vector<8xf32> to vector<8x1xf32>
      %355 = vector.broadcast %354 : vector<8x1xf32> to vector<8x8xf32>
      %356 = arith.divf %352, %355 : vector<8x8xf32>
      %cst_107 = arith.constant dense<0.000000e+00> : vector<8x16xf32>
      %357 = tpu.matmul %356, %342, %cst_107 {dimension_numbers = #tpu.dot_dimension_numbers<[1], [0], [0], [1], [0, 0, 1, 1], [], []>} : vector<8x8xf32>, vector<8x16xf32>, vector<8x16xf32> -> vector<8x16xf32>
      %358 = arith.truncf %357 : vector<8x16xf32> to vector<8x16xbf16>
      %359 = vector.extract_strided_slice %295 {offsets = [16, 0], sizes = [16, 48], strides = [1, 1]} : vector<48x48xbf16> to vector<16x48xbf16>
      %cst_108 = arith.constant dense<0.000000e+00> : vector<8x48xf32>
      %360 = tpu.matmul %358, %359, %cst_108 {dimension_numbers = #tpu.dot_dimension_numbers<[1], [0], [0], [1], [0, 0, 1, 1], [], []>} : vector<8x16xbf16>, vector<16x48xbf16>, vector<8x48xf32> -> vector<8x48xf32>
      %361 = arith.addf %339, %360 : vector<8x48xf32>
      %362 = vector.extract_strided_slice %318 {offsets = [0, 32], sizes = [8, 16], strides = [1, 1]} : vector<8x144xf32> to vector<8x16xf32>
      %363 = vector.extract_strided_slice %318 {offsets = [0, 80], sizes = [8, 16], strides = [1, 1]} : vector<8x144xf32> to vector<8x16xf32>
      %364 = vector.extract_strided_slice %318 {offsets = [0, 128], sizes = [8, 16], strides = [1, 1]} : vector<8x144xf32> to vector<8x16xf32>
      %cst_109 = arith.constant dense<0.000000e+00> : vector<8x8xf32>
      %365 = tpu.matmul %362, %363, %cst_109 {dimension_numbers = #tpu.dot_dimension_numbers<[1], [1], [0], [0], [0, 0, 1, 0], [], []>} : vector<8x16xf32>, vector<8x16xf32>, vector<8x8xf32> -> vector<8x8xf32>
      %cst_110 = arith.constant 2.500000e-01 : f32
      %366 = vector.broadcast %cst_110 : f32 to vector<8x8xf32>
      %367 = arith.mulf %365, %366 : vector<8x8xf32>
      %368 = vector.broadcast %317 : vector<1x8xf32> to vector<8x8xf32>
      %369 = arith.addf %367, %368 : vector<8x8xf32>
      %cst_111 = arith.constant dense<0xFF800000> : vector<8xf32>
      %370 = vector.multi_reduction <maximumf>, %369, %cst_111 [1] : vector<8x8xf32> to vector<8xf32>
      %371 = vector.shape_cast %370 : vector<8xf32> to vector<8x1xf32>
      %372 = vector.broadcast %371 : vector<8x1xf32> to vector<8x8xf32>
      %373 = arith.subf %369, %372 : vector<8x8xf32>
      %374 = math.exp %373 : vector<8x8xf32>
      %cst_112 = arith.constant dense<0.000000e+00> : vector<8xf32>
      %375 = vector.multi_reduction <add>, %374, %cst_112 [1] : vector<8x8xf32> to vector<8xf32>
      %376 = vector.shape_cast %375 : vector<8xf32> to vector<8x1xf32>
      %377 = vector.broadcast %376 : vector<8x1xf32> to vector<8x8xf32>
      %378 = arith.divf %374, %377 : vector<8x8xf32>
      %cst_113 = arith.constant dense<0.000000e+00> : vector<8x16xf32>
      %379 = tpu.matmul %378, %364, %cst_113 {dimension_numbers = #tpu.dot_dimension_numbers<[1], [0], [0], [1], [0, 0, 1, 1], [], []>} : vector<8x8xf32>, vector<8x16xf32>, vector<8x16xf32> -> vector<8x16xf32>
      %380 = arith.truncf %379 : vector<8x16xf32> to vector<8x16xbf16>
      %381 = vector.extract_strided_slice %295 {offsets = [32, 0], sizes = [16, 48], strides = [1, 1]} : vector<48x48xbf16> to vector<16x48xbf16>
      %cst_114 = arith.constant dense<0.000000e+00> : vector<8x48xf32>
      %382 = tpu.matmul %380, %381, %cst_114 {dimension_numbers = #tpu.dot_dimension_numbers<[1], [0], [0], [1], [0, 0, 1, 1], [], []>} : vector<8x16xbf16>, vector<16x48xbf16>, vector<8x48xf32> -> vector<8x48xf32>
      %383 = arith.addf %361, %382 : vector<8x48xf32>
      %384 = vector.extract_strided_slice %1 {offsets = [1, 0], sizes = [1, 8], strides = [1, 1]} : vector<2x8xf32> to vector<1x8xf32>
      %385 = vector.extract_strided_slice %316 {offsets = [8, 0], sizes = [8, 144], strides = [1, 1]} : vector<16x144xf32> to vector<8x144xf32>
      %386 = vector.extract_strided_slice %385 {offsets = [0, 0], sizes = [8, 16], strides = [1, 1]} : vector<8x144xf32> to vector<8x16xf32>
      %387 = vector.extract_strided_slice %385 {offsets = [0, 48], sizes = [8, 16], strides = [1, 1]} : vector<8x144xf32> to vector<8x16xf32>
      %388 = vector.extract_strided_slice %385 {offsets = [0, 96], sizes = [8, 16], strides = [1, 1]} : vector<8x144xf32> to vector<8x16xf32>
      %cst_115 = arith.constant dense<0.000000e+00> : vector<8x8xf32>
      %389 = tpu.matmul %386, %387, %cst_115 {dimension_numbers = #tpu.dot_dimension_numbers<[1], [1], [0], [0], [0, 0, 1, 0], [], []>} : vector<8x16xf32>, vector<8x16xf32>, vector<8x8xf32> -> vector<8x8xf32>
      %cst_116 = arith.constant 2.500000e-01 : f32
      %390 = vector.broadcast %cst_116 : f32 to vector<8x8xf32>
      %391 = arith.mulf %389, %390 : vector<8x8xf32>
      %392 = vector.broadcast %384 : vector<1x8xf32> to vector<8x8xf32>
      %393 = arith.addf %391, %392 : vector<8x8xf32>
      %cst_117 = arith.constant dense<0xFF800000> : vector<8xf32>
      %394 = vector.multi_reduction <maximumf>, %393, %cst_117 [1] : vector<8x8xf32> to vector<8xf32>
      %395 = vector.shape_cast %394 : vector<8xf32> to vector<8x1xf32>
      %396 = vector.broadcast %395 : vector<8x1xf32> to vector<8x8xf32>
      %397 = arith.subf %393, %396 : vector<8x8xf32>
      %398 = math.exp %397 : vector<8x8xf32>
      %cst_118 = arith.constant dense<0.000000e+00> : vector<8xf32>
      %399 = vector.multi_reduction <add>, %398, %cst_118 [1] : vector<8x8xf32> to vector<8xf32>
      %400 = vector.shape_cast %399 : vector<8xf32> to vector<8x1xf32>
      %401 = vector.broadcast %400 : vector<8x1xf32> to vector<8x8xf32>
      %402 = arith.divf %398, %401 : vector<8x8xf32>
      %cst_119 = arith.constant dense<0.000000e+00> : vector<8x16xf32>
      %403 = tpu.matmul %402, %388, %cst_119 {dimension_numbers = #tpu.dot_dimension_numbers<[1], [0], [0], [1], [0, 0, 1, 1], [], []>} : vector<8x8xf32>, vector<8x16xf32>, vector<8x16xf32> -> vector<8x16xf32>
      %404 = arith.truncf %403 : vector<8x16xf32> to vector<8x16xbf16>
      %405 = vector.extract_strided_slice %295 {offsets = [0, 0], sizes = [16, 48], strides = [1, 1]} : vector<48x48xbf16> to vector<16x48xbf16>
      %cst_120 = arith.constant dense<0.000000e+00> : vector<8x48xf32>
      %406 = tpu.matmul %404, %405, %cst_120 {dimension_numbers = #tpu.dot_dimension_numbers<[1], [0], [0], [1], [0, 0, 1, 1], [], []>} : vector<8x16xbf16>, vector<16x48xbf16>, vector<8x48xf32> -> vector<8x48xf32>
      %407 = vector.extract_strided_slice %385 {offsets = [0, 16], sizes = [8, 16], strides = [1, 1]} : vector<8x144xf32> to vector<8x16xf32>
      %408 = vector.extract_strided_slice %385 {offsets = [0, 64], sizes = [8, 16], strides = [1, 1]} : vector<8x144xf32> to vector<8x16xf32>
      %409 = vector.extract_strided_slice %385 {offsets = [0, 112], sizes = [8, 16], strides = [1, 1]} : vector<8x144xf32> to vector<8x16xf32>
      %cst_121 = arith.constant dense<0.000000e+00> : vector<8x8xf32>
      %410 = tpu.matmul %407, %408, %cst_121 {dimension_numbers = #tpu.dot_dimension_numbers<[1], [1], [0], [0], [0, 0, 1, 0], [], []>} : vector<8x16xf32>, vector<8x16xf32>, vector<8x8xf32> -> vector<8x8xf32>
      %cst_122 = arith.constant 2.500000e-01 : f32
      %411 = vector.broadcast %cst_122 : f32 to vector<8x8xf32>
      %412 = arith.mulf %410, %411 : vector<8x8xf32>
      %413 = vector.broadcast %384 : vector<1x8xf32> to vector<8x8xf32>
      %414 = arith.addf %412, %413 : vector<8x8xf32>
      %cst_123 = arith.constant dense<0xFF800000> : vector<8xf32>
      %415 = vector.multi_reduction <maximumf>, %414, %cst_123 [1] : vector<8x8xf32> to vector<8xf32>
      %416 = vector.shape_cast %415 : vector<8xf32> to vector<8x1xf32>
      %417 = vector.broadcast %416 : vector<8x1xf32> to vector<8x8xf32>
      %418 = arith.subf %414, %417 : vector<8x8xf32>
      %419 = math.exp %418 : vector<8x8xf32>
      %cst_124 = arith.constant dense<0.000000e+00> : vector<8xf32>
      %420 = vector.multi_reduction <add>, %419, %cst_124 [1] : vector<8x8xf32> to vector<8xf32>
      %421 = vector.shape_cast %420 : vector<8xf32> to vector<8x1xf32>
      %422 = vector.broadcast %421 : vector<8x1xf32> to vector<8x8xf32>
      %423 = arith.divf %419, %422 : vector<8x8xf32>
      %cst_125 = arith.constant dense<0.000000e+00> : vector<8x16xf32>
      %424 = tpu.matmul %423, %409, %cst_125 {dimension_numbers = #tpu.dot_dimension_numbers<[1], [0], [0], [1], [0, 0, 1, 1], [], []>} : vector<8x8xf32>, vector<8x16xf32>, vector<8x16xf32> -> vector<8x16xf32>
      %425 = arith.truncf %424 : vector<8x16xf32> to vector<8x16xbf16>
      %426 = vector.extract_strided_slice %295 {offsets = [16, 0], sizes = [16, 48], strides = [1, 1]} : vector<48x48xbf16> to vector<16x48xbf16>
      %cst_126 = arith.constant dense<0.000000e+00> : vector<8x48xf32>
      %427 = tpu.matmul %425, %426, %cst_126 {dimension_numbers = #tpu.dot_dimension_numbers<[1], [0], [0], [1], [0, 0, 1, 1], [], []>} : vector<8x16xbf16>, vector<16x48xbf16>, vector<8x48xf32> -> vector<8x48xf32>
      %428 = arith.addf %406, %427 : vector<8x48xf32>
      %429 = vector.extract_strided_slice %385 {offsets = [0, 32], sizes = [8, 16], strides = [1, 1]} : vector<8x144xf32> to vector<8x16xf32>
      %430 = vector.extract_strided_slice %385 {offsets = [0, 80], sizes = [8, 16], strides = [1, 1]} : vector<8x144xf32> to vector<8x16xf32>
      %431 = vector.extract_strided_slice %385 {offsets = [0, 128], sizes = [8, 16], strides = [1, 1]} : vector<8x144xf32> to vector<8x16xf32>
      %cst_127 = arith.constant dense<0.000000e+00> : vector<8x8xf32>
      %432 = tpu.matmul %429, %430, %cst_127 {dimension_numbers = #tpu.dot_dimension_numbers<[1], [1], [0], [0], [0, 0, 1, 0], [], []>} : vector<8x16xf32>, vector<8x16xf32>, vector<8x8xf32> -> vector<8x8xf32>
      %cst_128 = arith.constant 2.500000e-01 : f32
      %433 = vector.broadcast %cst_128 : f32 to vector<8x8xf32>
      %434 = arith.mulf %432, %433 : vector<8x8xf32>
      %435 = vector.broadcast %384 : vector<1x8xf32> to vector<8x8xf32>
      %436 = arith.addf %434, %435 : vector<8x8xf32>
      %cst_129 = arith.constant dense<0xFF800000> : vector<8xf32>
      %437 = vector.multi_reduction <maximumf>, %436, %cst_129 [1] : vector<8x8xf32> to vector<8xf32>
      %438 = vector.shape_cast %437 : vector<8xf32> to vector<8x1xf32>
      %439 = vector.broadcast %438 : vector<8x1xf32> to vector<8x8xf32>
      %440 = arith.subf %436, %439 : vector<8x8xf32>
      %441 = math.exp %440 : vector<8x8xf32>
      %cst_130 = arith.constant dense<0.000000e+00> : vector<8xf32>
      %442 = vector.multi_reduction <add>, %441, %cst_130 [1] : vector<8x8xf32> to vector<8xf32>
      %443 = vector.shape_cast %442 : vector<8xf32> to vector<8x1xf32>
      %444 = vector.broadcast %443 : vector<8x1xf32> to vector<8x8xf32>
      %445 = arith.divf %441, %444 : vector<8x8xf32>
      %cst_131 = arith.constant dense<0.000000e+00> : vector<8x16xf32>
      %446 = tpu.matmul %445, %431, %cst_131 {dimension_numbers = #tpu.dot_dimension_numbers<[1], [0], [0], [1], [0, 0, 1, 1], [], []>} : vector<8x8xf32>, vector<8x16xf32>, vector<8x16xf32> -> vector<8x16xf32>
      %447 = arith.truncf %446 : vector<8x16xf32> to vector<8x16xbf16>
      %448 = vector.extract_strided_slice %295 {offsets = [32, 0], sizes = [16, 48], strides = [1, 1]} : vector<48x48xbf16> to vector<16x48xbf16>
      %cst_132 = arith.constant dense<0.000000e+00> : vector<8x48xf32>
      %449 = tpu.matmul %447, %448, %cst_132 {dimension_numbers = #tpu.dot_dimension_numbers<[1], [0], [0], [1], [0, 0, 1, 1], [], []>} : vector<8x16xbf16>, vector<16x48xbf16>, vector<8x48xf32> -> vector<8x48xf32>
      %450 = arith.addf %428, %449 : vector<8x48xf32>
      %451 = tpu.concatenate %383, %450 in 0 : vector<8x48xf32>, vector<8x48xf32> -> vector<16x48xf32>
      %452 = vector.broadcast %306 : vector<1x48xf32> to vector<16x48xf32>
      %453 = arith.addf %451, %452 : vector<16x48xf32>
      %454 = arith.addf %arg11, %453 : vector<16x48xf32>
      %cst_133 = arith.constant dense<0.000000e+00> : vector<16xf32>
      %455 = vector.multi_reduction <add>, %454, %cst_133 [1] : vector<16x48xf32> to vector<16xf32>
      %456 = vector.shape_cast %455 : vector<16xf32> to vector<16x1xf32>
      %cst_134 = arith.constant 4.800000e+01 : f32
      %457 = vector.broadcast %cst_134 : f32 to vector<16x1xf32>
      %458 = arith.divf %456, %457 : vector<16x1xf32>
      %459 = vector.broadcast %458 : vector<16x1xf32> to vector<16x48xf32>
      %460 = arith.subf %454, %459 : vector<16x48xf32>
      %461 = arith.mulf %460, %460 : vector<16x48xf32>
      %cst_135 = arith.constant dense<0.000000e+00> : vector<16xf32>
      %462 = vector.multi_reduction <add>, %461, %cst_135 [1] : vector<16x48xf32> to vector<16xf32>
      %463 = vector.shape_cast %462 : vector<16xf32> to vector<16x1xf32>
      %cst_136 = arith.constant 4.800000e+01 : f32
      %464 = vector.broadcast %cst_136 : f32 to vector<16x1xf32>
      %465 = arith.divf %463, %464 : vector<16x1xf32>
      %466 = vector.broadcast %458 : vector<16x1xf32> to vector<16x48xf32>
      %467 = arith.subf %454, %466 : vector<16x48xf32>
      %cst_137 = arith.constant 9.99999974E-6 : f32
      %468 = vector.broadcast %cst_137 : f32 to vector<16x1xf32>
      %469 = arith.addf %465, %468 : vector<16x1xf32>
      %470 = math.rsqrt %469 : vector<16x1xf32>
      %471 = vector.broadcast %470 : vector<16x1xf32> to vector<16x48xf32>
      %472 = arith.mulf %467, %471 : vector<16x48xf32>
      %473 = vector.broadcast %309 : vector<1x48xf32> to vector<16x48xf32>
      %474 = arith.mulf %472, %473 : vector<16x48xf32>
      %475 = vector.broadcast %310 : vector<1x48xf32> to vector<16x48xf32>
      %476 = arith.addf %474, %475 : vector<16x48xf32>
      %477 = arith.truncf %476 : vector<16x48xf32> to vector<16x48xbf16>
      %cst_138 = arith.constant dense<0.000000e+00> : vector<16x64xf32>
      %478 = tpu.matmul %477, %298, %cst_138 {dimension_numbers = #tpu.dot_dimension_numbers<[1], [0], [0], [1], [0, 0, 1, 1], [], []>} : vector<16x48xbf16>, vector<48x64xbf16>, vector<16x64xf32> -> vector<16x64xf32>
      %479 = vector.broadcast %307 : vector<1x64xf32> to vector<16x64xf32>
      %480 = arith.addf %478, %479 : vector<16x64xf32>
      %cst_139 = arith.constant 0.000000e+00 : f32
      %481 = vector.broadcast %cst_139 : f32 to vector<16x64xf32>
      %482 = arith.maximumf %480, %481 : vector<16x64xf32>
      %483 = arith.truncf %482 : vector<16x64xf32> to vector<16x64xbf16>
      %cst_140 = arith.constant dense<0.000000e+00> : vector<16x48xf32>
      %484 = tpu.matmul %483, %301, %cst_140 {dimension_numbers = #tpu.dot_dimension_numbers<[1], [0], [0], [1], [0, 0, 1, 1], [], []>} : vector<16x64xbf16>, vector<64x48xbf16>, vector<16x48xf32> -> vector<16x48xf32>
      %485 = vector.broadcast %308 : vector<1x48xf32> to vector<16x48xf32>
      %486 = arith.addf %484, %485 : vector<16x48xf32>
      %487 = arith.addf %476, %486 : vector<16x48xf32>
      %cst_141 = arith.constant dense<0.000000e+00> : vector<16xf32>
      %488 = vector.multi_reduction <add>, %487, %cst_141 [1] : vector<16x48xf32> to vector<16xf32>
      %489 = vector.shape_cast %488 : vector<16xf32> to vector<16x1xf32>
      %cst_142 = arith.constant 4.800000e+01 : f32
      %490 = vector.broadcast %cst_142 : f32 to vector<16x1xf32>
      %491 = arith.divf %489, %490 : vector<16x1xf32>
      %492 = vector.broadcast %491 : vector<16x1xf32> to vector<16x48xf32>
      %493 = arith.subf %487, %492 : vector<16x48xf32>
      %494 = arith.mulf %493, %493 : vector<16x48xf32>
      %cst_143 = arith.constant dense<0.000000e+00> : vector<16xf32>
      %495 = vector.multi_reduction <add>, %494, %cst_143 [1] : vector<16x48xf32> to vector<16xf32>
      %496 = vector.shape_cast %495 : vector<16xf32> to vector<16x1xf32>
      %cst_144 = arith.constant 4.800000e+01 : f32
      %497 = vector.broadcast %cst_144 : f32 to vector<16x1xf32>
      %498 = arith.divf %496, %497 : vector<16x1xf32>
      %499 = vector.broadcast %491 : vector<16x1xf32> to vector<16x48xf32>
      %500 = arith.subf %487, %499 : vector<16x48xf32>
      %cst_145 = arith.constant 9.99999974E-6 : f32
      %501 = vector.broadcast %cst_145 : f32 to vector<16x1xf32>
      %502 = arith.addf %498, %501 : vector<16x1xf32>
      %503 = math.rsqrt %502 : vector<16x1xf32>
      %504 = vector.broadcast %503 : vector<16x1xf32> to vector<16x48xf32>
      %505 = arith.mulf %500, %504 : vector<16x48xf32>
      %506 = vector.broadcast %311 : vector<1x48xf32> to vector<16x48xf32>
      %507 = arith.mulf %505, %506 : vector<16x48xf32>
      %508 = vector.broadcast %312 : vector<1x48xf32> to vector<16x48xf32>
      %509 = arith.addf %507, %508 : vector<16x48xf32>
      scf.yield %288, %509 : vector<16x48xf32>, vector<16x48xf32>
    }
    %c3_i32_3 = arith.constant 3 : i32
    %4 = vector.extract_strided_slice %3#0 {offsets = [0, 0], sizes = [8, 48], strides = [1, 1]} : vector<16x48xf32> to vector<8x48xf32>
    %cst = arith.constant dense<0.000000e+00> : vector<48xf32>
    %5 = vector.multi_reduction <add>, %4, %cst [0] : vector<8x48xf32> to vector<48xf32>
    %6 = vector.shape_cast %5 : vector<48xf32> to vector<1x48xf32>
    %cst_4 = arith.constant 8.000000e+00 : f32
    %7 = vector.broadcast %cst_4 : f32 to vector<1x48xf32>
    %8 = arith.divf %6, %7 : vector<1x48xf32>
    %9 = vector.extract_strided_slice %3#0 {offsets = [8, 0], sizes = [8, 48], strides = [1, 1]} : vector<16x48xf32> to vector<8x48xf32>
    %cst_5 = arith.constant dense<0.000000e+00> : vector<48xf32>
    %10 = vector.multi_reduction <add>, %9, %cst_5 [0] : vector<8x48xf32> to vector<48xf32>
    %11 = vector.shape_cast %10 : vector<48xf32> to vector<1x48xf32>
    %cst_6 = arith.constant 8.000000e+00 : f32
    %12 = vector.broadcast %cst_6 : f32 to vector<1x48xf32>
    %13 = arith.divf %11, %12 : vector<1x48xf32>
    %14 = tpu.concatenate %8, %13 in 0 : vector<1x48xf32>, vector<1x48xf32> -> vector<2x48xf32>
    %15 = vector.extract_strided_slice %3#1 {offsets = [0, 0], sizes = [8, 48], strides = [1, 1]} : vector<16x48xf32> to vector<8x48xf32>
    %cst_7 = arith.constant dense<0.000000e+00> : vector<48xf32>
    %16 = vector.multi_reduction <add>, %15, %cst_7 [0] : vector<8x48xf32> to vector<48xf32>
    %17 = vector.shape_cast %16 : vector<48xf32> to vector<1x48xf32>
    %cst_8 = arith.constant 8.000000e+00 : f32
    %18 = vector.broadcast %cst_8 : f32 to vector<1x48xf32>
    %19 = arith.divf %17, %18 : vector<1x48xf32>
    %20 = vector.extract_strided_slice %3#1 {offsets = [8, 0], sizes = [8, 48], strides = [1, 1]} : vector<16x48xf32> to vector<8x48xf32>
    %cst_9 = arith.constant dense<0.000000e+00> : vector<48xf32>
    %21 = vector.multi_reduction <add>, %20, %cst_9 [0] : vector<8x48xf32> to vector<48xf32>
    %22 = vector.shape_cast %21 : vector<48xf32> to vector<1x48xf32>
    %cst_10 = arith.constant 8.000000e+00 : f32
    %23 = vector.broadcast %cst_10 : f32 to vector<1x48xf32>
    %24 = arith.divf %22, %23 : vector<1x48xf32>
    %25 = tpu.concatenate %19, %24 in 0 : vector<1x48xf32>, vector<1x48xf32> -> vector<2x48xf32>
    %c0_11 = arith.constant 0 : index
    %c0_12 = arith.constant 0 : index
    %26 = vector.load %arg7[%c0_11, %c0_12] : memref<49x102xf32, #tpu.memory_space<vmem>>, vector<49x102xf32>
    %27 = vector.extract_strided_slice %26 {offsets = [0, 0], sizes = [48, 102], strides = [1, 1]} : vector<49x102xf32> to vector<48x102xf32>
    %28 = vector.extract_strided_slice %26 {offsets = [48, 0], sizes = [1, 102], strides = [1, 1]} : vector<49x102xf32> to vector<1x102xf32>
    %29 = vector.extract_strided_slice %27 {offsets = [0, 100], sizes = [48, 2], strides = [1, 1]} : vector<48x102xf32> to vector<48x2xf32>
    %cst_13 = arith.constant dense<0.000000e+00> : vector<2x2xf32>
    %30 = tpu.matmul %14, %29, %cst_13 {dimension_numbers = #tpu.dot_dimension_numbers<[1], [0], [0], [1], [0, 0, 1, 1], [], []>} : vector<2x48xf32>, vector<48x2xf32>, vector<2x2xf32> -> vector<2x2xf32>
    %31 = vector.extract_strided_slice %28 {offsets = [0, 100], sizes = [1, 2], strides = [1, 1]} : vector<1x102xf32> to vector<1x2xf32>
    %32 = vector.broadcast %31 : vector<1x2xf32> to vector<2x2xf32>
    %33 = arith.addf %30, %32 : vector<2x2xf32>
    %34 = vector.extract_strided_slice %27 {offsets = [0, 0], sizes = [48, 96], strides = [1, 1]} : vector<48x102xf32> to vector<48x96xf32>
    %cst_14 = arith.constant dense<0.000000e+00> : vector<2x96xf32>
    %35 = tpu.matmul %25, %34, %cst_14 {dimension_numbers = #tpu.dot_dimension_numbers<[1], [0], [0], [1], [0, 0, 1, 1], [], []>} : vector<2x48xf32>, vector<48x96xf32>, vector<2x96xf32> -> vector<2x96xf32>
    %36 = vector.extract_strided_slice %28 {offsets = [0, 0], sizes = [1, 96], strides = [1, 1]} : vector<1x102xf32> to vector<1x96xf32>
    %37 = vector.broadcast %36 : vector<1x96xf32> to vector<2x96xf32>
    %38 = arith.addf %35, %37 : vector<2x96xf32>
    %39 = math.tanh %38 : vector<2x96xf32>
    %40 = vector.extract_strided_slice %39 {offsets = [0, 0], sizes = [2, 48], strides = [1, 1]} : vector<2x96xf32> to vector<2x48xf32>
    %41 = vector.extract_strided_slice %27 {offsets = [0, 96], sizes = [48, 2], strides = [1, 1]} : vector<48x102xf32> to vector<48x2xf32>
    %cst_15 = arith.constant dense<0.000000e+00> : vector<2x2xf32>
    %42 = tpu.matmul %40, %41, %cst_15 {dimension_numbers = #tpu.dot_dimension_numbers<[1], [0], [0], [1], [0, 0, 1, 1], [], []>} : vector<2x48xf32>, vector<48x2xf32>, vector<2x2xf32> -> vector<2x2xf32>
    %43 = vector.extract_strided_slice %39 {offsets = [0, 48], sizes = [2, 48], strides = [1, 1]} : vector<2x96xf32> to vector<2x48xf32>
    %44 = vector.extract_strided_slice %27 {offsets = [0, 98], sizes = [48, 2], strides = [1, 1]} : vector<48x102xf32> to vector<48x2xf32>
    %cst_16 = arith.constant dense<0.000000e+00> : vector<2x2xf32>
    %45 = tpu.matmul %43, %44, %cst_16 {dimension_numbers = #tpu.dot_dimension_numbers<[1], [0], [0], [1], [0, 0, 1, 1], [], []>} : vector<2x48xf32>, vector<48x2xf32>, vector<2x2xf32> -> vector<2x2xf32>
    %46 = math.exp %42 : vector<2x2xf32>
    %cst_17 = arith.constant dense<0.000000e+00> : vector<2xf32>
    %47 = vector.multi_reduction <add>, %46, %cst_17 [1] : vector<2x2xf32> to vector<2xf32>
    %48 = vector.shape_cast %47 : vector<2xf32> to vector<2x1xf32>
    %cst_18 = arith.constant 9.99999971E-10 : f32
    %49 = vector.broadcast %cst_18 : f32 to vector<2x1xf32>
    %50 = arith.addf %48, %49 : vector<2x1xf32>
    %51 = vector.broadcast %50 : vector<2x1xf32> to vector<2x2xf32>
    %52 = arith.divf %46, %51 : vector<2x2xf32>
    %53 = math.exp %45 : vector<2x2xf32>
    %cst_19 = arith.constant dense<0.000000e+00> : vector<2xf32>
    %54 = vector.multi_reduction <add>, %53, %cst_19 [1] : vector<2x2xf32> to vector<2xf32>
    %55 = vector.shape_cast %54 : vector<2xf32> to vector<2x1xf32>
    %cst_20 = arith.constant 9.99999971E-10 : f32
    %56 = vector.broadcast %cst_20 : f32 to vector<2x1xf32>
    %57 = arith.addf %55, %56 : vector<2x1xf32>
    %58 = vector.broadcast %57 : vector<2x1xf32> to vector<2x2xf32>
    %59 = arith.divf %53, %58 : vector<2x2xf32>
    %60 = arith.mulf %33, %52 : vector<2x2xf32>
    %cst_21 = arith.constant dense<0.000000e+00> : vector<2xf32>
    %61 = vector.multi_reduction <add>, %60, %cst_21 [1] : vector<2x2xf32> to vector<2xf32>
    %62 = vector.shape_cast %61 : vector<2xf32> to vector<2x1xf32>
    %63 = arith.mulf %33, %59 : vector<2x2xf32>
    %cst_22 = arith.constant dense<0.000000e+00> : vector<2xf32>
    %64 = vector.multi_reduction <add>, %63, %cst_22 [1] : vector<2x2xf32> to vector<2xf32>
    %65 = vector.shape_cast %64 : vector<2xf32> to vector<2x1xf32>
    %66 = tpu.concatenate %62, %65 in 1 : vector<2x1xf32>, vector<2x1xf32> -> vector<2x2xf32>
    %67 = tpu.concatenate %66, %33 in 0 : vector<2x2xf32>, vector<2x2xf32> -> vector<4x2xf32>
    %c0_23 = arith.constant 0 : index
    %c0_24 = arith.constant 0 : index
    %68 = vector.load %arg8[%c0_23, %c0_24] : memref<4x2xf32, #tpu.memory_space<vmem>>, vector<4x2xf32>
    tpu.vector_store %arg8[%c0_23, %c0_24], %67 {strides = array<i32>} : memref<4x2xf32, #tpu.memory_space<vmem>>, vector<4x2xf32>,
    return
  }
}

</mosaic_0001>

<llo_original>
// kernel: _lambda_.1
$region0: #{_lambda_.1}
  #allocation0 [shape = 'u32[]', space=smem, size = 0x4, offset = 0x4, fixed_abs, tag = 'smem constant byte address 0x4 - core index']
  #allocation1 [shape = 'u32[144,128]{1,0:T(1,128)}', space=vmem, size = 0x12000, scoped, tag = 'internal scratch']
  %s0 = inlined_call_operand.vmem [shape: f32[16,48], index: 0, kind: input, shape index: {}]
  %s1 = inlined_call_operand.vmem [shape: f32[2,8], index: 1, kind: input, shape index: {}]
  %s2 = inlined_call_operand.vmem [shape: bf16[6,48,144], index: 2, kind: input, shape index: {}]
  %s3 = inlined_call_operand.vmem [shape: bf16[6,48,48], index: 3, kind: input, shape index: {}]
  %s4 = inlined_call_operand.vmem [shape: bf16[6,48,64], index: 4, kind: input, shape index: {}]
  %s5 = inlined_call_operand.vmem [shape: bf16[6,64,48], index: 5, kind: input, shape index: {}]
  %s6 = inlined_call_operand.vmem [shape: f32[6,8,144], index: 6, kind: input, shape index: {}]
  %s7 = inlined_call_operand.vmem [shape: f32[49,102], index: 7, kind: input, shape index: {}]
  %s8 = inlined_call_operand.vmem [shape: f32[4,2], index: 8, kind: output, shape index: {}]
  %s9 = sld [smem:[#allocation0]]
  $region49: #{_lambda_.1} parent=0
    _
  %s11 = ssub.s32 1, %s9
  %s12 = scalar_select 0, %s11, %s9
  // Predicated region
  $region2: #{_lambda_.1} parent=0 // pred_check
    _
  $region3: #{_lambda_.1} parent=0 // pred_check_branch
    %14 = sbr.rel (0) target = $region5
  $region4: #{_lambda_.1} parent=0 // pred_region
    _
  $region5: #{_lambda_.1} parent=0 // pred_fallthru
    _
  // Predicated region
  $region6: #{_lambda_.1} parent=0 // pred_check
    _
  $region7: #{_lambda_.1} parent=0 // pred_check_branch
    %16 = sbr.rel (0) target = $region9
  $region8: #{_lambda_.1} parent=0 // pred_region
    _
  $region9: #{_lambda_.1} parent=0 // pred_fallthru
    _
  // Predicated region
  $region10: #{_lambda_.1} parent=0 // pred_check
    _
  $region11: #{_lambda_.1} parent=0 // pred_check_branch
    %18 = sbr.rel (0) target = $region13
  $region12: #{_lambda_.1} parent=0 // pred_region
    _
  $region13: #{_lambda_.1} parent=0 // pred_fallthru
    _
  // Predicated region
  $region14: #{_lambda_.1} parent=0 // pred_check
    _
  $region15: #{_lambda_.1} parent=0 // pred_check_branch
    %20 = sbr.rel (0) target = $region17
  $region16: #{_lambda_.1} parent=0 // pred_region
    _
  $region17: #{_lambda_.1} parent=0 // pred_fallthru
    _
  // Predicated region
  $region18: #{_lambda_.1} parent=0 // pred_check
    _
  $region19: #{_lambda_.1} parent=0 // pred_check_branch
    %22 = sbr.rel (0) target = $region21
  $region20: #{_lambda_.1} parent=0 // pred_region
    _
  $region21: #{_lambda_.1} parent=0 // pred_fallthru
    _
  // Predicated region
  $region22: #{_lambda_.1} parent=0 // pred_check
    _
  $region23: #{_lambda_.1} parent=0 // pred_check_branch
    %24 = sbr.rel (0) target = $region25
  $region24: #{_lambda_.1} parent=0 // pred_region
    _
  $region25: #{_lambda_.1} parent=0 // pred_fallthru
    _
  // Predicated region
  $region26: #{_lambda_.1} parent=0 // pred_check
    _
  $region27: #{_lambda_.1} parent=0 // pred_check_branch
    %26 = sbr.rel (0) target = $region29
  $region28: #{_lambda_.1} parent=0 // pred_region
    _
  $region29: #{_lambda_.1} parent=0 // pred_fallthru
    _
  // Predicated region
  $region30: #{_lambda_.1} parent=0 // pred_check
    _
  $region31: #{_lambda_.1} parent=0 // pred_check_branch
    %28 = sbr.rel (0) target = $region33
  $region32: #{_lambda_.1} parent=0 // pred_region
    _
  $region33: #{_lambda_.1} parent=0 // pred_fallthru
    _
  %v30 = vld [vmem:[%s0] sm:$0xff]
  %v31 = vld [vmem:[%s0 + $0x8] sm:$0xff]
  %v32 = vld [vmem:[%s1] sm:$0x3]
  loop: start=0, step=1, limit=3
  $region34: #{_lambda_.1} parent=0 // loop_pre_header
    _
  $region35: #{_lambda_.1} parent=0 // loop_header
    %s34 = sphi 0, %s38
    %p35 = scmp.ge.s32.totalorder %s34, 3
    %v39 = vphi %v30, %v1687
    %v40 = vphi %v31, %v1688
    %v41 = vphi %v30, %v3321
    %v42 = vphi %v31, %v3322
  $region36: #{_lambda_.1} parent=0 // loop_header_branch
    %37 = sbr.rel (%p35) target = $region40
  $region37: #{_lambda_.1} parent=0 // loop_body
    %s43 = smul.u32 %s34, 12
    %s44 = smul.addr %s43, 4
    %s45 = scalar_lea.vmem %s2, %s44
    %v46 = vld [vmem:[%s45] sm:$0xff]
    %v47 = vld [vmem:[%s45 + $0x8] sm:$0xff]
    %v48 = vld [vmem:[%s45 + $0x10] sm:$0xff]
    %v49 = vld [vmem:[%s45 + $0x18] sm:$0xff]
    %v50 = vld [vmem:[%s45 + $0x20] sm:$0xff]
    %v51 = vld [vmem:[%s45 + $0x28] sm:$0xff]
    %s52 = smul.u32 %s34, 6
    %s53 = smul.addr %s52, 4
    %s54 = scalar_lea.vmem %s3, %s53
    %v55 = vld [vmem:[%s54] sm:$0xf]
    %v56 = vld [vmem:[%s54 + $0x4] sm:$0xf]
    %v57 = vld [vmem:[%s54 + $0x8] sm:$0xf]
    %v58 = vld [vmem:[%s54 + $0xc] sm:$0xf]
    %v59 = vld [vmem:[%s54 + $0x10] sm:$0xf]
    %v60 = vld [vmem:[%s54 + $0x14] sm:$0xf]
    %s61 = smul.addr %s52, 4
    %s62 = scalar_lea.vmem %s4, %s61
    %v63 = vld [vmem:[%s62] sm:$0xf]
    %v64 = vld [vmem:[%s62 + $0x4] sm:$0xf]
    %v65 = vld [vmem:[%s62 + $0x8] sm:$0xf]
    %v66 = vld [vmem:[%s62 + $0xc] sm:$0xf]
    %v67 = vld [vmem:[%s62 + $0x10] sm:$0xf]
    %v68 = vld [vmem:[%s62 + $0x14] sm:$0xf]
    %s69 = smul.u32 %s34, 8
    %s70 = smul.addr %s69, 4
    %s71 = scalar_lea.vmem %s5, %s70
    %v72 = vld [vmem:[%s71] sm:$0xf]
    %v73 = vld [vmem:[%s71 + $0x4] sm:$0xf]
    %v74 = vld [vmem:[%s71 + $0x8] sm:$0xf]
    %v75 = vld [vmem:[%s71 + $0xc] sm:$0xf]
    %v76 = vld [vmem:[%s71 + $0x10] sm:$0xf]
    %v77 = vld [vmem:[%s71 + $0x14] sm:$0xf]
    %v78 = vld [vmem:[%s71 + $0x18] sm:$0xf]
    %v79 = vld [vmem:[%s71 + $0x1c] sm:$0xf]
    %s80 = smul.u32 %s34, 2
    %s81 = smul.addr %s80, 8
    %s82 = scalar_lea.vmem %s6, %s81
    %v83 = vld [vmem:[%s82] sm:$0xff]
    %v84 = vld [vmem:[%s82 + $0x8] sm:$0xff]
    %v85 = vpack.c.bf16 %v40, %v39
    %v86 = vlaneseq
    %v87 = vshrl.u32 %v86, 7
    %v88 = vsub.s32 0, %v87
    %v89 = vrot.slane %v83, %v88
    %v90 = vlaneseq
    %v91 = vshrl.u32 %v90, 7
    %v92 = vsub.s32 0, %v91
    %v93 = vrot.slane %v84, %v92
    %v100 = vunpack.c.l.b16 %v46
    %v101 = vunpack.c.h.b16 %v46
    %v102 = vunpack.c.l.b16 %v47
    %v103 = vunpack.c.h.b16 %v47
    %v104 = vunpack.c.l.b16 %v48
    %v105 = vunpack.c.h.b16 %v48
    %v106 = vunpack.c.l.b16 %v49
    %v107 = vunpack.c.h.b16 %v49
    %v108 = vunpack.c.l.b16 %v50
    %v109 = vunpack.c.h.b16 %v50
    %v110 = vunpack.c.l.b16 %v51
    %v111 = vunpack.c.h.b16 %v51
    %v112 = vpack.c.b16 %v102, %v100
    %v113 = vpack.c.b16 %v103, %v101
    %v114 = vpack.c.b16 %v106, %v104
    %v115 = vpack.c.b16 %v107, %v105
    %v116 = vpack.c.b16 %v110, %v108
    %v117 = vpack.c.b16 %v111, %v109
    %vm124 = vcmask 392192
    %v126 = vsel %vm124, %v85, 0
    %128 = vmatprep.subr.bf16.mxu0 %v113
    %129 = vmatpush1.bf16.msra.mxu0 %v112
    %130 = vmatprep.subr.bf16.mxu0 %v115
    %131 = vmatpush1.bf16.msra.mxu0 %v114
    %132 = vmatprep.subr.bf16.mxu0 %v117
    %133 = vmatpush1.bf16.msra.mxu0 %v116
    %134 = vmatprep.subr.bf16.mxu0 0
    %135 = vmatpush1.bf16.msra.mxu0 0
    %136 = vmatprep.subr.bf16.mxu0 0
    %137 = vmatpush1.bf16.msra.mxu0 0
    %138 = vmatprep.subr.bf16.mxu0 0
    %139 = vmatpush1.bf16.msra.mxu0 0
    %140 = vmatprep.subr.bf16.mxu0 0
    %141 = vmatpush1.bf16.msra.mxu0 0
    %142 = vmatprep.subr.bf16.mxu0 0
    %143 = vmatpush1.bf16.msra.mxu0 0
    %144 = vmatprep.subr.bf16.mxu0 0
    %145 = vmatpush1.bf16.msra.mxu0 0
    %146 = vmatprep.subr.bf16.mxu0 0
    %147 = vmatpush1.bf16.msra.mxu0 0
    %148 = vmatprep.subr.bf16.mxu0 0
    %149 = vmatpush1.bf16.msra.mxu0 0
    %150 = vmatprep.subr.bf16.mxu0 0
    %151 = vmatpush1.bf16.msra.mxu0 0
    %152 = vmatprep.subr.bf16.mxu0 0
    %153 = vmatpush1.bf16.msra.mxu0 0
    %154 = vmatprep.subr.bf16.mxu0 0
    %155 = vmatpush1.bf16.msra.mxu0 0
    %156 = vmatprep.subr.bf16.mxu0 0
    %157 = vmatpush1.bf16.msra.mxu0 0
    %158 = vmatprep.subr.bf16.mxu0 0
    %159 = vmatpush1.bf16.msra.mxu0 0
    %160 = vmatprep.mubr.bf16.mxu0 0
    %161 = vmatmul.mubr.bf16.gmra.mrb[0].mxu0 %v126
    %v162 = vpop.f32.mrb[0].mxu0
    %v163 = vadd.f32 %v89, %v162
    %v164 = vpop.f32.mrb[0].mxu0
    %v165 = vadd.f32 %v93, %v164
    %v166 = vpop.f32.mrb[0].mxu0
    %v167 = vadd.f32 %v89, %v166
    %v168 = vpop.f32.mrb[0].mxu0
    %v169 = vadd.f32 %v93, %v168
    %170 = vdwg.mxu0
    %172 = vrot.lane.b32.xlu0 %v163, 80
    %v173 = vpop.permute.xlu0 %172
    %vm174 = vcmask 130048
    %v175 = vsel %vm174, %v163, 0
    %v177 = vsel %vm174, %v173, 0
    %179 = vmatprep.subr.mxu0 0.0
    %180 = vmatpush1.xpose.msra.mxu0 %v177
    %181 = vmatprep.subr.mxu0 0.0
    %182 = vmatpush1.xpose.msra.mxu0 0.0
    %183 = vmatprep.subr.mxu0 0.0
    %184 = vmatpush1.xpose.msra.mxu0 0.0
    %185 = vmatprep.subr.mxu0 0.0
    %186 = vmatpush1.xpose.msra.mxu0 0.0
    %187 = vmatprep.subr.mxu0 0.0
    %188 = vmatpush1.xpose.msra.mxu0 0.0
    %189 = vmatprep.subr.mxu0 0.0
    %190 = vmatpush1.xpose.msra.mxu0 0.0
    %191 = vmatprep.subr.mxu0 0.0
    %192 = vmatpush1.xpose.msra.mxu0 0.0
    %193 = vmatprep.subr.mxu0 0.0
    %194 = vmatpush1.xpose.msra.mxu0 0.0
    %195 = vmatprep.subr.mxu0 0.0
    %196 = vmatpush1.xpose.msra.mxu0 0.0
    %197 = vmatprep.subr.mxu0 0.0
    %198 = vmatpush1.xpose.msra.mxu0 0.0
    %199 = vmatprep.subr.mxu0 0.0
    %200 = vmatpush1.xpose.msra.mxu0 0.0
    %201 = vmatprep.subr.mxu0 0.0
    %202 = vmatpush1.xpose.msra.mxu0 0.0
    %203 = vmatprep.subr.mxu0 0.0
    %204 = vmatpush1.xpose.msra.mxu0 0.0
    %205 = vmatprep.subr.mxu0 0.0
    %206 = vmatpush1.xpose.msra.mxu0 0.0
    %207 = vmatprep.subr.mxu0 0.0
    %208 = vmatpush1.xpose.msra.mxu0 0.0
    %209 = vmatprep.subr.mxu0 0.0
    %210 = vmatpush1.xpose.msra.mxu0 0.0
    %211 = vmatprep.subr.mxu0 0.0
    %212 = vmatpush1.xpose.msra.mxu0 0.0
    %213 = vmatprep.subr.mxu0 0.0
    %214 = vmatpush1.xpose.msra.mxu0 0.0
    %215 = vmatprep.subr.mxu0 0.0
    %216 = vmatpush1.xpose.msra.mxu0 0.0
    %217 = vmatprep.subr.mxu0 0.0
    %218 = vmatpush1.xpose.msra.mxu0 0.0
    %219 = vmatprep.subr.mxu0 0.0
    %220 = vmatpush1.xpose.msra.mxu0 0.0
    %221 = vmatprep.subr.mxu0 0.0
    %222 = vmatpush1.xpose.msra.mxu0 0.0
    %223 = vmatprep.subr.mxu0 0.0
    %224 = vmatpush1.xpose.msra.mxu0 0.0
    %225 = vmatprep.subr.mxu0 0.0
    %226 = vmatpush1.xpose.msra.mxu0 0.0
    %227 = vmatprep.subr.mxu0 0.0
    %228 = vmatpush1.xpose.msra.mxu0 0.0
    %229 = vmatprep.subr.mxu0 0.0
    %230 = vmatpush1.xpose.msra.mxu0 0.0
    %231 = vmatprep.subr.mxu0 0.0
    %232 = vmatpush1.xpose.msra.mxu0 0.0
    %233 = vmatprep.subr.mxu0 0.0
    %234 = vmatpush1.xpose.msra.mxu0 0.0
    %235 = vmatprep.subr.mxu0 0.0
    %236 = vmatpush1.xpose.msra.mxu0 0.0
    %237 = vmatprep.subr.mxu0 0.0
    %238 = vmatpush1.xpose.msra.mxu0 0.0
    %239 = vmatprep.subr.mxu0 0.0
    %240 = vmatpush1.xpose.msra.mxu0 0.0
    %241 = vmatprep.subr.mxu0 0.0
    %242 = vmatpush1.xpose.msra.mxu0 0.0
    %243 = vmatprep.mubr.f32.mxu0 0.0
    %244 = vmatmul.mubr.f32.gmra.mrb[0].mxu0 %v175
    %v245 = vpop.f32.mrb[0].mxu0
    %v246 = vadd.f32 0.0, %v245
    %v247 = vpop.f32.mrb[0].mxu0
    %248 = vdwg.mxu0
    %v249 = vmul.f32 %v246, 0.25
    %v250 = vlaneseq
    %v251 = vshrl.u32 %v250, 7
    %v252 = vsub.s32 0, %v251
    %v253 = vrot.slane %v32, %v252
    %v254 = vadd.f32 %v249, %v253
    %vm255 = vcmask 64512
    %v256 = vsel %vm255, %v254, -inf
    %257 = vmax.xlane.f32.xlu0 %v256
    %v258 = vpop.xlane.xlu0 %257
    %v259 = vsub.f32 %v254, %v258
    %v260 = vmul.f32 %v259, 1.442695
    %v261 = vpow.pop %v260
    %v262 = vsel %vm255, %v261, 0.0
    %263 = vadd.xlane.f32.xlu0 %v262
    %v264 = vpop.xlane.xlu0 %263
    %v265 = vrcp.pop %v264
    %v266 = vmul.f32 %v261, %v265
    %267 = vrot.lane.b32.xlu0 %v163, 32
    %v268 = vpop.permute.xlu0 %267
    %v271 = vsel %vm255, %v266, 0
    %273 = vmatprep.subr.mxu0 0.0
    %274 = vmatpush1.msra.mxu0 %v268
    %275 = vmatprep.subr.mxu0 0.0
    %276 = vmatpush1.msra.mxu0 0.0
    %277 = vmatprep.subr.mxu0 0.0
    %278 = vmatpush1.msra.mxu0 0.0
    %279 = vmatprep.subr.mxu0 0.0
    %280 = vmatpush1.msra.mxu0 0.0
    %281 = vmatprep.subr.mxu0 0.0
    %282 = vmatpush1.msra.mxu0 0.0
    %283 = vmatprep.subr.mxu0 0.0
    %284 = vmatpush1.msra.mxu0 0.0
    %285 = vmatprep.subr.mxu0 0.0
    %286 = vmatpush1.msra.mxu0 0.0
    %287 = vmatprep.subr.mxu0 0.0
    %288 = vmatpush1.msra.mxu0 0.0
    %289 = vmatprep.subr.mxu0 0.0
    %290 = vmatpush1.msra.mxu0 0.0
    %291 = vmatprep.subr.mxu0 0.0
    %292 = vmatpush1.msra.mxu0 0.0
    %293 = vmatprep.subr.mxu0 0.0
    %294 = vmatpush1.msra.mxu0 0.0
    %295 = vmatprep.subr.mxu0 0.0
    %296 = vmatpush1.msra.mxu0 0.0
    %297 = vmatprep.subr.mxu0 0.0
    %298 = vmatpush1.msra.mxu0 0.0
    %299 = vmatprep.subr.mxu0 0.0
    %300 = vmatpush1.msra.mxu0 0.0
    %301 = vmatprep.subr.mxu0 0.0
    %302 = vmatpush1.msra.mxu0 0.0
    %303 = vmatprep.subr.mxu0 0.0
    %304 = vmatpush1.msra.mxu0 0.0
    %305 = vmatprep.subr.mxu0 0.0
    %306 = vmatpush1.msra.mxu0 0.0
    %307 = vmatprep.subr.mxu0 0.0
    %308 = vmatpush1.msra.mxu0 0.0
    %309 = vmatprep.subr.mxu0 0.0
    %310 = vmatpush1.msra.mxu0 0.0
    %311 = vmatprep.subr.mxu0 0.0
    %312 = vmatpush1.msra.mxu0 0.0
    %313 = vmatprep.subr.mxu0 0.0
    %314 = vmatpush1.msra.mxu0 0.0
    %315 = vmatprep.subr.mxu0 0.0
    %316 = vmatpush1.msra.mxu0 0.0
    %317 = vmatprep.subr.mxu0 0.0
    %318 = vmatpush1.msra.mxu0 0.0
    %319 = vmatprep.subr.mxu0 0.0
    %320 = vmatpush1.msra.mxu0 0.0
    %321 = vmatprep.subr.mxu0 0.0
    %322 = vmatpush1.msra.mxu0 0.0
    %323 = vmatprep.subr.mxu0 0.0
    %324 = vmatpush1.msra.mxu0 0.0
    %325 = vmatprep.subr.mxu0 0.0
    %326 = vmatpush1.msra.mxu0 0.0
    %327 = vmatprep.subr.mxu0 0.0
    %328 = vmatpush1.msra.mxu0 0.0
    %329 = vmatprep.subr.mxu0 0.0
    %330 = vmatpush1.msra.mxu0 0.0
    %331 = vmatprep.subr.mxu0 0.0
    %332 = vmatpush1.msra.mxu0 0.0
    %333 = vmatprep.subr.mxu0 0.0
    %334 = vmatpush1.msra.mxu0 0.0
    %335 = vmatprep.subr.mxu0 0.0
    %336 = vmatpush1.msra.mxu0 0.0
    %337 = vmatprep.mubr.f32.mxu0 0.0
    %338 = vmatmul.mubr.f32.gmra.mrb[0].mxu0 %v271
    %v339 = vpop.f32.mrb[0].mxu0
    %v340 = vadd.f32 0.0, %v339
    %v341 = vpop.f32.mrb[0].mxu0
    %342 = vdwg.mxu0
    %v343 = vpack.c.bf16 %v340, %v340
    %344 = vrot.lane.b32.xlu0 %v163, 112
    %v345 = vpop.permute.xlu0 %344
    %346 = vrot.lane.b32.xlu0 %v163, 64
    %v347 = vpop.permute.xlu0 %346
    %v348 = vsel %vm174, %v345, 0
    %v350 = vsel %vm174, %v347, 0
    %352 = vmatprep.subr.mxu0 0.0
    %353 = vmatpush1.xpose.msra.mxu0 %v350
    %354 = vmatprep.subr.mxu0 0.0
    %355 = vmatpush1.xpose.msra.mxu0 0.0
    %356 = vmatprep.subr.mxu0 0.0
    %357 = vmatpush1.xpose.msra.mxu0 0.0
    %358 = vmatprep.subr.mxu0 0.0
    %359 = vmatpush1.xpose.msra.mxu0 0.0
    %360 = vmatprep.subr.mxu0 0.0
    %361 = vmatpush1.xpose.msra.mxu0 0.0
    %362 = vmatprep.subr.mxu0 0.0
    %363 = vmatpush1.xpose.msra.mxu0 0.0
    %364 = vmatprep.subr.mxu0 0.0
    %365 = vmatpush1.xpose.msra.mxu0 0.0
    %366 = vmatprep.subr.mxu0 0.0
    %367 = vmatpush1.xpose.msra.mxu0 0.0
    %368 = vmatprep.subr.mxu0 0.0
    %369 = vmatpush1.xpose.msra.mxu0 0.0
    %370 = vmatprep.subr.mxu0 0.0
    %371 = vmatpush1.xpose.msra.mxu0 0.0
    %372 = vmatprep.subr.mxu0 0.0
    %373 = vmatpush1.xpose.msra.mxu0 0.0
    %374 = vmatprep.subr.mxu0 0.0
    %375 = vmatpush1.xpose.msra.mxu0 0.0
    %376 = vmatprep.subr.mxu0 0.0
    %377 = vmatpush1.xpose.msra.mxu0 0.0
    %378 = vmatprep.subr.mxu0 0.0
    %379 = vmatpush1.xpose.msra.mxu0 0.0
    %380 = vmatprep.subr.mxu0 0.0
    %381 = vmatpush1.xpose.msra.mxu0 0.0
    %382 = vmatprep.subr.mxu0 0.0
    %383 = vmatpush1.xpose.msra.mxu0 0.0
    %384 = vmatprep.subr.mxu0 0.0
    %385 = vmatpush1.xpose.msra.mxu0 0.0
    %386 = vmatprep.subr.mxu0 0.0
    %387 = vmatpush1.xpose.msra.mxu0 0.0
    %388 = vmatprep.subr.mxu0 0.0
    %389 = vmatpush1.xpose.msra.mxu0 0.0
    %390 = vmatprep.subr.mxu0 0.0
    %391 = vmatpush1.xpose.msra.mxu0 0.0
    %392 = vmatprep.subr.mxu0 0.0
    %393 = vmatpush1.xpose.msra.mxu0 0.0
    %394 = vmatprep.subr.mxu0 0.0
    %395 = vmatpush1.xpose.msra.mxu0 0.0
    %396 = vmatprep.subr.mxu0 0.0
    %397 = vmatpush1.xpose.msra.mxu0 0.0
    %398 = vmatprep.subr.mxu0 0.0
    %399 = vmatpush1.xpose.msra.mxu0 0.0
    %400 = vmatprep.subr.mxu0 0.0
    %401 = vmatpush1.xpose.msra.mxu0 0.0
    %402 = vmatprep.subr.mxu0 0.0
    %403 = vmatpush1.xpose.msra.mxu0 0.0
    %404 = vmatprep.subr.mxu0 0.0
    %405 = vmatpush1.xpose.msra.mxu0 0.0
    %406 = vmatprep.subr.mxu0 0.0
    %407 = vmatpush1.xpose.msra.mxu0 0.0
    %408 = vmatprep.subr.mxu0 0.0
    %409 = vmatpush1.xpose.msra.mxu0 0.0
    %410 = vmatprep.subr.mxu0 0.0
    %411 = vmatpush1.xpose.msra.mxu0 0.0
    %412 = vmatprep.subr.mxu0 0.0
    %413 = vmatpush1.xpose.msra.mxu0 0.0
    %414 = vmatprep.subr.mxu0 0.0
    %415 = vmatpush1.xpose.msra.mxu0 0.0
    %416 = vmatprep.mubr.f32.mxu0 0.0
    %417 = vmatmul.mubr.f32.gmra.mrb[0].mxu0 %v348
    %v418 = vpop.f32.mrb[0].mxu0
    %v419 = vadd.f32 0.0, %v418
    %v420 = vpop.f32.mrb[0].mxu0
    %421 = vdwg.mxu0
    %v422 = vmul.f32 %v419, 0.25
    %v423 = vadd.f32 %v422, %v253
    %v424 = vsel %vm255, %v423, -inf
    %425 = vmax.xlane.f32.xlu0 %v424
    %v426 = vpop.xlane.xlu0 %425
    %v427 = vsub.f32 %v423, %v426
    %v428 = vmul.f32 %v427, 1.442695
    %v429 = vpow.pop %v428
    %v430 = vsel %vm255, %v429, 0.0
    %431 = vadd.xlane.f32.xlu0 %v430
    %v432 = vpop.xlane.xlu0 %431
    %v433 = vrcp.pop %v432
    %v434 = vmul.f32 %v429, %v433
    %435 = vrot.lane.b32.xlu0 %v163, 16
    %v436 = vpop.permute.xlu0 %435
    %v439 = vsel %vm255, %v434, 0
    %441 = vmatprep.subr.mxu0 0.0
    %442 = vmatpush1.msra.mxu0 %v436
    %443 = vmatprep.subr.mxu0 0.0
    %444 = vmatpush1.msra.mxu0 0.0
    %445 = vmatprep.subr.mxu0 0.0
    %446 = vmatpush1.msra.mxu0 0.0
    %447 = vmatprep.subr.mxu0 0.0
    %448 = vmatpush1.msra.mxu0 0.0
    %449 = vmatprep.subr.mxu0 0.0
    %450 = vmatpush1.msra.mxu0 0.0
    %451 = vmatprep.subr.mxu0 0.0
    %452 = vmatpush1.msra.mxu0 0.0
    %453 = vmatprep.subr.mxu0 0.0
    %454 = vmatpush1.msra.mxu0 0.0
    %455 = vmatprep.subr.mxu0 0.0
    %456 = vmatpush1.msra.mxu0 0.0
    %457 = vmatprep.subr.mxu0 0.0
    %458 = vmatpush1.msra.mxu0 0.0
    %459 = vmatprep.subr.mxu0 0.0
    %460 = vmatpush1.msra.mxu0 0.0
    %461 = vmatprep.subr.mxu0 0.0
    %462 = vmatpush1.msra.mxu0 0.0
    %463 = vmatprep.subr.mxu0 0.0
    %464 = vmatpush1.msra.mxu0 0.0
    %465 = vmatprep.subr.mxu0 0.0
    %466 = vmatpush1.msra.mxu0 0.0
    %467 = vmatprep.subr.mxu0 0.0
    %468 = vmatpush1.msra.mxu0 0.0
    %469 = vmatprep.subr.mxu0 0.0
    %470 = vmatpush1.msra.mxu0 0.0
    %471 = vmatprep.subr.mxu0 0.0
    %472 = vmatpush1.msra.mxu0 0.0
    %473 = vmatprep.subr.mxu0 0.0
    %474 = vmatpush1.msra.mxu0 0.0
    %475 = vmatprep.subr.mxu0 0.0
    %476 = vmatpush1.msra.mxu0 0.0
    %477 = vmatprep.subr.mxu0 0.0
    %478 = vmatpush1.msra.mxu0 0.0
    %479 = vmatprep.subr.mxu0 0.0
    %480 = vmatpush1.msra.mxu0 0.0
    %481 = vmatprep.subr.mxu0 0.0
    %482 = vmatpush1.msra.mxu0 0.0
    %483 = vmatprep.subr.mxu0 0.0
    %484 = vmatpush1.msra.mxu0 0.0
    %485 = vmatprep.subr.mxu0 0.0
    %486 = vmatpush1.msra.mxu0 0.0
    %487 = vmatprep.subr.mxu0 0.0
    %488 = vmatpush1.msra.mxu0 0.0
    %489 = vmatprep.subr.mxu0 0.0
    %490 = vmatpush1.msra.mxu0 0.0
    %491 = vmatprep.subr.mxu0 0.0
    %492 = vmatpush1.msra.mxu0 0.0
    %493 = vmatprep.subr.mxu0 0.0
    %494 = vmatpush1.msra.mxu0 0.0
    %495 = vmatprep.subr.mxu0 0.0
    %496 = vmatpush1.msra.mxu0 0.0
    %497 = vmatprep.subr.mxu0 0.0
    %498 = vmatpush1.msra.mxu0 0.0
    %499 = vmatprep.subr.mxu0 0.0
    %500 = vmatpush1.msra.mxu0 0.0
    %501 = vmatprep.subr.mxu0 0.0
    %502 = vmatpush1.msra.mxu0 0.0
    %503 = vmatprep.subr.mxu0 0.0
    %504 = vmatpush1.msra.mxu0 0.0
    %505 = vmatprep.mubr.f32.mxu0 0.0
    %506 = vmatmul.mubr.f32.gmra.mrb[0].mxu0 %v439
    %v507 = vpop.f32.mrb[0].mxu0
    %v508 = vadd.f32 0.0, %v507
    %v509 = vpop.f32.mrb[0].mxu0
    %510 = vdwg.mxu0
    %v511 = vpack.c.bf16 %v508, %v508
    %v514 = vunpack.c.l.b16 %v57
    %v515 = vunpack.c.l.b16 %v58
    %v516 = vpack.c.b16 %v515, %v514
    %v519 = vsel %vm174, %v511, 0
    %521 = vmatprep.subr.bf16.mxu0 0
    %522 = vmatpush1.bf16.msra.mxu0 %v516
    %523 = vmatprep.subr.bf16.mxu0 0
    %524 = vmatpush1.bf16.msra.mxu0 0
    %525 = vmatprep.subr.bf16.mxu0 0
    %526 = vmatpush1.bf16.msra.mxu0 0
    %527 = vmatprep.subr.bf16.mxu0 0
    %528 = vmatpush1.bf16.msra.mxu0 0
    %529 = vmatprep.subr.bf16.mxu0 0
    %530 = vmatpush1.bf16.msra.mxu0 0
    %531 = vmatprep.subr.bf16.mxu0 0
    %532 = vmatpush1.bf16.msra.mxu0 0
    %533 = vmatprep.subr.bf16.mxu0 0
    %534 = vmatpush1.bf16.msra.mxu0 0
    %535 = vmatprep.subr.bf16.mxu0 0
    %536 = vmatpush1.bf16.msra.mxu0 0
    %537 = vmatprep.subr.bf16.mxu0 0
    %538 = vmatpush1.bf16.msra.mxu0 0
    %539 = vmatprep.subr.bf16.mxu0 0
    %540 = vmatpush1.bf16.msra.mxu0 0
    %541 = vmatprep.subr.bf16.mxu0 0
    %542 = vmatpush1.bf16.msra.mxu0 0
    %543 = vmatprep.subr.bf16.mxu0 0
    %544 = vmatpush1.bf16.msra.mxu0 0
    %545 = vmatprep.subr.bf16.mxu0 0
    %546 = vmatpush1.bf16.msra.mxu0 0
    %547 = vmatprep.subr.bf16.mxu0 0
    %548 = vmatpush1.bf16.msra.mxu0 0
    %549 = vmatprep.subr.bf16.mxu0 0
    %550 = vmatpush1.bf16.msra.mxu0 0
    %551 = vmatprep.subr.bf16.mxu0 0
    %552 = vmatpush1.bf16.msra.mxu0 0
    %553 = vmatprep.mubr.bf16.mxu0 0
    %554 = vmatmul.mubr.bf16.gmra.mrb[0].mxu0 %v519
    %v555 = vpop.f32.mrb[0].mxu0
    %v556 = vadd.f32 0.0, %v555
    %v557 = vpop.f32.mrb[0].mxu0
    %v558 = vpop.f32.mrb[0].mxu0
    %v559 = vpop.f32.mrb[0].mxu0
    %560 = vdwg.mxu0
    %v563 = vunpack.c.l.b16 %v55
    %v564 = vunpack.c.l.b16 %v56
    %v565 = vpack.c.b16 %v564, %v563
    %v568 = vsel %vm174, %v343, 0
    %570 = vmatprep.subr.bf16.mxu0 0
    %571 = vmatpush1.bf16.msra.mxu0 %v565
    %572 = vmatprep.subr.bf16.mxu0 0
    %573 = vmatpush1.bf16.msra.mxu0 0
    %574 = vmatprep.subr.bf16.mxu0 0
    %575 = vmatpush1.bf16.msra.mxu0 0
    %576 = vmatprep.subr.bf16.mxu0 0
    %577 = vmatpush1.bf16.msra.mxu0 0
    %578 = vmatprep.subr.bf16.mxu0 0
    %579 = vmatpush1.bf16.msra.mxu0 0
    %580 = vmatprep.subr.bf16.mxu0 0
    %581 = vmatpush1.bf16.msra.mxu0 0
    %582 = vmatprep.subr.bf16.mxu0 0
    %583 = vmatpush1.bf16.msra.mxu0 0
    %584 = vmatprep.subr.bf16.mxu0 0
    %585 = vmatpush1.bf16.msra.mxu0 0
    %586 = vmatprep.subr.bf16.mxu0 0
    %587 = vmatpush1.bf16.msra.mxu0 0
    %588 = vmatprep.subr.bf16.mxu0 0
    %589 = vmatpush1.bf16.msra.mxu0 0
    %590 = vmatprep.subr.bf16.mxu0 0
    %591 = vmatpush1.bf16.msra.mxu0 0
    %592 = vmatprep.subr.bf16.mxu0 0
    %593 = vmatpush1.bf16.msra.mxu0 0
    %594 = vmatprep.subr.bf16.mxu0 0
    %595 = vmatpush1.bf16.msra.mxu0 0
    %596 = vmatprep.subr.bf16.mxu0 0
    %597 = vmatpush1.bf16.msra.mxu0 0
    %598 = vmatprep.subr.bf16.mxu0 0
    %599 = vmatpush1.bf16.msra.mxu0 0
    %600 = vmatprep.subr.bf16.mxu0 0
    %601 = vmatpush1.bf16.msra.mxu0 0
    %602 = vmatprep.mubr.bf16.mxu0 0
    %603 = vmatmul.mubr.bf16.gmra.mrb[0].mxu0 %v568
    %v604 = vpop.f32.mrb[0].mxu0
    %v605 = vadd.f32 %v556, %v604
    %v606 = vpop.f32.mrb[0].mxu0
    %v607 = vpop.f32.mrb[0].mxu0
    %v608 = vpop.f32.mrb[0].mxu0
    %609 = vdwg.mxu0
    %610 = vrot.lane.b32.xlu0 %v163, 96
    %v611 = vpop.permute.xlu0 %610
    %612 = vrot.lane.b32.xlu0 %v163, 48
    %v613 = vpop.permute.xlu0 %612
    %v614 = vsel %vm174, %v611, 0
    %v616 = vsel %vm174, %v613, 0
    %618 = vmatprep.subr.mxu0 0.0
    %619 = vmatpush1.xpose.msra.mxu0 %v616
    %620 = vmatprep.subr.mxu0 0.0
    %621 = vmatpush1.xpose.msra.mxu0 0.0
    %622 = vmatprep.subr.mxu0 0.0
    %623 = vmatpush1.xpose.msra.mxu0 0.0
    %624 = vmatprep.subr.mxu0 0.0
    %625 = vmatpush1.xpose.msra.mxu0 0.0
    %626 = vmatprep.subr.mxu0 0.0
    %627 = vmatpush1.xpose.msra.mxu0 0.0
    %628 = vmatprep.subr.mxu0 0.0
    %629 = vmatpush1.xpose.msra.mxu0 0.0
    %630 = vmatprep.subr.mxu0 0.0
    %631 = vmatpush1.xpose.msra.mxu0 0.0
    %632 = vmatprep.subr.mxu0 0.0
    %633 = vmatpush1.xpose.msra.mxu0 0.0
    %634 = vmatprep.subr.mxu0 0.0
    %635 = vmatpush1.xpose.msra.mxu0 0.0
    %636 = vmatprep.subr.mxu0 0.0
    %637 = vmatpush1.xpose.msra.mxu0 0.0
    %638 = vmatprep.subr.mxu0 0.0
    %639 = vmatpush1.xpose.msra.mxu0 0.0
    %640 = vmatprep.subr.mxu0 0.0
    %641 = vmatpush1.xpose.msra.mxu0 0.0
    %642 = vmatprep.subr.mxu0 0.0
    %643 = vmatpush1.xpose.msra.mxu0 0.0
    %644 = vmatprep.subr.mxu0 0.0
    %645 = vmatpush1.xpose.msra.mxu0 0.0
    %646 = vmatprep.subr.mxu0 0.0
    %647 = vmatpush1.xpose.msra.mxu0 0.0
    %648 = vmatprep.subr.mxu0 0.0
    %649 = vmatpush1.xpose.msra.mxu0 0.0
    %650 = vmatprep.subr.mxu0 0.0
    %651 = vmatpush1.xpose.msra.mxu0 0.0
    %652 = vmatprep.subr.mxu0 0.0
    %653 = vmatpush1.xpose.msra.mxu0 0.0
    %654 = vmatprep.subr.mxu0 0.0
    %655 = vmatpush1.xpose.msra.mxu0 0.0
    %656 = vmatprep.subr.mxu0 0.0
    %657 = vmatpush1.xpose.msra.mxu0 0.0
    %658 = vmatprep.subr.mxu0 0.0
    %659 = vmatpush1.xpose.msra.mxu0 0.0
    %660 = vmatprep.subr.mxu0 0.0
    %661 = vmatpush1.xpose.msra.mxu0 0.0
    %662 = vmatprep.subr.mxu0 0.0
    %663 = vmatpush1.xpose.msra.mxu0 0.0
    %664 = vmatprep.subr.mxu0 0.0
    %665 = vmatpush1.xpose.msra.mxu0 0.0
    %666 = vmatprep.subr.mxu0 0.0
    %667 = vmatpush1.xpose.msra.mxu0 0.0
    %668 = vmatprep.subr.mxu0 0.0
    %669 = vmatpush1.xpose.msra.mxu0 0.0
    %670 = vmatprep.subr.mxu0 0.0
    %671 = vmatpush1.xpose.msra.mxu0 0.0
    %672 = vmatprep.subr.mxu0 0.0
    %673 = vmatpush1.xpose.msra.mxu0 0.0
    %674 = vmatprep.subr.mxu0 0.0
    %675 = vmatpush1.xpose.msra.mxu0 0.0
    %676 = vmatprep.subr.mxu0 0.0
    %677 = vmatpush1.xpose.msra.mxu0 0.0
    %678 = vmatprep.subr.mxu0 0.0
    %679 = vmatpush1.xpose.msra.mxu0 0.0
    %680 = vmatprep.subr.mxu0 0.0
    %681 = vmatpush1.xpose.msra.mxu0 0.0
    %682 = vmatprep.mubr.f32.mxu0 0.0
    %683 = vmatmul.mubr.f32.gmra.mrb[0].mxu0 %v614
    %v684 = vpop.f32.mrb[0].mxu0
    %v685 = vadd.f32 0.0, %v684
    %v686 = vpop.f32.mrb[0].mxu0
    %687 = vdwg.mxu0
    %v688 = vmul.f32 %v685, 0.25
    %v689 = vadd.f32 %v688, %v253
    %v690 = vsel %vm255, %v689, -inf
    %691 = vmax.xlane.f32.xlu0 %v690
    %v692 = vpop.xlane.xlu0 %691
    %v693 = vsub.f32 %v689, %v692
    %v694 = vmul.f32 %v693, 1.442695
    %v695 = vpow.pop %v694
    %v696 = vsel %vm255, %v695, 0.0
    %697 = vadd.xlane.f32.xlu0 %v696
    %v698 = vpop.xlane.xlu0 %697
    %v699 = vrcp.pop %v698
    %v700 = vmul.f32 %v695, %v699
    %v702 = vsel %vm255, %v700, 0
    %704 = vmatprep.subr.mxu0 0.0
    %705 = vmatpush1.msra.mxu0 %v165
    %706 = vmatprep.subr.mxu0 0.0
    %707 = vmatpush1.msra.mxu0 0.0
    %708 = vmatprep.subr.mxu0 0.0
    %709 = vmatpush1.msra.mxu0 0.0
    %710 = vmatprep.subr.mxu0 0.0
    %711 = vmatpush1.msra.mxu0 0.0
    %712 = vmatprep.subr.mxu0 0.0
    %713 = vmatpush1.msra.mxu0 0.0
    %714 = vmatprep.subr.mxu0 0.0
    %715 = vmatpush1.msra.mxu0 0.0
    %716 = vmatprep.subr.mxu0 0.0
    %717 = vmatpush1.msra.mxu0 0.0
    %718 = vmatprep.subr.mxu0 0.0
    %719 = vmatpush1.msra.mxu0 0.0
    %720 = vmatprep.subr.mxu0 0.0
    %721 = vmatpush1.msra.mxu0 0.0
    %722 = vmatprep.subr.mxu0 0.0
    %723 = vmatpush1.msra.mxu0 0.0
    %724 = vmatprep.subr.mxu0 0.0
    %725 = vmatpush1.msra.mxu0 0.0
    %726 = vmatprep.subr.mxu0 0.0
    %727 = vmatpush1.msra.mxu0 0.0
    %728 = vmatprep.subr.mxu0 0.0
    %729 = vmatpush1.msra.mxu0 0.0
    %730 = vmatprep.subr.mxu0 0.0
    %731 = vmatpush1.msra.mxu0 0.0
    %732 = vmatprep.subr.mxu0 0.0
    %733 = vmatpush1.msra.mxu0 0.0
    %734 = vmatprep.subr.mxu0 0.0
    %735 = vmatpush1.msra.mxu0 0.0
    %736 = vmatprep.subr.mxu0 0.0
    %737 = vmatpush1.msra.mxu0 0.0
    %738 = vmatprep.subr.mxu0 0.0
    %739 = vmatpush1.msra.mxu0 0.0
    %740 = vmatprep.subr.mxu0 0.0
    %741 = vmatpush1.msra.mxu0 0.0
    %742 = vmatprep.subr.mxu0 0.0
    %743 = vmatpush1.msra.mxu0 0.0
    %744 = vmatprep.subr.mxu0 0.0
    %745 = vmatpush1.msra.mxu0 0.0
    %746 = vmatprep.subr.mxu0 0.0
    %747 = vmatpush1.msra.mxu0 0.0
    %748 = vmatprep.subr.mxu0 0.0
    %749 = vmatpush1.msra.mxu0 0.0
    %750 = vmatprep.subr.mxu0 0.0
    %751 = vmatpush1.msra.mxu0 0.0
    %752 = vmatprep.subr.mxu0 0.0
    %753 = vmatpush1.msra.mxu0 0.0
    %754 = vmatprep.subr.mxu0 0.0
    %755 = vmatpush1.msra.mxu0 0.0
    %756 = vmatprep.subr.mxu0 0.0
    %757 = vmatpush1.msra.mxu0 0.0
    %758 = vmatprep.subr.mxu0 0.0
    %759 = vmatpush1.msra.mxu0 0.0
    %760 = vmatprep.subr.mxu0 0.0
    %761 = vmatpush1.msra.mxu0 0.0
    %762 = vmatprep.subr.mxu0 0.0
    %763 = vmatpush1.msra.mxu0 0.0
    %764 = vmatprep.subr.mxu0 0.0
    %765 = vmatpush1.msra.mxu0 0.0
    %766 = vmatprep.subr.mxu0 0.0
    %767 = vmatpush1.msra.mxu0 0.0
    %768 = vmatprep.mubr.f32.mxu0 0.0
    %769 = vmatmul.mubr.f32.gmra.mrb[0].mxu0 %v702
    %v770 = vpop.f32.mrb[0].mxu0
    %v771 = vadd.f32 0.0, %v770
    %v772 = vpop.f32.mrb[0].mxu0
    %773 = vdwg.mxu0
    %v774 = vpack.c.bf16 %v771, %v771
    %v777 = vunpack.c.l.b16 %v59
    %v778 = vunpack.c.l.b16 %v60
    %v779 = vpack.c.b16 %v778, %v777
    %v782 = vsel %vm174, %v774, 0
    %784 = vmatprep.subr.bf16.mxu0 0
    %785 = vmatpush1.bf16.msra.mxu0 %v779
    %786 = vmatprep.subr.bf16.mxu0 0
    %787 = vmatpush1.bf16.msra.mxu0 0
    %788 = vmatprep.subr.bf16.mxu0 0
    %789 = vmatpush1.bf16.msra.mxu0 0
    %790 = vmatprep.subr.bf16.mxu0 0
    %791 = vmatpush1.bf16.msra.mxu0 0
    %792 = vmatprep.subr.bf16.mxu0 0
    %793 = vmatpush1.bf16.msra.mxu0 0
    %794 = vmatprep.subr.bf16.mxu0 0
    %795 = vmatpush1.bf16.msra.mxu0 0
    %796 = vmatprep.subr.bf16.mxu0 0
    %797 = vmatpush1.bf16.msra.mxu0 0
    %798 = vmatprep.subr.bf16.mxu0 0
    %799 = vmatpush1.bf16.msra.mxu0 0
    %800 = vmatprep.subr.bf16.mxu0 0
    %801 = vmatpush1.bf16.msra.mxu0 0
    %802 = vmatprep.subr.bf16.mxu0 0
    %803 = vmatpush1.bf16.msra.mxu0 0
    %804 = vmatprep.subr.bf16.mxu0 0
    %805 = vmatpush1.bf16.msra.mxu0 0
    %806 = vmatprep.subr.bf16.mxu0 0
    %807 = vmatpush1.bf16.msra.mxu0 0
    %808 = vmatprep.subr.bf16.mxu0 0
    %809 = vmatpush1.bf16.msra.mxu0 0
    %810 = vmatprep.subr.bf16.mxu0 0
    %811 = vmatpush1.bf16.msra.mxu0 0
    %812 = vmatprep.subr.bf16.mxu0 0
    %813 = vmatpush1.bf16.msra.mxu0 0
    %814 = vmatprep.subr.bf16.mxu0 0
    %815 = vmatpush1.bf16.msra.mxu0 0
    %816 = vmatprep.mubr.bf16.mxu0 0
    %817 = vmatmul.mubr.bf16.gmra.mrb[0].mxu0 %v782
    %v818 = vpop.f32.mrb[0].mxu0
    %v819 = vadd.f32 0.0, %v818
    %v820 = vpop.f32.mrb[0].mxu0
    %v821 = vpop.f32.mrb[0].mxu0
    %v822 = vpop.f32.mrb[0].mxu0
    %823 = vdwg.mxu0
    %v824 = vadd.f32 %v605, %v819
    %826 = vrot.lane.b32.xlu0 %v167, 80
    %v827 = vpop.permute.xlu0 %826
    %v828 = vsel %vm174, %v167, 0
    %v830 = vsel %vm174, %v827, 0
    %832 = vmatprep.subr.mxu0 0.0
    %833 = vmatpush1.xpose.msra.mxu0 %v830
    %834 = vmatprep.subr.mxu0 0.0
    %835 = vmatpush1.xpose.msra.mxu0 0.0
    %836 = vmatprep.subr.mxu0 0.0
    %837 = vmatpush1.xpose.msra.mxu0 0.0
    %838 = vmatprep.subr.mxu0 0.0
    %839 = vmatpush1.xpose.msra.mxu0 0.0
    %840 = vmatprep.subr.mxu0 0.0
    %841 = vmatpush1.xpose.msra.mxu0 0.0
    %842 = vmatprep.subr.mxu0 0.0
    %843 = vmatpush1.xpose.msra.mxu0 0.0
    %844 = vmatprep.subr.mxu0 0.0
    %845 = vmatpush1.xpose.msra.mxu0 0.0
    %846 = vmatprep.subr.mxu0 0.0
    %847 = vmatpush1.xpose.msra.mxu0 0.0
    %848 = vmatprep.subr.mxu0 0.0
    %849 = vmatpush1.xpose.msra.mxu0 0.0
    %850 = vmatprep.subr.mxu0 0.0
    %851 = vmatpush1.xpose.msra.mxu0 0.0
    %852 = vmatprep.subr.mxu0 0.0
    %853 = vmatpush1.xpose.msra.mxu0 0.0
    %854 = vmatprep.subr.mxu0 0.0
    %855 = vmatpush1.xpose.msra.mxu0 0.0
    %856 = vmatprep.subr.mxu0 0.0
    %857 = vmatpush1.xpose.msra.mxu0 0.0
    %858 = vmatprep.subr.mxu0 0.0
    %859 = vmatpush1.xpose.msra.mxu0 0.0
    %860 = vmatprep.subr.mxu0 0.0
    %861 = vmatpush1.xpose.msra.mxu0 0.0
    %862 = vmatprep.subr.mxu0 0.0
    %863 = vmatpush1.xpose.msra.mxu0 0.0
    %864 = vmatprep.subr.mxu0 0.0
    %865 = vmatpush1.xpose.msra.mxu0 0.0
    %866 = vmatprep.subr.mxu0 0.0
    %867 = vmatpush1.xpose.msra.mxu0 0.0
    %868 = vmatprep.subr.mxu0 0.0
    %869 = vmatpush1.xpose.msra.mxu0 0.0
    %870 = vmatprep.subr.mxu0 0.0
    %871 = vmatpush1.xpose.msra.mxu0 0.0
    %872 = vmatprep.subr.mxu0 0.0
    %873 = vmatpush1.xpose.msra.mxu0 0.0
    %874 = vmatprep.subr.mxu0 0.0
    %875 = vmatpush1.xpose.msra.mxu0 0.0
    %876 = vmatprep.subr.mxu0 0.0
    %877 = vmatpush1.xpose.msra.mxu0 0.0
    %878 = vmatprep.subr.mxu0 0.0
    %879 = vmatpush1.xpose.msra.mxu0 0.0
    %880 = vmatprep.subr.mxu0 0.0
    %881 = vmatpush1.xpose.msra.mxu0 0.0
    %882 = vmatprep.subr.mxu0 0.0
    %883 = vmatpush1.xpose.msra.mxu0 0.0
    %884 = vmatprep.subr.mxu0 0.0
    %885 = vmatpush1.xpose.msra.mxu0 0.0
    %886 = vmatprep.subr.mxu0 0.0
    %887 = vmatpush1.xpose.msra.mxu0 0.0
    %888 = vmatprep.subr.mxu0 0.0
    %889 = vmatpush1.xpose.msra.mxu0 0.0
    %890 = vmatprep.subr.mxu0 0.0
    %891 = vmatpush1.xpose.msra.mxu0 0.0
    %892 = vmatprep.subr.mxu0 0.0
    %893 = vmatpush1.xpose.msra.mxu0 0.0
    %894 = vmatprep.subr.mxu0 0.0
    %895 = vmatpush1.xpose.msra.mxu0 0.0
    %896 = vmatprep.mubr.f32.mxu0 0.0
    %897 = vmatmul.mubr.f32.gmra.mrb[0].mxu0 %v828
    %v898 = vpop.f32.mrb[0].mxu0
    %v899 = vadd.f32 0.0, %v898
    %v900 = vpop.f32.mrb[0].mxu0
    %901 = vdwg.mxu0
    %v902 = vmul.f32 %v899, 0.25
    %v903 = vlaneseq
    %v904 = vshrl.u32 %v903, 7
    %v905 = vsub.s32 1, %v904
    %v906 = vrot.slane %v32, %v905
    %v907 = vadd.f32 %v902, %v906
    %v908 = vsel %vm255, %v907, -inf
    %909 = vmax.xlane.f32.xlu0 %v908
    %v910 = vpop.xlane.xlu0 %909
    %v911 = vsub.f32 %v907, %v910
    %v912 = vmul.f32 %v911, 1.442695
    %v913 = vpow.pop %v912
    %v914 = vsel %vm255, %v913, 0.0
    %915 = vadd.xlane.f32.xlu0 %v914
    %v916 = vpop.xlane.xlu0 %915
    %v917 = vrcp.pop %v916
    %v918 = vmul.f32 %v913, %v917
    %919 = vrot.lane.b32.xlu0 %v167, 32
    %v920 = vpop.permute.xlu0 %919
    %v923 = vsel %vm255, %v918, 0
    %925 = vmatprep.subr.mxu0 0.0
    %926 = vmatpush1.msra.mxu0 %v920
    %927 = vmatprep.subr.mxu0 0.0
    %928 = vmatpush1.msra.mxu0 0.0
    %929 = vmatprep.subr.mxu0 0.0
    %930 = vmatpush1.msra.mxu0 0.0
    %931 = vmatprep.subr.mxu0 0.0
    %932 = vmatpush1.msra.mxu0 0.0
    %933 = vmatprep.subr.mxu0 0.0
    %934 = vmatpush1.msra.mxu0 0.0
    %935 = vmatprep.subr.mxu0 0.0
    %936 = vmatpush1.msra.mxu0 0.0
    %937 = vmatprep.subr.mxu0 0.0
    %938 = vmatpush1.msra.mxu0 0.0
    %939 = vmatprep.subr.mxu0 0.0
    %940 = vmatpush1.msra.mxu0 0.0
    %941 = vmatprep.subr.mxu0 0.0
    %942 = vmatpush1.msra.mxu0 0.0
    %943 = vmatprep.subr.mxu0 0.0
    %944 = vmatpush1.msra.mxu0 0.0
    %945 = vmatprep.subr.mxu0 0.0
    %946 = vmatpush1.msra.mxu0 0.0
    %947 = vmatprep.subr.mxu0 0.0
    %948 = vmatpush1.msra.mxu0 0.0
    %949 = vmatprep.subr.mxu0 0.0
    %950 = vmatpush1.msra.mxu0 0.0
    %951 = vmatprep.subr.mxu0 0.0
    %952 = vmatpush1.msra.mxu0 0.0
    %953 = vmatprep.subr.mxu0 0.0
    %954 = vmatpush1.msra.mxu0 0.0
    %955 = vmatprep.subr.mxu0 0.0
    %956 = vmatpush1.msra.mxu0 0.0
    %957 = vmatprep.subr.mxu0 0.0
    %958 = vmatpush1.msra.mxu0 0.0
    %959 = vmatprep.subr.mxu0 0.0
    %960 = vmatpush1.msra.mxu0 0.0
    %961 = vmatprep.subr.mxu0 0.0
    %962 = vmatpush1.msra.mxu0 0.0
    %963 = vmatprep.subr.mxu0 0.0
    %964 = vmatpush1.msra.mxu0 0.0
    %965 = vmatprep.subr.mxu0 0.0
    %966 = vmatpush1.msra.mxu0 0.0
    %967 = vmatprep.subr.mxu0 0.0
    %968 = vmatpush1.msra.mxu0 0.0
    %969 = vmatprep.subr.mxu0 0.0
    %970 = vmatpush1.msra.mxu0 0.0
    %971 = vmatprep.subr.mxu0 0.0
    %972 = vmatpush1.msra.mxu0 0.0
    %973 = vmatprep.subr.mxu0 0.0
    %974 = vmatpush1.msra.mxu0 0.0
    %975 = vmatprep.subr.mxu0 0.0
    %976 = vmatpush1.msra.mxu0 0.0
    %977 = vmatprep.subr.mxu0 0.0
    %978 = vmatpush1.msra.mxu0 0.0
    %979 = vmatprep.subr.mxu0 0.0
    %980 = vmatpush1.msra.mxu0 0.0
    %981 = vmatprep.subr.mxu0 0.0
    %982 = vmatpush1.msra.mxu0 0.0
    %983 = vmatprep.subr.mxu0 0.0
    %984 = vmatpush1.msra.mxu0 0.0
    %985 = vmatprep.subr.mxu0 0.0
    %986 = vmatpush1.msra.mxu0 0.0
    %987 = vmatprep.subr.mxu0 0.0
    %988 = vmatpush1.msra.mxu0 0.0
    %989 = vmatprep.mubr.f32.mxu0 0.0
    %990 = vmatmul.mubr.f32.gmra.mrb[0].mxu0 %v923
    %v991 = vpop.f32.mrb[0].mxu0
    %v992 = vadd.f32 0.0, %v991
    %v993 = vpop.f32.mrb[0].mxu0
    %994 = vdwg.mxu0
    %v995 = vpack.c.bf16 %v992, %v992
    %996 = vrot.lane.b32.xlu0 %v167, 112
    %v997 = vpop.permute.xlu0 %996
    %998 = vrot.lane.b32.xlu0 %v167, 64
    %v999 = vpop.permute.xlu0 %998
    %v1000 = vsel %vm174, %v997, 0
    %v1002 = vsel %vm174, %v999, 0
    %1004 = vmatprep.subr.mxu0 0.0
    %1005 = vmatpush1.xpose.msra.mxu0 %v1002
    %1006 = vmatprep.subr.mxu0 0.0
    %1007 = vmatpush1.xpose.msra.mxu0 0.0
    %1008 = vmatprep.subr.mxu0 0.0
    %1009 = vmatpush1.xpose.msra.mxu0 0.0
    %1010 = vmatprep.subr.mxu0 0.0
    %1011 = vmatpush1.xpose.msra.mxu0 0.0
    %1012 = vmatprep.subr.mxu0 0.0
    %1013 = vmatpush1.xpose.msra.mxu0 0.0
    %1014 = vmatprep.subr.mxu0 0.0
    %1015 = vmatpush1.xpose.msra.mxu0 0.0
    %1016 = vmatprep.subr.mxu0 0.0
    %1017 = vmatpush1.xpose.msra.mxu0 0.0
    %1018 = vmatprep.subr.mxu0 0.0
    %1019 = vmatpush1.xpose.msra.mxu0 0.0
    %1020 = vmatprep.subr.mxu0 0.0
    %1021 = vmatpush1.xpose.msra.mxu0 0.0
    %1022 = vmatprep.subr.mxu0 0.0
    %1023 = vmatpush1.xpose.msra.mxu0 0.0
    %1024 = vmatprep.subr.mxu0 0.0
    %1025 = vmatpush1.xpose.msra.mxu0 0.0
    %1026 = vmatprep.subr.mxu0 0.0
    %1027 = vmatpush1.xpose.msra.mxu0 0.0
    %1028 = vmatprep.subr.mxu0 0.0
    %1029 = vmatpush1.xpose.msra.mxu0 0.0
    %1030 = vmatprep.subr.mxu0 0.0
    %1031 = vmatpush1.xpose.msra.mxu0 0.0
    %1032 = vmatprep.subr.mxu0 0.0
    %1033 = vmatpush1.xpose.msra.mxu0 0.0
    %1034 = vmatprep.subr.mxu0 0.0
    %1035 = vmatpush1.xpose.msra.mxu0 0.0
    %1036 = vmatprep.subr.mxu0 0.0
    %1037 = vmatpush1.xpose.msra.mxu0 0.0
    %1038 = vmatprep.subr.mxu0 0.0
    %1039 = vmatpush1.xpose.msra.mxu0 0.0
    %1040 = vmatprep.subr.mxu0 0.0
    %1041 = vmatpush1.xpose.msra.mxu0 0.0
    %1042 = vmatprep.subr.mxu0 0.0
    %1043 = vmatpush1.xpose.msra.mxu0 0.0
    %1044 = vmatprep.subr.mxu0 0.0
    %1045 = vmatpush1.xpose.msra.mxu0 0.0
    %1046 = vmatprep.subr.mxu0 0.0
    %1047 = vmatpush1.xpose.msra.mxu0 0.0
    %1048 = vmatprep.subr.mxu0 0.0
    %1049 = vmatpush1.xpose.msra.mxu0 0.0
    %1050 = vmatprep.subr.mxu0 0.0
    %1051 = vmatpush1.xpose.msra.mxu0 0.0
    %1052 = vmatprep.subr.mxu0 0.0
    %1053 = vmatpush1.xpose.msra.mxu0 0.0
    %1054 = vmatprep.subr.mxu0 0.0
    %1055 = vmatpush1.xpose.msra.mxu0 0.0
    %1056 = vmatprep.subr.mxu0 0.0
    %1057 = vmatpush1.xpose.msra.mxu0 0.0
    %1058 = vmatprep.subr.mxu0 0.0
    %1059 = vmatpush1.xpose.msra.mxu0 0.0
    %1060 = vmatprep.subr.mxu0 0.0
    %1061 = vmatpush1.xpose.msra.mxu0 0.0
    %1062 = vmatprep.subr.mxu0 0.0
    %1063 = vmatpush1.xpose.msra.mxu0 0.0
    %1064 = vmatprep.subr.mxu0 0.0
    %1065 = vmatpush1.xpose.msra.mxu0 0.0
    %1066 = vmatprep.subr.mxu0 0.0
    %1067 = vmatpush1.xpose.msra.mxu0 0.0
    %1068 = vmatprep.mubr.f32.mxu0 0.0
    %1069 = vmatmul.mubr.f32.gmra.mrb[0].mxu0 %v1000
    %v1070 = vpop.f32.mrb[0].mxu0
    %v1071 = vadd.f32 0.0, %v1070
    %v1072 = vpop.f32.mrb[0].mxu0
    %1073 = vdwg.mxu0
    %v1074 = vmul.f32 %v1071, 0.25
    %v1075 = vadd.f32 %v1074, %v906
    %v1076 = vsel %vm255, %v1075, -inf
    %1077 = vmax.xlane.f32.xlu0 %v1076
    %v1078 = vpop.xlane.xlu0 %1077
    %v1079 = vsub.f32 %v1075, %v1078
    %v1080 = vmul.f32 %v1079, 1.442695
    %v1081 = vpow.pop %v1080
    %v1082 = vsel %vm255, %v1081, 0.0
    %1083 = vadd.xlane.f32.xlu0 %v1082
    %v1084 = vpop.xlane.xlu0 %1083
    %v1085 = vrcp.pop %v1084
    %v1086 = vmul.f32 %v1081, %v1085
    %1087 = vrot.lane.b32.xlu0 %v167, 16
    %v1088 = vpop.permute.xlu0 %1087
    %v1091 = vsel %vm255, %v1086, 0
    %1093 = vmatprep.subr.mxu0 0.0
    %1094 = vmatpush1.msra.mxu0 %v1088
    %1095 = vmatprep.subr.mxu0 0.0
    %1096 = vmatpush1.msra.mxu0 0.0
    %1097 = vmatprep.subr.mxu0 0.0
    %1098 = vmatpush1.msra.mxu0 0.0
    %1099 = vmatprep.subr.mxu0 0.0
    %1100 = vmatpush1.msra.mxu0 0.0
    %1101 = vmatprep.subr.mxu0 0.0
    %1102 = vmatpush1.msra.mxu0 0.0
    %1103 = vmatprep.subr.mxu0 0.0
    %1104 = vmatpush1.msra.mxu0 0.0
    %1105 = vmatprep.subr.mxu0 0.0
    %1106 = vmatpush1.msra.mxu0 0.0
    %1107 = vmatprep.subr.mxu0 0.0
    %1108 = vmatpush1.msra.mxu0 0.0
    %1109 = vmatprep.subr.mxu0 0.0
    %1110 = vmatpush1.msra.mxu0 0.0
    %1111 = vmatprep.subr.mxu0 0.0
    %1112 = vmatpush1.msra.mxu0 0.0
    %1113 = vmatprep.subr.mxu0 0.0
    %1114 = vmatpush1.msra.mxu0 0.0
    %1115 = vmatprep.subr.mxu0 0.0
    %1116 = vmatpush1.msra.mxu0 0.0
    %1117 = vmatprep.subr.mxu0 0.0
    %1118 = vmatpush1.msra.mxu0 0.0
    %1119 = vmatprep.subr.mxu0 0.0
    %1120 = vmatpush1.msra.mxu0 0.0
    %1121 = vmatprep.subr.mxu0 0.0
    %1122 = vmatpush1.msra.mxu0 0.0
    %1123 = vmatprep.subr.mxu0 0.0
    %1124 = vmatpush1.msra.mxu0 0.0
    %1125 = vmatprep.subr.mxu0 0.0
    %1126 = vmatpush1.msra.mxu0 0.0
    %1127 = vmatprep.subr.mxu0 0.0
    %1128 = vmatpush1.msra.mxu0 0.0
    %1129 = vmatprep.subr.mxu0 0.0
    %1130 = vmatpush1.msra.mxu0 0.0
    %1131 = vmatprep.subr.mxu0 0.0
    %1132 = vmatpush1.msra.mxu0 0.0
    %1133 = vmatprep.subr.mxu0 0.0
    %1134 = vmatpush1.msra.mxu0 0.0
    %1135 = vmatprep.subr.mxu0 0.0
    %1136 = vmatpush1.msra.mxu0 0.0
    %1137 = vmatprep.subr.mxu0 0.0
    %1138 = vmatpush1.msra.mxu0 0.0
    %1139 = vmatprep.subr.mxu0 0.0
    %1140 = vmatpush1.msra.mxu0 0.0
    %1141 = vmatprep.subr.mxu0 0.0
    %1142 = vmatpush1.msra.mxu0 0.0
    %1143 = vmatprep.subr.mxu0 0.0
    %1144 = vmatpush1.msra.mxu0 0.0
    %1145 = vmatprep.subr.mxu0 0.0
    %1146 = vmatpush1.msra.mxu0 0.0
    %1147 = vmatprep.subr.mxu0 0.0
    %1148 = vmatpush1.msra.mxu0 0.0
    %1149 = vmatprep.subr.mxu0 0.0
    %1150 = vmatpush1.msra.mxu0 0.0
    %1151 = vmatprep.subr.mxu0 0.0
    %1152 = vmatpush1.msra.mxu0 0.0
    %1153 = vmatprep.subr.mxu0 0.0
    %1154 = vmatpush1.msra.mxu0 0.0
    %1155 = vmatprep.subr.mxu0 0.0
    %1156 = vmatpush1.msra.mxu0 0.0
    %1157 = vmatprep.mubr.f32.mxu0 0.0
    %1158 = vmatmul.mubr.f32.gmra.mrb[0].mxu0 %v1091
    %v1159 = vpop.f32.mrb[0].mxu0
    %v1160 = vadd.f32 0.0, %v1159
    %v1161 = vpop.f32.mrb[0].mxu0
    %1162 = vdwg.mxu0
    %v1163 = vpack.c.bf16 %v1160, %v1160
    %v1165 = vsel %vm174, %v1163, 0
    %1167 = vmatprep.subr.bf16.mxu0 0
    %1168 = vmatpush1.bf16.msra.mxu0 %v516
    %1169 = vmatprep.subr.bf16.mxu0 0
    %1170 = vmatpush1.bf16.msra.mxu0 0
    %1171 = vmatprep.subr.bf16.mxu0 0
    %1172 = vmatpush1.bf16.msra.mxu0 0
    %1173 = vmatprep.subr.bf16.mxu0 0
    %1174 = vmatpush1.bf16.msra.mxu0 0
    %1175 = vmatprep.subr.bf16.mxu0 0
    %1176 = vmatpush1.bf16.msra.mxu0 0
    %1177 = vmatprep.subr.bf16.mxu0 0
    %1178 = vmatpush1.bf16.msra.mxu0 0
    %1179 = vmatprep.subr.bf16.mxu0 0
    %1180 = vmatpush1.bf16.msra.mxu0 0
    %1181 = vmatprep.subr.bf16.mxu0 0
    %1182 = vmatpush1.bf16.msra.mxu0 0
    %1183 = vmatprep.subr.bf16.mxu0 0
    %1184 = vmatpush1.bf16.msra.mxu0 0
    %1185 = vmatprep.subr.bf16.mxu0 0
    %1186 = vmatpush1.bf16.msra.mxu0 0
    %1187 = vmatprep.subr.bf16.mxu0 0
    %1188 = vmatpush1.bf16.msra.mxu0 0
    %1189 = vmatprep.subr.bf16.mxu0 0
    %1190 = vmatpush1.bf16.msra.mxu0 0
    %1191 = vmatprep.subr.bf16.mxu0 0
    %1192 = vmatpush1.bf16.msra.mxu0 0
    %1193 = vmatprep.subr.bf16.mxu0 0
    %1194 = vmatpush1.bf16.msra.mxu0 0
    %1195 = vmatprep.subr.bf16.mxu0 0
    %1196 = vmatpush1.bf16.msra.mxu0 0
    %1197 = vmatprep.subr.bf16.mxu0 0
    %1198 = vmatpush1.bf16.msra.mxu0 0
    %1199 = vmatprep.mubr.bf16.mxu0 0
    %1200 = vmatmul.mubr.bf16.gmra.mrb[0].mxu0 %v1165
    %v1201 = vpop.f32.mrb[0].mxu0
    %v1202 = vadd.f32 0.0, %v1201
    %v1203 = vpop.f32.mrb[0].mxu0
    %v1204 = vpop.f32.mrb[0].mxu0
    %v1205 = vpop.f32.mrb[0].mxu0
    %1206 = vdwg.mxu0
    %v1208 = vsel %vm174, %v995, 0
    %1210 = vmatprep.subr.bf16.mxu0 0
    %1211 = vmatpush1.bf16.msra.mxu0 %v565
    %1212 = vmatprep.subr.bf16.mxu0 0
    %1213 = vmatpush1.bf16.msra.mxu0 0
    %1214 = vmatprep.subr.bf16.mxu0 0
    %1215 = vmatpush1.bf16.msra.mxu0 0
    %1216 = vmatprep.subr.bf16.mxu0 0
    %1217 = vmatpush1.bf16.msra.mxu0 0
    %1218 = vmatprep.subr.bf16.mxu0 0
    %1219 = vmatpush1.bf16.msra.mxu0 0
    %1220 = vmatprep.subr.bf16.mxu0 0
    %1221 = vmatpush1.bf16.msra.mxu0 0
    %1222 = vmatprep.subr.bf16.mxu0 0
    %1223 = vmatpush1.bf16.msra.mxu0 0
    %1224 = vmatprep.subr.bf16.mxu0 0
    %1225 = vmatpush1.bf16.msra.mxu0 0
    %1226 = vmatprep.subr.bf16.mxu0 0
    %1227 = vmatpush1.bf16.msra.mxu0 0
    %1228 = vmatprep.subr.bf16.mxu0 0
    %1229 = vmatpush1.bf16.msra.mxu0 0
    %1230 = vmatprep.subr.bf16.mxu0 0
    %1231 = vmatpush1.bf16.msra.mxu0 0
    %1232 = vmatprep.subr.bf16.mxu0 0
    %1233 = vmatpush1.bf16.msra.mxu0 0
    %1234 = vmatprep.subr.bf16.mxu0 0
    %1235 = vmatpush1.bf16.msra.mxu0 0
    %1236 = vmatprep.subr.bf16.mxu0 0
    %1237 = vmatpush1.bf16.msra.mxu0 0
    %1238 = vmatprep.subr.bf16.mxu0 0
    %1239 = vmatpush1.bf16.msra.mxu0 0
    %1240 = vmatprep.subr.bf16.mxu0 0
    %1241 = vmatpush1.bf16.msra.mxu0 0
    %1242 = vmatprep.mubr.bf16.mxu0 0
    %1243 = vmatmul.mubr.bf16.gmra.mrb[0].mxu0 %v1208
    %v1244 = vpop.f32.mrb[0].mxu0
    %v1245 = vadd.f32 %v1202, %v1244
    %v1246 = vpop.f32.mrb[0].mxu0
    %v1247 = vpop.f32.mrb[0].mxu0
    %v1248 = vpop.f32.mrb[0].mxu0
    %1249 = vdwg.mxu0
    %1250 = vrot.lane.b32.xlu0 %v167, 96
    %v1251 = vpop.permute.xlu0 %1250
    %1252 = vrot.lane.b32.xlu0 %v167, 48
    %v1253 = vpop.permute.xlu0 %1252
    %v1254 = vsel %vm174, %v1251, 0
    %v1256 = vsel %vm174, %v1253, 0
    %1258 = vmatprep.subr.mxu0 0.0
    %1259 = vmatpush1.xpose.msra.mxu0 %v1256
    %1260 = vmatprep.subr.mxu0 0.0
    %1261 = vmatpush1.xpose.msra.mxu0 0.0
    %1262 = vmatprep.subr.mxu0 0.0
    %1263 = vmatpush1.xpose.msra.mxu0 0.0
    %1264 = vmatprep.subr.mxu0 0.0
    %1265 = vmatpush1.xpose.msra.mxu0 0.0
    %1266 = vmatprep.subr.mxu0 0.0
    %1267 = vmatpush1.xpose.msra.mxu0 0.0
    %1268 = vmatprep.subr.mxu0 0.0
    %1269 = vmatpush1.xpose.msra.mxu0 0.0
    %1270 = vmatprep.subr.mxu0 0.0
    %1271 = vmatpush1.xpose.msra.mxu0 0.0
    %1272 = vmatprep.subr.mxu0 0.0
    %1273 = vmatpush1.xpose.msra.mxu0 0.0
    %1274 = vmatprep.subr.mxu0 0.0
    %1275 = vmatpush1.xpose.msra.mxu0 0.0
    %1276 = vmatprep.subr.mxu0 0.0
    %1277 = vmatpush1.xpose.msra.mxu0 0.0
    %1278 = vmatprep.subr.mxu0 0.0
    %1279 = vmatpush1.xpose.msra.mxu0 0.0
    %1280 = vmatprep.subr.mxu0 0.0
    %1281 = vmatpush1.xpose.msra.mxu0 0.0
    %1282 = vmatprep.subr.mxu0 0.0
    %1283 = vmatpush1.xpose.msra.mxu0 0.0
    %1284 = vmatprep.subr.mxu0 0.0
    %1285 = vmatpush1.xpose.msra.mxu0 0.0
    %1286 = vmatprep.subr.mxu0 0.0
    %1287 = vmatpush1.xpose.msra.mxu0 0.0
    %1288 = vmatprep.subr.mxu0 0.0
    %1289 = vmatpush1.xpose.msra.mxu0 0.0
    %1290 = vmatprep.subr.mxu0 0.0
    %1291 = vmatpush1.xpose.msra.mxu0 0.0
    %1292 = vmatprep.subr.mxu0 0.0
    %1293 = vmatpush1.xpose.msra.mxu0 0.0
    %1294 = vmatprep.subr.mxu0 0.0
    %1295 = vmatpush1.xpose.msra.mxu0 0.0
    %1296 = vmatprep.subr.mxu0 0.0
    %1297 = vmatpush1.xpose.msra.mxu0 0.0
    %1298 = vmatprep.subr.mxu0 0.0
    %1299 = vmatpush1.xpose.msra.mxu0 0.0
    %1300 = vmatprep.subr.mxu0 0.0
    %1301 = vmatpush1.xpose.msra.mxu0 0.0
    %1302 = vmatprep.subr.mxu0 0.0
    %1303 = vmatpush1.xpose.msra.mxu0 0.0
    %1304 = vmatprep.subr.mxu0 0.0
    %1305 = vmatpush1.xpose.msra.mxu0 0.0
    %1306 = vmatprep.subr.mxu0 0.0
    %1307 = vmatpush1.xpose.msra.mxu0 0.0
    %1308 = vmatprep.subr.mxu0 0.0
    %1309 = vmatpush1.xpose.msra.mxu0 0.0
    %1310 = vmatprep.subr.mxu0 0.0
    %1311 = vmatpush1.xpose.msra.mxu0 0.0
    %1312 = vmatprep.subr.mxu0 0.0
    %1313 = vmatpush1.xpose.msra.mxu0 0.0
    %1314 = vmatprep.subr.mxu0 0.0
    %1315 = vmatpush1.xpose.msra.mxu0 0.0
    %1316 = vmatprep.subr.mxu0 0.0
    %1317 = vmatpush1.xpose.msra.mxu0 0.0
    %1318 = vmatprep.subr.mxu0 0.0
    %1319 = vmatpush1.xpose.msra.mxu0 0.0
    %1320 = vmatprep.subr.mxu0 0.0
    %1321 = vmatpush1.xpose.msra.mxu0 0.0
    %1322 = vmatprep.mubr.f32.mxu0 0.0
    %1323 = vmatmul.mubr.f32.gmra.mrb[0].mxu0 %v1254
    %v1324 = vpop.f32.mrb[0].mxu0
    %v1325 = vadd.f32 0.0, %v1324
    %v1326 = vpop.f32.mrb[0].mxu0
    %1327 = vdwg.mxu0
    %v1328 = vmul.f32 %v1325, 0.25
    %v1329 = vadd.f32 %v1328, %v906
    %v1330 = vsel %vm255, %v1329, -inf
    %1331 = vmax.xlane.f32.xlu0 %v1330
    %v1332 = vpop.xlane.xlu0 %1331
    %v1333 = vsub.f32 %v1329, %v1332
    %v1334 = vmul.f32 %v1333, 1.442695
    %v1335 = vpow.pop %v1334
    %v1336 = vsel %vm255, %v1335, 0.0
    %1337 = vadd.xlane.f32.xlu0 %v1336
    %v1338 = vpop.xlane.xlu0 %1337
    %v1339 = vrcp.pop %v1338
    %v1340 = vmul.f32 %v1335, %v1339
    %v1342 = vsel %vm255, %v1340, 0
    %1344 = vmatprep.subr.mxu0 0.0
    %1345 = vmatpush1.msra.mxu0 %v169
    %1346 = vmatprep.subr.mxu0 0.0
    %1347 = vmatpush1.msra.mxu0 0.0
    %1348 = vmatprep.subr.mxu0 0.0
    %1349 = vmatpush1.msra.mxu0 0.0
    %1350 = vmatprep.subr.mxu0 0.0
    %1351 = vmatpush1.msra.mxu0 0.0
    %1352 = vmatprep.subr.mxu0 0.0
    %1353 = vmatpush1.msra.mxu0 0.0
    %1354 = vmatprep.subr.mxu0 0.0
    %1355 = vmatpush1.msra.mxu0 0.0
    %1356 = vmatprep.subr.mxu0 0.0
    %1357 = vmatpush1.msra.mxu0 0.0
    %1358 = vmatprep.subr.mxu0 0.0
    %1359 = vmatpush1.msra.mxu0 0.0
    %1360 = vmatprep.subr.mxu0 0.0
    %1361 = vmatpush1.msra.mxu0 0.0
    %1362 = vmatprep.subr.mxu0 0.0
    %1363 = vmatpush1.msra.mxu0 0.0
    %1364 = vmatprep.subr.mxu0 0.0
    %1365 = vmatpush1.msra.mxu0 0.0
    %1366 = vmatprep.subr.mxu0 0.0
    %1367 = vmatpush1.msra.mxu0 0.0
    %1368 = vmatprep.subr.mxu0 0.0
    %1369 = vmatpush1.msra.mxu0 0.0
    %1370 = vmatprep.subr.mxu0 0.0
    %1371 = vmatpush1.msra.mxu0 0.0
    %1372 = vmatprep.subr.mxu0 0.0
    %1373 = vmatpush1.msra.mxu0 0.0
    %1374 = vmatprep.subr.mxu0 0.0
    %1375 = vmatpush1.msra.mxu0 0.0
    %1376 = vmatprep.subr.mxu0 0.0
    %1377 = vmatpush1.msra.mxu0 0.0
    %1378 = vmatprep.subr.mxu0 0.0
    %1379 = vmatpush1.msra.mxu0 0.0
    %1380 = vmatprep.subr.mxu0 0.0
    %1381 = vmatpush1.msra.mxu0 0.0
    %1382 = vmatprep.subr.mxu0 0.0
    %1383 = vmatpush1.msra.mxu0 0.0
    %1384 = vmatprep.subr.mxu0 0.0
    %1385 = vmatpush1.msra.mxu0 0.0
    %1386 = vmatprep.subr.mxu0 0.0
    %1387 = vmatpush1.msra.mxu0 0.0
    %1388 = vmatprep.subr.mxu0 0.0
    %1389 = vmatpush1.msra.mxu0 0.0
    %1390 = vmatprep.subr.mxu0 0.0
    %1391 = vmatpush1.msra.mxu0 0.0
    %1392 = vmatprep.subr.mxu0 0.0
    %1393 = vmatpush1.msra.mxu0 0.0
    %1394 = vmatprep.subr.mxu0 0.0
    %1395 = vmatpush1.msra.mxu0 0.0
    %1396 = vmatprep.subr.mxu0 0.0
    %1397 = vmatpush1.msra.mxu0 0.0
    %1398 = vmatprep.subr.mxu0 0.0
    %1399 = vmatpush1.msra.mxu0 0.0
    %1400 = vmatprep.subr.mxu0 0.0
    %1401 = vmatpush1.msra.mxu0 0.0
    %1402 = vmatprep.subr.mxu0 0.0
    %1403 = vmatpush1.msra.mxu0 0.0
    %1404 = vmatprep.subr.mxu0 0.0
    %1405 = vmatpush1.msra.mxu0 0.0
    %1406 = vmatprep.subr.mxu0 0.0
    %1407 = vmatpush1.msra.mxu0 0.0
    %1408 = vmatprep.mubr.f32.mxu0 0.0
    %1409 = vmatmul.mubr.f32.gmra.mrb[0].mxu0 %v1342
    %v1410 = vpop.f32.mrb[0].mxu0
    %v1411 = vadd.f32 0.0, %v1410
    %v1412 = vpop.f32.mrb[0].mxu0
    %1413 = vdwg.mxu0
    %v1414 = vpack.c.bf16 %v1411, %v1411
    %v1416 = vsel %vm174, %v1414, 0
    %1418 = vmatprep.subr.bf16.mxu0 0
    %1419 = vmatpush1.bf16.msra.mxu0 %v779
    %1420 = vmatprep.subr.bf16.mxu0 0
    %1421 = vmatpush1.bf16.msra.mxu0 0
    %1422 = vmatprep.subr.bf16.mxu0 0
    %1423 = vmatpush1.bf16.msra.mxu0 0
    %1424 = vmatprep.subr.bf16.mxu0 0
    %1425 = vmatpush1.bf16.msra.mxu0 0
    %1426 = vmatprep.subr.bf16.mxu0 0
    %1427 = vmatpush1.bf16.msra.mxu0 0
    %1428 = vmatprep.subr.bf16.mxu0 0
    %1429 = vmatpush1.bf16.msra.mxu0 0
    %1430 = vmatprep.subr.bf16.mxu0 0
    %1431 = vmatpush1.bf16.msra.mxu0 0
    %1432 = vmatprep.subr.bf16.mxu0 0
    %1433 = vmatpush1.bf16.msra.mxu0 0
    %1434 = vmatprep.subr.bf16.mxu0 0
    %1435 = vmatpush1.bf16.msra.mxu0 0
    %1436 = vmatprep.subr.bf16.mxu0 0
    %1437 = vmatpush1.bf16.msra.mxu0 0
    %1438 = vmatprep.subr.bf16.mxu0 0
    %1439 = vmatpush1.bf16.msra.mxu0 0
    %1440 = vmatprep.subr.bf16.mxu0 0
    %1441 = vmatpush1.bf16.msra.mxu0 0
    %1442 = vmatprep.subr.bf16.mxu0 0
    %1443 = vmatpush1.bf16.msra.mxu0 0
    %1444 = vmatprep.subr.bf16.mxu0 0
    %1445 = vmatpush1.bf16.msra.mxu0 0
    %1446 = vmatprep.subr.bf16.mxu0 0
    %1447 = vmatpush1.bf16.msra.mxu0 0
    %1448 = vmatprep.subr.bf16.mxu0 0
    %1449 = vmatpush1.bf16.msra.mxu0 0
    %1450 = vmatprep.mubr.bf16.mxu0 0
    %1451 = vmatmul.mubr.bf16.gmra.mrb[0].mxu0 %v1416
    %v1452 = vpop.f32.mrb[0].mxu0
    %v1453 = vadd.f32 0.0, %v1452
    %v1454 = vpop.f32.mrb[0].mxu0
    %v1455 = vpop.f32.mrb[0].mxu0
    %v1456 = vpop.f32.mrb[0].mxu0
    %1457 = vdwg.mxu0
    %v1458 = vadd.f32 %v1245, %v1453
    %v1459 = vlaneseq
    %v1460 = vshrl.u32 %v1459, 7
    %v1461 = vsub.s32 1, %v1460
    %v1462 = vrot.slane %v83, %v1461
    %v1463 = vadd.f32 %v824, %v1462
    %v1464 = vadd.f32 %v1458, %v1462
    %v1465 = vadd.f32 %v39, %v1463
    %v1466 = vadd.f32 %v40, %v1464
    %v1467 = vsel %vm124, %v1465, 0.0
    %1468 = vadd.xlane.f32.xlu0 %v1467
    %v1469 = vpop.xlane.xlu0 %1468
    %v1470 = vsel %vm124, %v1466, 0.0
    %1471 = vadd.xlane.f32.xlu0 %v1470
    %v1472 = vpop.xlane.xlu0 %1471
    %v1473 = vrcp.pop 48.0
    %v1474 = vmul.f32 %v1469, %v1473
    %v1475 = vmul.f32 %v1472, %v1473
    %v1476 = vsub.f32 %v1465, %v1474
    %v1477 = vsub.f32 %v1466, %v1475
    %v1478 = vmul.f32 %v1476, %v1476
    %v1479 = vmul.f32 %v1477, %v1477
    %v1480 = vsel %vm124, %v1478, 0.0
    %1481 = vadd.xlane.f32.xlu0 %v1480
    %v1482 = vpop.xlane.xlu0 %1481
    %v1483 = vsel %vm124, %v1479, 0.0
    %1484 = vadd.xlane.f32.xlu0 %v1483
    %v1485 = vpop.xlane.xlu0 %1484
    %v1486 = vmul.f32 %v1482, %v1473
    %v1487 = vmul.f32 %v1485, %v1473
    %v1488 = vadd.f32 %v1486, 1e-05
    %v1489 = vadd.f32 %v1487, 1e-05
    %v1490 = vrsqrt.pop %v1488
    %v1491 = vrsqrt.pop %v1489
    %v1492 = vmul.f32 %v1476, %v1490
    %v1493 = vmul.f32 %v1477, %v1491
    %v1494 = vlaneseq
    %v1495 = vshrl.u32 %v1494, 7
    %v1496 = vsub.s32 4, %v1495
    %v1497 = vrot.slane %v83, %v1496
    %v1498 = vmul.f32 %v1492, %v1497
    %v1499 = vmul.f32 %v1493, %v1497
    %v1500 = vlaneseq
    %v1501 = vshrl.u32 %v1500, 7
    %v1502 = vsub.s32 5, %v1501
    %v1503 = vrot.slane %v83, %v1502
    %v1504 = vadd.f32 %v1498, %v1503
    %v1505 = vadd.f32 %v1499, %v1503
    %v1506 = vpack.c.bf16 %v1505, %v1504
    %v1507 = vlaneseq
    %v1508 = vshrl.u32 %v1507, 7
    %v1509 = vsub.s32 2, %v1508
    %v1510 = vrot.slane %v83, %v1509
    %v1517 = vunpack.c.l.b16 %v63
    %v1518 = vunpack.c.l.b16 %v64
    %v1519 = vunpack.c.l.b16 %v65
    %v1520 = vunpack.c.l.b16 %v66
    %v1521 = vunpack.c.l.b16 %v67
    %v1522 = vunpack.c.l.b16 %v68
    %v1523 = vpack.c.b16 %v1518, %v1517
    %v1524 = vpack.c.b16 %v1520, %v1519
    %v1525 = vpack.c.b16 %v1522, %v1521
    %v1530 = vsel %vm124, %v1506, 0
    %1532 = vmatprep.subr.bf16.mxu0 0
    %1533 = vmatpush1.bf16.msra.mxu0 %v1523
    %1534 = vmatprep.subr.bf16.mxu0 0
    %1535 = vmatpush1.bf16.msra.mxu0 %v1524
    %1536 = vmatprep.subr.bf16.mxu0 0
    %1537 = vmatpush1.bf16.msra.mxu0 %v1525
    %1538 = vmatprep.subr.bf16.mxu0 0
    %1539 = vmatpush1.bf16.msra.mxu0 0
    %1540 = vmatprep.subr.bf16.mxu0 0
    %1541 = vmatpush1.bf16.msra.mxu0 0
    %1542 = vmatprep.subr.bf16.mxu0 0
    %1543 = vmatpush1.bf16.msra.mxu0 0
    %1544 = vmatprep.subr.bf16.mxu0 0
    %1545 = vmatpush1.bf16.msra.mxu0 0
    %1546 = vmatprep.subr.bf16.mxu0 0
    %1547 = vmatpush1.bf16.msra.mxu0 0
    %1548 = vmatprep.subr.bf16.mxu0 0
    %1549 = vmatpush1.bf16.msra.mxu0 0
    %1550 = vmatprep.subr.bf16.mxu0 0
    %1551 = vmatpush1.bf16.msra.mxu0 0
    %1552 = vmatprep.subr.bf16.mxu0 0
    %1553 = vmatpush1.bf16.msra.mxu0 0
    %1554 = vmatprep.subr.bf16.mxu0 0
    %1555 = vmatpush1.bf16.msra.mxu0 0
    %1556 = vmatprep.subr.bf16.mxu0 0
    %1557 = vmatpush1.bf16.msra.mxu0 0
    %1558 = vmatprep.subr.bf16.mxu0 0
    %1559 = vmatpush1.bf16.msra.mxu0 0
    %1560 = vmatprep.subr.bf16.mxu0 0
    %1561 = vmatpush1.bf16.msra.mxu0 0
    %1562 = vmatprep.subr.bf16.mxu0 0
    %1563 = vmatpush1.bf16.msra.mxu0 0
    %1564 = vmatprep.mubr.bf16.mxu0 0
    %1565 = vmatmul.mubr.bf16.gmra.mrb[0].mxu0 %v1530
    %v1566 = vpop.f32.mrb[0].mxu0
    %v1567 = vadd.f32 %v1510, %v1566
    %v1568 = vpop.f32.mrb[0].mxu0
    %v1569 = vpop.f32.mrb[0].mxu0
    %v1570 = vadd.f32 %v1510, %v1569
    %v1571 = vpop.f32.mrb[0].mxu0
    %1572 = vdwg.mxu0
    %v1573 = vmax.f32 %v1567, 0.0
    %v1574 = vmax.f32 %v1570, 0.0
    %v1575 = vpack.c.bf16 %v1574, %v1573
    %v1576 = vlaneseq
    %v1577 = vshrl.u32 %v1576, 7
    %v1578 = vsub.s32 3, %v1577
    %v1579 = vrot.slane %v83, %v1578
    %v1588 = vunpack.c.l.b16 %v72
    %v1589 = vunpack.c.l.b16 %v73
    %v1590 = vunpack.c.l.b16 %v74
    %v1591 = vunpack.c.l.b16 %v75
    %v1592 = vunpack.c.l.b16 %v76
    %v1593 = vunpack.c.l.b16 %v77
    %v1594 = vunpack.c.l.b16 %v78
    %v1595 = vunpack.c.l.b16 %v79
    %v1596 = vpack.c.b16 %v1589, %v1588
    %v1597 = vpack.c.b16 %v1591, %v1590
    %v1598 = vpack.c.b16 %v1593, %v1592
    %v1599 = vpack.c.b16 %v1595, %v1594
    %vm1604 = vcmask 523264
    %v1606 = vsel %vm1604, %v1575, 0
    %1608 = vmatprep.subr.bf16.mxu0 0
    %1609 = vmatpush1.bf16.msra.mxu0 %v1596
    %1610 = vmatprep.subr.bf16.mxu0 0
    %1611 = vmatpush1.bf16.msra.mxu0 %v1597
    %1612 = vmatprep.subr.bf16.mxu0 0
    %1613 = vmatpush1.bf16.msra.mxu0 %v1598
    %1614 = vmatprep.subr.bf16.mxu0 0
    %1615 = vmatpush1.bf16.msra.mxu0 %v1599
    %1616 = vmatprep.subr.bf16.mxu0 0
    %1617 = vmatpush1.bf16.msra.mxu0 0
    %1618 = vmatprep.subr.bf16.mxu0 0
    %1619 = vmatpush1.bf16.msra.mxu0 0
    %1620 = vmatprep.subr.bf16.mxu0 0
    %1621 = vmatpush1.bf16.msra.mxu0 0
    %1622 = vmatprep.subr.bf16.mxu0 0
    %1623 = vmatpush1.bf16.msra.mxu0 0
    %1624 = vmatprep.subr.bf16.mxu0 0
    %1625 = vmatpush1.bf16.msra.mxu0 0
    %1626 = vmatprep.subr.bf16.mxu0 0
    %1627 = vmatpush1.bf16.msra.mxu0 0
    %1628 = vmatprep.subr.bf16.mxu0 0
    %1629 = vmatpush1.bf16.msra.mxu0 0
    %1630 = vmatprep.subr.bf16.mxu0 0
    %1631 = vmatpush1.bf16.msra.mxu0 0
    %1632 = vmatprep.subr.bf16.mxu0 0
    %1633 = vmatpush1.bf16.msra.mxu0 0
    %1634 = vmatprep.subr.bf16.mxu0 0
    %1635 = vmatpush1.bf16.msra.mxu0 0
    %1636 = vmatprep.subr.bf16.mxu0 0
    %1637 = vmatpush1.bf16.msra.mxu0 0
    %1638 = vmatprep.subr.bf16.mxu0 0
    %1639 = vmatpush1.bf16.msra.mxu0 0
    %1640 = vmatprep.mubr.bf16.mxu0 0
    %1641 = vmatmul.mubr.bf16.gmra.mrb[0].mxu0 %v1606
    %v1642 = vpop.f32.mrb[0].mxu0
    %v1643 = vadd.f32 %v1579, %v1642
    %v1644 = vpop.f32.mrb[0].mxu0
    %v1645 = vpop.f32.mrb[0].mxu0
    %v1646 = vadd.f32 %v1579, %v1645
    %v1647 = vpop.f32.mrb[0].mxu0
    %1648 = vdwg.mxu0
    %v1649 = vadd.f32 %v1504, %v1643
    %v1650 = vadd.f32 %v1505, %v1646
    %v1651 = vsel %vm124, %v1649, 0.0
    %1652 = vadd.xlane.f32.xlu0 %v1651
    %v1653 = vpop.xlane.xlu0 %1652
    %v1654 = vsel %vm124, %v1650, 0.0
    %1655 = vadd.xlane.f32.xlu0 %v1654
    %v1656 = vpop.xlane.xlu0 %1655
    %v1657 = vmul.f32 %v1653, %v1473
    %v1658 = vmul.f32 %v1656, %v1473
    %v1659 = vsub.f32 %v1649, %v1657
    %v1660 = vsub.f32 %v1650, %v1658
    %v1661 = vmul.f32 %v1659, %v1659
    %v1662 = vmul.f32 %v1660, %v1660
    %v1663 = vsel %vm124, %v1661, 0.0
    %1664 = vadd.xlane.f32.xlu0 %v1663
    %v1665 = vpop.xlane.xlu0 %1664
    %v1666 = vsel %vm124, %v1662, 0.0
    %1667 = vadd.xlane.f32.xlu0 %v1666
    %v1668 = vpop.xlane.xlu0 %1667
    %v1669 = vmul.f32 %v1665, %v1473
    %v1670 = vmul.f32 %v1668, %v1473
    %v1671 = vadd.f32 %v1669, 1e-05
    %v1672 = vadd.f32 %v1670, 1e-05
    %v1673 = vrsqrt.pop %v1671
    %v1674 = vrsqrt.pop %v1672
    %v1675 = vmul.f32 %v1659, %v1673
    %v1676 = vmul.f32 %v1660, %v1674
    %v1677 = vlaneseq
    %v1678 = vshrl.u32 %v1677, 7
    %v1679 = vsub.s32 6, %v1678
    %v1680 = vrot.slane %v83, %v1679
    %v1681 = vmul.f32 %v1675, %v1680
    %v1682 = vmul.f32 %v1676, %v1680
    %v1683 = vlaneseq
    %v1684 = vshrl.u32 %v1683, 7
    %v1685 = vsub.s32 7, %v1684
    %v1686 = vrot.slane %v83, %v1685
    %v1687 = vadd.f32 %v1681, %v1686
    %v1688 = vadd.f32 %v1682, %v1686
    %s1689 = sadd.s32 %s34, 3
    %s1690 = smul.u32 %s1689, 12
    %s1691 = smul.addr %s1690, 4
    %s1692 = scalar_lea.vmem %s2, %s1691
    %v1693 = vld [vmem:[%s1692] sm:$0xff]
    %v1694 = vld [vmem:[%s1692 + $0x8] sm:$0xff]
    %v1695 = vld [vmem:[%s1692 + $0x10] sm:$0xff]
    %v1696 = vld [vmem:[%s1692 + $0x18] sm:$0xff]
    %v1697 = vld [vmem:[%s1692 + $0x20] sm:$0xff]
    %v1698 = vld [vmem:[%s1692 + $0x28] sm:$0xff]
    %s1699 = smul.u32 %s1689, 6
    %s1700 = smul.addr %s1699, 4
    %s1701 = scalar_lea.vmem %s3, %s1700
    %v1702 = vld [vmem:[%s1701] sm:$0xf]
    %v1703 = vld [vmem:[%s1701 + $0x4] sm:$0xf]
    %v1704 = vld [vmem:[%s1701 + $0x8] sm:$0xf]
    %v1705 = vld [vmem:[%s1701 + $0xc] sm:$0xf]
    %v1706 = vld [vmem:[%s1701 + $0x10] sm:$0xf]
    %v1707 = vld [vmem:[%s1701 + $0x14] sm:$0xf]
    %s1708 = smul.addr %s1699, 4
    %s1709 = scalar_lea.vmem %s4, %s1708
    %v1710 = vld [vmem:[%s1709] sm:$0xf]
    %v1711 = vld [vmem:[%s1709 + $0x4] sm:$0xf]
    %v1712 = vld [vmem:[%s1709 + $0x8] sm:$0xf]
    %v1713 = vld [vmem:[%s1709 + $0xc] sm:$0xf]
    %v1714 = vld [vmem:[%s1709 + $0x10] sm:$0xf]
    %v1715 = vld [vmem:[%s1709 + $0x14] sm:$0xf]
    %s1716 = smul.u32 %s1689, 8
    %s1717 = smul.addr %s1716, 4
    %s1718 = scalar_lea.vmem %s5, %s1717
    %v1719 = vld [vmem:[%s1718] sm:$0xf]
    %v1720 = vld [vmem:[%s1718 + $0x4] sm:$0xf]
    %v1721 = vld [vmem:[%s1718 + $0x8] sm:$0xf]
    %v1722 = vld [vmem:[%s1718 + $0xc] sm:$0xf]
    %v1723 = vld [vmem:[%s1718 + $0x10] sm:$0xf]
    %v1724 = vld [vmem:[%s1718 + $0x14] sm:$0xf]
    %v1725 = vld [vmem:[%s1718 + $0x18] sm:$0xf]
    %v1726 = vld [vmem:[%s1718 + $0x1c] sm:$0xf]
    %s1727 = smul.u32 %s1689, 2
    %s1728 = smul.addr %s1727, 8
    %s1729 = scalar_lea.vmem %s6, %s1728
    %v1730 = vld [vmem:[%s1729] sm:$0xff]
    %v1731 = vld [vmem:[%s1729 + $0x8] sm:$0xff]
    %v1732 = vpack.c.bf16 %v42, %v41
    %v1733 = vlaneseq
    %v1734 = vshrl.u32 %v1733, 7
    %v1735 = vsub.s32 0, %v1734
    %v1736 = vrot.slane %v1730, %v1735
    %v1737 = vlaneseq
    %v1738 = vshrl.u32 %v1737, 7
    %v1739 = vsub.s32 0, %v1738
    %v1740 = vrot.slane %v1731, %v1739
    %v1747 = vunpack.c.l.b16 %v1693
    %v1748 = vunpack.c.h.b16 %v1693
    %v1749 = vunpack.c.l.b16 %v1694
    %v1750 = vunpack.c.h.b16 %v1694
    %v1751 = vunpack.c.l.b16 %v1695
    %v1752 = vunpack.c.h.b16 %v1695
    %v1753 = vunpack.c.l.b16 %v1696
    %v1754 = vunpack.c.h.b16 %v1696
    %v1755 = vunpack.c.l.b16 %v1697
    %v1756 = vunpack.c.h.b16 %v1697
    %v1757 = vunpack.c.l.b16 %v1698
    %v1758 = vunpack.c.h.b16 %v1698
    %v1759 = vpack.c.b16 %v1749, %v1747
    %v1760 = vpack.c.b16 %v1750, %v1748
    %v1761 = vpack.c.b16 %v1753, %v1751
    %v1762 = vpack.c.b16 %v1754, %v1752
    %v1763 = vpack.c.b16 %v1757, %v1755
    %v1764 = vpack.c.b16 %v1758, %v1756
    %v1772 = vsel %vm124, %v1732, 0
    %1774 = vmatprep.subr.bf16.mxu0 %v1760
    %1775 = vmatpush1.bf16.msra.mxu0 %v1759
    %1776 = vmatprep.subr.bf16.mxu0 %v1762
    %1777 = vmatpush1.bf16.msra.mxu0 %v1761
    %1778 = vmatprep.subr.bf16.mxu0 %v1764
    %1779 = vmatpush1.bf16.msra.mxu0 %v1763
    %1780 = vmatprep.subr.bf16.mxu0 0
    %1781 = vmatpush1.bf16.msra.mxu0 0
    %1782 = vmatprep.subr.bf16.mxu0 0
    %1783 = vmatpush1.bf16.msra.mxu0 0
    %1784 = vmatprep.subr.bf16.mxu0 0
    %1785 = vmatpush1.bf16.msra.mxu0 0
    %1786 = vmatprep.subr.bf16.mxu0 0
    %1787 = vmatpush1.bf16.msra.mxu0 0
    %1788 = vmatprep.subr.bf16.mxu0 0
    %1789 = vmatpush1.bf16.msra.mxu0 0
    %1790 = vmatprep.subr.bf16.mxu0 0
    %1791 = vmatpush1.bf16.msra.mxu0 0
    %1792 = vmatprep.subr.bf16.mxu0 0
    %1793 = vmatpush1.bf16.msra.mxu0 0
    %1794 = vmatprep.subr.bf16.mxu0 0
    %1795 = vmatpush1.bf16.msra.mxu0 0
    %1796 = vmatprep.subr.bf16.mxu0 0
    %1797 = vmatpush1.bf16.msra.mxu0 0
    %1798 = vmatprep.subr.bf16.mxu0 0
    %1799 = vmatpush1.bf16.msra.mxu0 0
    %1800 = vmatprep.subr.bf16.mxu0 0
    %1801 = vmatpush1.bf16.msra.mxu0 0
    %1802 = vmatprep.subr.bf16.mxu0 0
    %1803 = vmatpush1.bf16.msra.mxu0 0
    %1804 = vmatprep.subr.bf16.mxu0 0
    %1805 = vmatpush1.bf16.msra.mxu0 0
    %1806 = vmatprep.mubr.bf16.mxu0 0
    %1807 = vmatmul.mubr.bf16.gmra.mrb[0].mxu0 %v1772
    %v1808 = vpop.f32.mrb[0].mxu0
    %v1809 = vadd.f32 %v1736, %v1808
    %v1810 = vpop.f32.mrb[0].mxu0
    %v1811 = vadd.f32 %v1740, %v1810
    %v1812 = vpop.f32.mrb[0].mxu0
    %v1813 = vadd.f32 %v1736, %v1812
    %v1814 = vpop.f32.mrb[0].mxu0
    %v1815 = vadd.f32 %v1740, %v1814
    %1816 = vdwg.mxu0
    %1818 = vrot.lane.b32.xlu0 %v1809, 80
    %v1819 = vpop.permute.xlu0 %1818
    %v1820 = vsel %vm174, %v1809, 0
    %v1822 = vsel %vm174, %v1819, 0
    %1824 = vmatprep.subr.mxu0 0.0
    %1825 = vmatpush1.xpose.msra.mxu0 %v1822
    %1826 = vmatprep.subr.mxu0 0.0
    %1827 = vmatpush1.xpose.msra.mxu0 0.0
    %1828 = vmatprep.subr.mxu0 0.0
    %1829 = vmatpush1.xpose.msra.mxu0 0.0
    %1830 = vmatprep.subr.mxu0 0.0
    %1831 = vmatpush1.xpose.msra.mxu0 0.0
    %1832 = vmatprep.subr.mxu0 0.0
    %1833 = vmatpush1.xpose.msra.mxu0 0.0
    %1834 = vmatprep.subr.mxu0 0.0
    %1835 = vmatpush1.xpose.msra.mxu0 0.0
    %1836 = vmatprep.subr.mxu0 0.0
    %1837 = vmatpush1.xpose.msra.mxu0 0.0
    %1838 = vmatprep.subr.mxu0 0.0
    %1839 = vmatpush1.xpose.msra.mxu0 0.0
    %1840 = vmatprep.subr.mxu0 0.0
    %1841 = vmatpush1.xpose.msra.mxu0 0.0
    %1842 = vmatprep.subr.mxu0 0.0
    %1843 = vmatpush1.xpose.msra.mxu0 0.0
    %1844 = vmatprep.subr.mxu0 0.0
    %1845 = vmatpush1.xpose.msra.mxu0 0.0
    %1846 = vmatprep.subr.mxu0 0.0
    %1847 = vmatpush1.xpose.msra.mxu0 0.0
    %1848 = vmatprep.subr.mxu0 0.0
    %1849 = vmatpush1.xpose.msra.mxu0 0.0
    %1850 = vmatprep.subr.mxu0 0.0
    %1851 = vmatpush1.xpose.msra.mxu0 0.0
    %1852 = vmatprep.subr.mxu0 0.0
    %1853 = vmatpush1.xpose.msra.mxu0 0.0
    %1854 = vmatprep.subr.mxu0 0.0
    %1855 = vmatpush1.xpose.msra.mxu0 0.0
    %1856 = vmatprep.subr.mxu0 0.0
    %1857 = vmatpush1.xpose.msra.mxu0 0.0
    %1858 = vmatprep.subr.mxu0 0.0
    %1859 = vmatpush1.xpose.msra.mxu0 0.0
    %1860 = vmatprep.subr.mxu0 0.0
    %1861 = vmatpush1.xpose.msra.mxu0 0.0
    %1862 = vmatprep.subr.mxu0 0.0
    %1863 = vmatpush1.xpose.msra.mxu0 0.0
    %1864 = vmatprep.subr.mxu0 0.0
    %1865 = vmatpush1.xpose.msra.mxu0 0.0
    %1866 = vmatprep.subr.mxu0 0.0
    %1867 = vmatpush1.xpose.msra.mxu0 0.0
    %1868 = vmatprep.subr.mxu0 0.0
    %1869 = vmatpush1.xpose.msra.mxu0 0.0
    %1870 = vmatprep.subr.mxu0 0.0
    %1871 = vmatpush1.xpose.msra.mxu0 0.0
    %1872 = vmatprep.subr.mxu0 0.0
    %1873 = vmatpush1.xpose.msra.mxu0 0.0
    %1874 = vmatprep.subr.mxu0 0.0
    %1875 = vmatpush1.xpose.msra.mxu0 0.0
    %1876 = vmatprep.subr.mxu0 0.0
    %1877 = vmatpush1.xpose.msra.mxu0 0.0
    %1878 = vmatprep.subr.mxu0 0.0
    %1879 = vmatpush1.xpose.msra.mxu0 0.0
    %1880 = vmatprep.subr.mxu0 0.0
    %1881 = vmatpush1.xpose.msra.mxu0 0.0
    %1882 = vmatprep.subr.mxu0 0.0
    %1883 = vmatpush1.xpose.msra.mxu0 0.0
    %1884 = vmatprep.subr.mxu0 0.0
    %1885 = vmatpush1.xpose.msra.mxu0 0.0
    %1886 = vmatprep.subr.mxu0 0.0
    %1887 = vmatpush1.xpose.msra.mxu0 0.0
    %1888 = vmatprep.mubr.f32.mxu0 0.0
    %1889 = vmatmul.mubr.f32.gmra.mrb[0].mxu0 %v1820
    %v1890 = vpop.f32.mrb[0].mxu0
    %v1891 = vadd.f32 0.0, %v1890
    %v1892 = vpop.f32.mrb[0].mxu0
    %1893 = vdwg.mxu0
    %v1894 = vmul.f32 %v1891, 0.25
    %v1895 = vadd.f32 %v1894, %v253
    %v1896 = vsel %vm255, %v1895, -inf
    %1897 = vmax.xlane.f32.xlu0 %v1896
    %v1898 = vpop.xlane.xlu0 %1897
    %v1899 = vsub.f32 %v1895, %v1898
    %v1900 = vmul.f32 %v1899, 1.442695
    %v1901 = vpow.pop %v1900
    %v1902 = vsel %vm255, %v1901, 0.0
    %1903 = vadd.xlane.f32.xlu0 %v1902
    %v1904 = vpop.xlane.xlu0 %1903
    %v1905 = vrcp.pop %v1904
    %v1906 = vmul.f32 %v1901, %v1905
    %1907 = vrot.lane.b32.xlu0 %v1809, 32
    %v1908 = vpop.permute.xlu0 %1907
    %v1911 = vsel %vm255, %v1906, 0
    %1913 = vmatprep.subr.mxu0 0.0
    %1914 = vmatpush1.msra.mxu0 %v1908
    %1915 = vmatprep.subr.mxu0 0.0
    %1916 = vmatpush1.msra.mxu0 0.0
    %1917 = vmatprep.subr.mxu0 0.0
    %1918 = vmatpush1.msra.mxu0 0.0
    %1919 = vmatprep.subr.mxu0 0.0
    %1920 = vmatpush1.msra.mxu0 0.0
    %1921 = vmatprep.subr.mxu0 0.0
    %1922 = vmatpush1.msra.mxu0 0.0
    %1923 = vmatprep.subr.mxu0 0.0
    %1924 = vmatpush1.msra.mxu0 0.0
    %1925 = vmatprep.subr.mxu0 0.0
    %1926 = vmatpush1.msra.mxu0 0.0
    %1927 = vmatprep.subr.mxu0 0.0
    %1928 = vmatpush1.msra.mxu0 0.0
    %1929 = vmatprep.subr.mxu0 0.0
    %1930 = vmatpush1.msra.mxu0 0.0
    %1931 = vmatprep.subr.mxu0 0.0
    %1932 = vmatpush1.msra.mxu0 0.0
    %1933 = vmatprep.subr.mxu0 0.0
    %1934 = vmatpush1.msra.mxu0 0.0
    %1935 = vmatprep.subr.mxu0 0.0
    %1936 = vmatpush1.msra.mxu0 0.0
    %1937 = vmatprep.subr.mxu0 0.0
    %1938 = vmatpush1.msra.mxu0 0.0
    %1939 = vmatprep.subr.mxu0 0.0
    %1940 = vmatpush1.msra.mxu0 0.0
    %1941 = vmatprep.subr.mxu0 0.0
    %1942 = vmatpush1.msra.mxu0 0.0
    %1943 = vmatprep.subr.mxu0 0.0
    %1944 = vmatpush1.msra.mxu0 0.0
    %1945 = vmatprep.subr.mxu0 0.0
    %1946 = vmatpush1.msra.mxu0 0.0
    %1947 = vmatprep.subr.mxu0 0.0
    %1948 = vmatpush1.msra.mxu0 0.0
    %1949 = vmatprep.subr.mxu0 0.0
    %1950 = vmatpush1.msra.mxu0 0.0
    %1951 = vmatprep.subr.mxu0 0.0
    %1952 = vmatpush1.msra.mxu0 0.0
    %1953 = vmatprep.subr.mxu0 0.0
    %1954 = vmatpush1.msra.mxu0 0.0
    %1955 = vmatprep.subr.mxu0 0.0
    %1956 = vmatpush1.msra.mxu0 0.0
    %1957 = vmatprep.subr.mxu0 0.0
    %1958 = vmatpush1.msra.mxu0 0.0
    %1959 = vmatprep.subr.mxu0 0.0
    %1960 = vmatpush1.msra.mxu0 0.0
    %1961 = vmatprep.subr.mxu0 0.0
    %1962 = vmatpush1.msra.mxu0 0.0
    %1963 = vmatprep.subr.mxu0 0.0
    %1964 = vmatpush1.msra.mxu0 0.0
    %1965 = vmatprep.subr.mxu0 0.0
    %1966 = vmatpush1.msra.mxu0 0.0
    %1967 = vmatprep.subr.mxu0 0.0
    %1968 = vmatpush1.msra.mxu0 0.0
    %1969 = vmatprep.subr.mxu0 0.0
    %1970 = vmatpush1.msra.mxu0 0.0
    %1971 = vmatprep.subr.mxu0 0.0
    %1972 = vmatpush1.msra.mxu0 0.0
    %1973 = vmatprep.subr.mxu0 0.0
    %1974 = vmatpush1.msra.mxu0 0.0
    %1975 = vmatprep.subr.mxu0 0.0
    %1976 = vmatpush1.msra.mxu0 0.0
    %1977 = vmatprep.mubr.f32.mxu0 0.0
    %1978 = vmatmul.mubr.f32.gmra.mrb[0].mxu0 %v1911
    %v1979 = vpop.f32.mrb[0].mxu0
    %v1980 = vadd.f32 0.0, %v1979
    %v1981 = vpop.f32.mrb[0].mxu0
    %1982 = vdwg.mxu0
    %v1983 = vpack.c.bf16 %v1980, %v1980
    %1984 = vrot.lane.b32.xlu0 %v1809, 112
    %v1985 = vpop.permute.xlu0 %1984
    %1986 = vrot.lane.b32.xlu0 %v1809, 64
    %v1987 = vpop.permute.xlu0 %1986
    %v1988 = vsel %vm174, %v1985, 0
    %v1990 = vsel %vm174, %v1987, 0
    %1992 = vmatprep.subr.mxu0 0.0
    %1993 = vmatpush1.xpose.msra.mxu0 %v1990
    %1994 = vmatprep.subr.mxu0 0.0
    %1995 = vmatpush1.xpose.msra.mxu0 0.0
    %1996 = vmatprep.subr.mxu0 0.0
    %1997 = vmatpush1.xpose.msra.mxu0 0.0
    %1998 = vmatprep.subr.mxu0 0.0
    %1999 = vmatpush1.xpose.msra.mxu0 0.0
    %2000 = vmatprep.subr.mxu0 0.0
    %2001 = vmatpush1.xpose.msra.mxu0 0.0
    %2002 = vmatprep.subr.mxu0 0.0
    %2003 = vmatpush1.xpose.msra.mxu0 0.0
    %2004 = vmatprep.subr.mxu0 0.0
    %2005 = vmatpush1.xpose.msra.mxu0 0.0
    %2006 = vmatprep.subr.mxu0 0.0
    %2007 = vmatpush1.xpose.msra.mxu0 0.0
    %2008 = vmatprep.subr.mxu0 0.0
    %2009 = vmatpush1.xpose.msra.mxu0 0.0
    %2010 = vmatprep.subr.mxu0 0.0
    %2011 = vmatpush1.xpose.msra.mxu0 0.0
    %2012 = vmatprep.subr.mxu0 0.0
    %2013 = vmatpush1.xpose.msra.mxu0 0.0
    %2014 = vmatprep.subr.mxu0 0.0
    %2015 = vmatpush1.xpose.msra.mxu0 0.0
    %2016 = vmatprep.subr.mxu0 0.0
    %2017 = vmatpush1.xpose.msra.mxu0 0.0
    %2018 = vmatprep.subr.mxu0 0.0
    %2019 = vmatpush1.xpose.msra.mxu0 0.0
    %2020 = vmatprep.subr.mxu0 0.0
    %2021 = vmatpush1.xpose.msra.mxu0 0.0
    %2022 = vmatprep.subr.mxu0 0.0
    %2023 = vmatpush1.xpose.msra.mxu0 0.0
    %2024 = vmatprep.subr.mxu0 0.0
    %2025 = vmatpush1.xpose.msra.mxu0 0.0
    %2026 = vmatprep.subr.mxu0 0.0
    %2027 = vmatpush1.xpose.msra.mxu0 0.0
    %2028 = vmatprep.subr.mxu0 0.0
    %2029 = vmatpush1.xpose.msra.mxu0 0.0
    %2030 = vmatprep.subr.mxu0 0.0
    %2031 = vmatpush1.xpose.msra.mxu0 0.0
    %2032 = vmatprep.subr.mxu0 0.0
    %2033 = vmatpush1.xpose.msra.mxu0 0.0
    %2034 = vmatprep.subr.mxu0 0.0
    %2035 = vmatpush1.xpose.msra.mxu0 0.0
    %2036 = vmatprep.subr.mxu0 0.0
    %2037 = vmatpush1.xpose.msra.mxu0 0.0
    %2038 = vmatprep.subr.mxu0 0.0
    %2039 = vmatpush1.xpose.msra.mxu0 0.0
    %2040 = vmatprep.subr.mxu0 0.0
    %2041 = vmatpush1.xpose.msra.mxu0 0.0
    %2042 = vmatprep.subr.mxu0 0.0
    %2043 = vmatpush1.xpose.msra.mxu0 0.0
    %2044 = vmatprep.subr.mxu0 0.0
    %2045 = vmatpush1.xpose.msra.mxu0 0.0
    %2046 = vmatprep.subr.mxu0 0.0
    %2047 = vmatpush1.xpose.msra.mxu0 0.0
    %2048 = vmatprep.subr.mxu0 0.0
    %2049 = vmatpush1.xpose.msra.mxu0 0.0
    %2050 = vmatprep.subr.mxu0 0.0
    %2051 = vmatpush1.xpose.msra.mxu0 0.0
    %2052 = vmatprep.subr.mxu0 0.0
    %2053 = vmatpush1.xpose.msra.mxu0 0.0
    %2054 = vmatprep.subr.mxu0 0.0
    %2055 = vmatpush1.xpose.msra.mxu0 0.0
    %2056 = vmatprep.mubr.f32.mxu0 0.0
    %2057 = vmatmul.mubr.f32.gmra.mrb[0].mxu0 %v1988
    %v2058 = vpop.f32.mrb[0].mxu0
    %v2059 = vadd.f32 0.0, %v2058
    %v2060 = vpop.f32.mrb[0].mxu0
    %2061 = vdwg.mxu0
    %v2062 = vmul.f32 %v2059, 0.25
    %v2063 = vadd.f32 %v2062, %v253
    %v2064 = vsel %vm255, %v2063, -inf
    %2065 = vmax.xlane.f32.xlu0 %v2064
    %v2066 = vpop.xlane.xlu0 %2065
    %v2067 = vsub.f32 %v2063, %v2066
    %v2068 = vmul.f32 %v2067, 1.442695
    %v2069 = vpow.pop %v2068
    %v2070 = vsel %vm255, %v2069, 0.0
    %2071 = vadd.xlane.f32.xlu0 %v2070
    %v2072 = vpop.xlane.xlu0 %2071
    %v2073 = vrcp.pop %v2072
    %v2074 = vmul.f32 %v2069, %v2073
    %2075 = vrot.lane.b32.xlu0 %v1809, 16
    %v2076 = vpop.permute.xlu0 %2075
    %v2079 = vsel %vm255, %v2074, 0
    %2081 = vmatprep.subr.mxu0 0.0
    %2082 = vmatpush1.msra.mxu0 %v2076
    %2083 = vmatprep.subr.mxu0 0.0
    %2084 = vmatpush1.msra.mxu0 0.0
    %2085 = vmatprep.subr.mxu0 0.0
    %2086 = vmatpush1.msra.mxu0 0.0
    %2087 = vmatprep.subr.mxu0 0.0
    %2088 = vmatpush1.msra.mxu0 0.0
    %2089 = vmatprep.subr.mxu0 0.0
    %2090 = vmatpush1.msra.mxu0 0.0
    %2091 = vmatprep.subr.mxu0 0.0
    %2092 = vmatpush1.msra.mxu0 0.0
    %2093 = vmatprep.subr.mxu0 0.0
    %2094 = vmatpush1.msra.mxu0 0.0
    %2095 = vmatprep.subr.mxu0 0.0
    %2096 = vmatpush1.msra.mxu0 0.0
    %2097 = vmatprep.subr.mxu0 0.0
    %2098 = vmatpush1.msra.mxu0 0.0
    %2099 = vmatprep.subr.mxu0 0.0
    %2100 = vmatpush1.msra.mxu0 0.0
    %2101 = vmatprep.subr.mxu0 0.0
    %2102 = vmatpush1.msra.mxu0 0.0
    %2103 = vmatprep.subr.mxu0 0.0
    %2104 = vmatpush1.msra.mxu0 0.0
    %2105 = vmatprep.subr.mxu0 0.0
    %2106 = vmatpush1.msra.mxu0 0.0
    %2107 = vmatprep.subr.mxu0 0.0
    %2108 = vmatpush1.msra.mxu0 0.0
    %2109 = vmatprep.subr.mxu0 0.0
    %2110 = vmatpush1.msra.mxu0 0.0
    %2111 = vmatprep.subr.mxu0 0.0
    %2112 = vmatpush1.msra.mxu0 0.0
    %2113 = vmatprep.subr.mxu0 0.0
    %2114 = vmatpush1.msra.mxu0 0.0
    %2115 = vmatprep.subr.mxu0 0.0
    %2116 = vmatpush1.msra.mxu0 0.0
    %2117 = vmatprep.subr.mxu0 0.0
    %2118 = vmatpush1.msra.mxu0 0.0
    %2119 = vmatprep.subr.mxu0 0.0
    %2120 = vmatpush1.msra.mxu0 0.0
    %2121 = vmatprep.subr.mxu0 0.0
    %2122 = vmatpush1.msra.mxu0 0.0
    %2123 = vmatprep.subr.mxu0 0.0
    %2124 = vmatpush1.msra.mxu0 0.0
    %2125 = vmatprep.subr.mxu0 0.0
    %2126 = vmatpush1.msra.mxu0 0.0
    %2127 = vmatprep.subr.mxu0 0.0
    %2128 = vmatpush1.msra.mxu0 0.0
    %2129 = vmatprep.subr.mxu0 0.0
    %2130 = vmatpush1.msra.mxu0 0.0
    %2131 = vmatprep.subr.mxu0 0.0
    %2132 = vmatpush1.msra.mxu0 0.0
    %2133 = vmatprep.subr.mxu0 0.0
    %2134 = vmatpush1.msra.mxu0 0.0
    %2135 = vmatprep.subr.mxu0 0.0
    %2136 = vmatpush1.msra.mxu0 0.0
    %2137 = vmatprep.subr.mxu0 0.0
    %2138 = vmatpush1.msra.mxu0 0.0
    %2139 = vmatprep.subr.mxu0 0.0
    %2140 = vmatpush1.msra.mxu0 0.0
    %2141 = vmatprep.subr.mxu0 0.0
    %2142 = vmatpush1.msra.mxu0 0.0
    %2143 = vmatprep.subr.mxu0 0.0
    %2144 = vmatpush1.msra.mxu0 0.0
    %2145 = vmatprep.mubr.f32.mxu0 0.0
    %2146 = vmatmul.mubr.f32.gmra.mrb[0].mxu0 %v2079
    %v2147 = vpop.f32.mrb[0].mxu0
    %v2148 = vadd.f32 0.0, %v2147
    %v2149 = vpop.f32.mrb[0].mxu0
    %2150 = vdwg.mxu0
    %v2151 = vpack.c.bf16 %v2148, %v2148
    %v2154 = vunpack.c.l.b16 %v1704
    %v2155 = vunpack.c.l.b16 %v1705
    %v2156 = vpack.c.b16 %v2155, %v2154
    %v2159 = vsel %vm174, %v2151, 0
    %2161 = vmatprep.subr.bf16.mxu0 0
    %2162 = vmatpush1.bf16.msra.mxu0 %v2156
    %2163 = vmatprep.subr.bf16.mxu0 0
    %2164 = vmatpush1.bf16.msra.mxu0 0
    %2165 = vmatprep.subr.bf16.mxu0 0
    %2166 = vmatpush1.bf16.msra.mxu0 0
    %2167 = vmatprep.subr.bf16.mxu0 0
    %2168 = vmatpush1.bf16.msra.mxu0 0
    %2169 = vmatprep.subr.bf16.mxu0 0
    %2170 = vmatpush1.bf16.msra.mxu0 0
    %2171 = vmatprep.subr.bf16.mxu0 0
    %2172 = vmatpush1.bf16.msra.mxu0 0
    %2173 = vmatprep.subr.bf16.mxu0 0
    %2174 = vmatpush1.bf16.msra.mxu0 0
    %2175 = vmatprep.subr.bf16.mxu0 0
    %2176 = vmatpush1.bf16.msra.mxu0 0
    %2177 = vmatprep.subr.bf16.mxu0 0
    %2178 = vmatpush1.bf16.msra.mxu0 0
    %2179 = vmatprep.subr.bf16.mxu0 0
    %2180 = vmatpush1.bf16.msra.mxu0 0
    %2181 = vmatprep.subr.bf16.mxu0 0
    %2182 = vmatpush1.bf16.msra.mxu0 0
    %2183 = vmatprep.subr.bf16.mxu0 0
    %2184 = vmatpush1.bf16.msra.mxu0 0
    %2185 = vmatprep.subr.bf16.mxu0 0
    %2186 = vmatpush1.bf16.msra.mxu0 0
    %2187 = vmatprep.subr.bf16.mxu0 0
    %2188 = vmatpush1.bf16.msra.mxu0 0
    %2189 = vmatprep.subr.bf16.mxu0 0
    %2190 = vmatpush1.bf16.msra.mxu0 0
    %2191 = vmatprep.subr.bf16.mxu0 0
    %2192 = vmatpush1.bf16.msra.mxu0 0
    %2193 = vmatprep.mubr.bf16.mxu0 0
    %2194 = vmatmul.mubr.bf16.gmra.mrb[0].mxu0 %v2159
    %v2195 = vpop.f32.mrb[0].mxu0
    %v2196 = vadd.f32 0.0, %v2195
    %v2197 = vpop.f32.mrb[0].mxu0
    %v2198 = vpop.f32.mrb[0].mxu0
    %v2199 = vpop.f32.mrb[0].mxu0
    %2200 = vdwg.mxu0
    %v2203 = vunpack.c.l.b16 %v1702
    %v2204 = vunpack.c.l.b16 %v1703
    %v2205 = vpack.c.b16 %v2204, %v2203
    %v2208 = vsel %vm174, %v1983, 0
    %2210 = vmatprep.subr.bf16.mxu0 0
    %2211 = vmatpush1.bf16.msra.mxu0 %v2205
    %2212 = vmatprep.subr.bf16.mxu0 0
    %2213 = vmatpush1.bf16.msra.mxu0 0
    %2214 = vmatprep.subr.bf16.mxu0 0
    %2215 = vmatpush1.bf16.msra.mxu0 0
    %2216 = vmatprep.subr.bf16.mxu0 0
    %2217 = vmatpush1.bf16.msra.mxu0 0
    %2218 = vmatprep.subr.bf16.mxu0 0
    %2219 = vmatpush1.bf16.msra.mxu0 0
    %2220 = vmatprep.subr.bf16.mxu0 0
    %2221 = vmatpush1.bf16.msra.mxu0 0
    %2222 = vmatprep.subr.bf16.mxu0 0
    %2223 = vmatpush1.bf16.msra.mxu0 0
    %2224 = vmatprep.subr.bf16.mxu0 0
    %2225 = vmatpush1.bf16.msra.mxu0 0
    %2226 = vmatprep.subr.bf16.mxu0 0
    %2227 = vmatpush1.bf16.msra.mxu0 0
    %2228 = vmatprep.subr.bf16.mxu0 0
    %2229 = vmatpush1.bf16.msra.mxu0 0
    %2230 = vmatprep.subr.bf16.mxu0 0
    %2231 = vmatpush1.bf16.msra.mxu0 0
    %2232 = vmatprep.subr.bf16.mxu0 0
    %2233 = vmatpush1.bf16.msra.mxu0 0
    %2234 = vmatprep.subr.bf16.mxu0 0
    %2235 = vmatpush1.bf16.msra.mxu0 0
    %2236 = vmatprep.subr.bf16.mxu0 0
    %2237 = vmatpush1.bf16.msra.mxu0 0
    %2238 = vmatprep.subr.bf16.mxu0 0
    %2239 = vmatpush1.bf16.msra.mxu0 0
    %2240 = vmatprep.subr.bf16.mxu0 0
    %2241 = vmatpush1.bf16.msra.mxu0 0
    %2242 = vmatprep.mubr.bf16.mxu0 0
    %2243 = vmatmul.mubr.bf16.gmra.mrb[0].mxu0 %v2208
    %v2244 = vpop.f32.mrb[0].mxu0
    %v2245 = vadd.f32 %v2196, %v2244
    %v2246 = vpop.f32.mrb[0].mxu0
    %v2247 = vpop.f32.mrb[0].mxu0
    %v2248 = vpop.f32.mrb[0].mxu0
    %2249 = vdwg.mxu0
    %2250 = vrot.lane.b32.xlu0 %v1809, 96
    %v2251 = vpop.permute.xlu0 %2250
    %2252 = vrot.lane.b32.xlu0 %v1809, 48
    %v2253 = vpop.permute.xlu0 %2252
    %v2254 = vsel %vm174, %v2251, 0
    %v2256 = vsel %vm174, %v2253, 0
    %2258 = vmatprep.subr.mxu0 0.0
    %2259 = vmatpush1.xpose.msra.mxu0 %v2256
    %2260 = vmatprep.subr.mxu0 0.0
    %2261 = vmatpush1.xpose.msra.mxu0 0.0
    %2262 = vmatprep.subr.mxu0 0.0
    %2263 = vmatpush1.xpose.msra.mxu0 0.0
    %2264 = vmatprep.subr.mxu0 0.0
    %2265 = vmatpush1.xpose.msra.mxu0 0.0
    %2266 = vmatprep.subr.mxu0 0.0
    %2267 = vmatpush1.xpose.msra.mxu0 0.0
    %2268 = vmatprep.subr.mxu0 0.0
    %2269 = vmatpush1.xpose.msra.mxu0 0.0
    %2270 = vmatprep.subr.mxu0 0.0
    %2271 = vmatpush1.xpose.msra.mxu0 0.0
    %2272 = vmatprep.subr.mxu0 0.0
    %2273 = vmatpush1.xpose.msra.mxu0 0.0
    %2274 = vmatprep.subr.mxu0 0.0
    %2275 = vmatpush1.xpose.msra.mxu0 0.0
    %2276 = vmatprep.subr.mxu0 0.0
    %2277 = vmatpush1.xpose.msra.mxu0 0.0
    %2278 = vmatprep.subr.mxu0 0.0
    %2279 = vmatpush1.xpose.msra.mxu0 0.0
    %2280 = vmatprep.subr.mxu0 0.0
    %2281 = vmatpush1.xpose.msra.mxu0 0.0
    %2282 = vmatprep.subr.mxu0 0.0
    %2283 = vmatpush1.xpose.msra.mxu0 0.0
    %2284 = vmatprep.subr.mxu0 0.0
    %2285 = vmatpush1.xpose.msra.mxu0 0.0
    %2286 = vmatprep.subr.mxu0 0.0
    %2287 = vmatpush1.xpose.msra.mxu0 0.0
    %2288 = vmatprep.subr.mxu0 0.0
    %2289 = vmatpush1.xpose.msra.mxu0 0.0
    %2290 = vmatprep.subr.mxu0 0.0
    %2291 = vmatpush1.xpose.msra.mxu0 0.0
    %2292 = vmatprep.subr.mxu0 0.0
    %2293 = vmatpush1.xpose.msra.mxu0 0.0
    %2294 = vmatprep.subr.mxu0 0.0
    %2295 = vmatpush1.xpose.msra.mxu0 0.0
    %2296 = vmatprep.subr.mxu0 0.0
    %2297 = vmatpush1.xpose.msra.mxu0 0.0
    %2298 = vmatprep.subr.mxu0 0.0
    %2299 = vmatpush1.xpose.msra.mxu0 0.0
    %2300 = vmatprep.subr.mxu0 0.0
    %2301 = vmatpush1.xpose.msra.mxu0 0.0
    %2302 = vmatprep.subr.mxu0 0.0
    %2303 = vmatpush1.xpose.msra.mxu0 0.0
    %2304 = vmatprep.subr.mxu0 0.0
    %2305 = vmatpush1.xpose.msra.mxu0 0.0
    %2306 = vmatprep.subr.mxu0 0.0
    %2307 = vmatpush1.xpose.msra.mxu0 0.0
    %2308 = vmatprep.subr.mxu0 0.0
    %2309 = vmatpush1.xpose.msra.mxu0 0.0
    %2310 = vmatprep.subr.mxu0 0.0
    %2311 = vmatpush1.xpose.msra.mxu0 0.0
    %2312 = vmatprep.subr.mxu0 0.0
    %2313 = vmatpush1.xpose.msra.mxu0 0.0
    %2314 = vmatprep.subr.mxu0 0.0
    %2315 = vmatpush1.xpose.msra.mxu0 0.0
    %2316 = vmatprep.subr.mxu0 0.0
    %2317 = vmatpush1.xpose.msra.mxu0 0.0
    %2318 = vmatprep.subr.mxu0 0.0
    %2319 = vmatpush1.xpose.msra.mxu0 0.0
    %2320 = vmatprep.subr.mxu0 0.0
    %2321 = vmatpush1.xpose.msra.mxu0 0.0
    %2322 = vmatprep.mubr.f32.mxu0 0.0
    %2323 = vmatmul.mubr.f32.gmra.mrb[0].mxu0 %v2254
    %v2324 = vpop.f32.mrb[0].mxu0
    %v2325 = vadd.f32 0.0, %v2324
    %v2326 = vpop.f32.mrb[0].mxu0
    %2327 = vdwg.mxu0
    %v2328 = vmul.f32 %v2325, 0.25
    %v2329 = vadd.f32 %v2328, %v253
    %v2330 = vsel %vm255, %v2329, -inf
    %2331 = vmax.xlane.f32.xlu0 %v2330
    %v2332 = vpop.xlane.xlu0 %2331
    %v2333 = vsub.f32 %v2329, %v2332
    %v2334 = vmul.f32 %v2333, 1.442695
    %v2335 = vpow.pop %v2334
    %v2336 = vsel %vm255, %v2335, 0.0
    %2337 = vadd.xlane.f32.xlu0 %v2336
    %v2338 = vpop.xlane.xlu0 %2337
    %v2339 = vrcp.pop %v2338
    %v2340 = vmul.f32 %v2335, %v2339
    %v2342 = vsel %vm255, %v2340, 0
    %2344 = vmatprep.subr.mxu0 0.0
    %2345 = vmatpush1.msra.mxu0 %v1811
    %2346 = vmatprep.subr.mxu0 0.0
    %2347 = vmatpush1.msra.mxu0 0.0
    %2348 = vmatprep.subr.mxu0 0.0
    %2349 = vmatpush1.msra.mxu0 0.0
    %2350 = vmatprep.subr.mxu0 0.0
    %2351 = vmatpush1.msra.mxu0 0.0
    %2352 = vmatprep.subr.mxu0 0.0
    %2353 = vmatpush1.msra.mxu0 0.0
    %2354 = vmatprep.subr.mxu0 0.0
    %2355 = vmatpush1.msra.mxu0 0.0
    %2356 = vmatprep.subr.mxu0 0.0
    %2357 = vmatpush1.msra.mxu0 0.0
    %2358 = vmatprep.subr.mxu0 0.0
    %2359 = vmatpush1.msra.mxu0 0.0
    %2360 = vmatprep.subr.mxu0 0.0
    %2361 = vmatpush1.msra.mxu0 0.0
    %2362 = vmatprep.subr.mxu0 0.0
    %2363 = vmatpush1.msra.mxu0 0.0
    %2364 = vmatprep.subr.mxu0 0.0
    %2365 = vmatpush1.msra.mxu0 0.0
    %2366 = vmatprep.subr.mxu0 0.0
    %2367 = vmatpush1.msra.mxu0 0.0
    %2368 = vmatprep.subr.mxu0 0.0
    %2369 = vmatpush1.msra.mxu0 0.0
    %2370 = vmatprep.subr.mxu0 0.0
    %2371 = vmatpush1.msra.mxu0 0.0
    %2372 = vmatprep.subr.mxu0 0.0
    %2373 = vmatpush1.msra.mxu0 0.0
    %2374 = vmatprep.subr.mxu0 0.0
    %2375 = vmatpush1.msra.mxu0 0.0
    %2376 = vmatprep.subr.mxu0 0.0
    %2377 = vmatpush1.msra.mxu0 0.0
    %2378 = vmatprep.subr.mxu0 0.0
    %2379 = vmatpush1.msra.mxu0 0.0
    %2380 = vmatprep.subr.mxu0 0.0
    %2381 = vmatpush1.msra.mxu0 0.0
    %2382 = vmatprep.subr.mxu0 0.0
    %2383 = vmatpush1.msra.mxu0 0.0
    %2384 = vmatprep.subr.mxu0 0.0
    %2385 = vmatpush1.msra.mxu0 0.0
    %2386 = vmatprep.subr.mxu0 0.0
    %2387 = vmatpush1.msra.mxu0 0.0
    %2388 = vmatprep.subr.mxu0 0.0
    %2389 = vmatpush1.msra.mxu0 0.0
    %2390 = vmatprep.subr.mxu0 0.0
    %2391 = vmatpush1.msra.mxu0 0.0
    %2392 = vmatprep.subr.mxu0 0.0
    %2393 = vmatpush1.msra.mxu0 0.0
    %2394 = vmatprep.subr.mxu0 0.0
    %2395 = vmatpush1.msra.mxu0 0.0
    %2396 = vmatprep.subr.mxu0 0.0
    %2397 = vmatpush1.msra.mxu0 0.0
    %2398 = vmatprep.subr.mxu0 0.0
    %2399 = vmatpush1.msra.mxu0 0.0
    %2400 = vmatprep.subr.mxu0 0.0
    %2401 = vmatpush1.msra.mxu0 0.0
    %2402 = vmatprep.subr.mxu0 0.0
    %2403 = vmatpush1.msra.mxu0 0.0
    %2404 = vmatprep.subr.mxu0 0.0
    %2405 = vmatpush1.msra.mxu0 0.0
    %2406 = vmatprep.subr.mxu0 0.0
    %2407 = vmatpush1.msra.mxu0 0.0
    %2408 = vmatprep.mubr.f32.mxu0 0.0
    %2409 = vmatmul.mubr.f32.gmra.mrb[0].mxu0 %v2342
    %v2410 = vpop.f32.mrb[0].mxu0
    %v2411 = vadd.f32 0.0, %v2410
    %v2412 = vpop.f32.mrb[0].mxu0
    %2413 = vdwg.mxu0
    %v2414 = vpack.c.bf16 %v2411, %v2411
    %v2417 = vunpack.c.l.b16 %v1706
    %v2418 = vunpack.c.l.b16 %v1707
    %v2419 = vpack.c.b16 %v2418, %v2417
    %v2422 = vsel %vm174, %v2414, 0
    %2424 = vmatprep.subr.bf16.mxu0 0
    %2425 = vmatpush1.bf16.msra.mxu0 %v2419
    %2426 = vmatprep.subr.bf16.mxu0 0
    %2427 = vmatpush1.bf16.msra.mxu0 0
    %2428 = vmatprep.subr.bf16.mxu0 0
    %2429 = vmatpush1.bf16.msra.mxu0 0
    %2430 = vmatprep.subr.bf16.mxu0 0
    %2431 = vmatpush1.bf16.msra.mxu0 0
    %2432 = vmatprep.subr.bf16.mxu0 0
    %2433 = vmatpush1.bf16.msra.mxu0 0
    %2434 = vmatprep.subr.bf16.mxu0 0
    %2435 = vmatpush1.bf16.msra.mxu0 0
    %2436 = vmatprep.subr.bf16.mxu0 0
    %2437 = vmatpush1.bf16.msra.mxu0 0
    %2438 = vmatprep.subr.bf16.mxu0 0
    %2439 = vmatpush1.bf16.msra.mxu0 0
    %2440 = vmatprep.subr.bf16.mxu0 0
    %2441 = vmatpush1.bf16.msra.mxu0 0
    %2442 = vmatprep.subr.bf16.mxu0 0
    %2443 = vmatpush1.bf16.msra.mxu0 0
    %2444 = vmatprep.subr.bf16.mxu0 0
    %2445 = vmatpush1.bf16.msra.mxu0 0
    %2446 = vmatprep.subr.bf16.mxu0 0
    %2447 = vmatpush1.bf16.msra.mxu0 0
    %2448 = vmatprep.subr.bf16.mxu0 0
    %2449 = vmatpush1.bf16.msra.mxu0 0
    %2450 = vmatprep.subr.bf16.mxu0 0
    %2451 = vmatpush1.bf16.msra.mxu0 0
    %2452 = vmatprep.subr.bf16.mxu0 0
    %2453 = vmatpush1.bf16.msra.mxu0 0
    %2454 = vmatprep.subr.bf16.mxu0 0
    %2455 = vmatpush1.bf16.msra.mxu0 0
    %2456 = vmatprep.mubr.bf16.mxu0 0
    %2457 = vmatmul.mubr.bf16.gmra.mrb[0].mxu0 %v2422
    %v2458 = vpop.f32.mrb[0].mxu0
    %v2459 = vadd.f32 0.0, %v2458
    %v2460 = vpop.f32.mrb[0].mxu0
    %v2461 = vpop.f32.mrb[0].mxu0
    %v2462 = vpop.f32.mrb[0].mxu0
    %2463 = vdwg.mxu0
    %v2464 = vadd.f32 %v2245, %v2459
    %2466 = vrot.lane.b32.xlu0 %v1813, 80
    %v2467 = vpop.permute.xlu0 %2466
    %v2468 = vsel %vm174, %v1813, 0
    %v2470 = vsel %vm174, %v2467, 0
    %2472 = vmatprep.subr.mxu0 0.0
    %2473 = vmatpush1.xpose.msra.mxu0 %v2470
    %2474 = vmatprep.subr.mxu0 0.0
    %2475 = vmatpush1.xpose.msra.mxu0 0.0
    %2476 = vmatprep.subr.mxu0 0.0
    %2477 = vmatpush1.xpose.msra.mxu0 0.0
    %2478 = vmatprep.subr.mxu0 0.0
    %2479 = vmatpush1.xpose.msra.mxu0 0.0
    %2480 = vmatprep.subr.mxu0 0.0
    %2481 = vmatpush1.xpose.msra.mxu0 0.0
    %2482 = vmatprep.subr.mxu0 0.0
    %2483 = vmatpush1.xpose.msra.mxu0 0.0
    %2484 = vmatprep.subr.mxu0 0.0
    %2485 = vmatpush1.xpose.msra.mxu0 0.0
    %2486 = vmatprep.subr.mxu0 0.0
    %2487 = vmatpush1.xpose.msra.mxu0 0.0
    %2488 = vmatprep.subr.mxu0 0.0
    %2489 = vmatpush1.xpose.msra.mxu0 0.0
    %2490 = vmatprep.subr.mxu0 0.0
    %2491 = vmatpush1.xpose.msra.mxu0 0.0
    %2492 = vmatprep.subr.mxu0 0.0
    %2493 = vmatpush1.xpose.msra.mxu0 0.0
    %2494 = vmatprep.subr.mxu0 0.0
    %2495 = vmatpush1.xpose.msra.mxu0 0.0
    %2496 = vmatprep.subr.mxu0 0.0
    %2497 = vmatpush1.xpose.msra.mxu0 0.0
    %2498 = vmatprep.subr.mxu0 0.0
    %2499 = vmatpush1.xpose.msra.mxu0 0.0
    %2500 = vmatprep.subr.mxu0 0.0
    %2501 = vmatpush1.xpose.msra.mxu0 0.0
    %2502 = vmatprep.subr.mxu0 0.0
    %2503 = vmatpush1.xpose.msra.mxu0 0.0
    %2504 = vmatprep.subr.mxu0 0.0
    %2505 = vmatpush1.xpose.msra.mxu0 0.0
    %2506 = vmatprep.subr.mxu0 0.0
    %2507 = vmatpush1.xpose.msra.mxu0 0.0
    %2508 = vmatprep.subr.mxu0 0.0
    %2509 = vmatpush1.xpose.msra.mxu0 0.0
    %2510 = vmatprep.subr.mxu0 0.0
    %2511 = vmatpush1.xpose.msra.mxu0 0.0
    %2512 = vmatprep.subr.mxu0 0.0
    %2513 = vmatpush1.xpose.msra.mxu0 0.0
    %2514 = vmatprep.subr.mxu0 0.0
    %2515 = vmatpush1.xpose.msra.mxu0 0.0
    %2516 = vmatprep.subr.mxu0 0.0
    %2517 = vmatpush1.xpose.msra.mxu0 0.0
    %2518 = vmatprep.subr.mxu0 0.0
    %2519 = vmatpush1.xpose.msra.mxu0 0.0
    %2520 = vmatprep.subr.mxu0 0.0
    %2521 = vmatpush1.xpose.msra.mxu0 0.0
    %2522 = vmatprep.subr.mxu0 0.0
    %2523 = vmatpush1.xpose.msra.mxu0 0.0
    %2524 = vmatprep.subr.mxu0 0.0
    %2525 = vmatpush1.xpose.msra.mxu0 0.0
    %2526 = vmatprep.subr.mxu0 0.0
    %2527 = vmatpush1.xpose.msra.mxu0 0.0
    %2528 = vmatprep.subr.mxu0 0.0
    %2529 = vmatpush1.xpose.msra.mxu0 0.0
    %2530 = vmatprep.subr.mxu0 0.0
    %2531 = vmatpush1.xpose.msra.mxu0 0.0
    %2532 = vmatprep.subr.mxu0 0.0
    %2533 = vmatpush1.xpose.msra.mxu0 0.0
    %2534 = vmatprep.subr.mxu0 0.0
    %2535 = vmatpush1.xpose.msra.mxu0 0.0
    %2536 = vmatprep.mubr.f32.mxu0 0.0
    %2537 = vmatmul.mubr.f32.gmra.mrb[0].mxu0 %v2468
    %v2538 = vpop.f32.mrb[0].mxu0
    %v2539 = vadd.f32 0.0, %v2538
    %v2540 = vpop.f32.mrb[0].mxu0
    %2541 = vdwg.mxu0
    %v2542 = vmul.f32 %v2539, 0.25
    %v2543 = vadd.f32 %v2542, %v906
    %v2544 = vsel %vm255, %v2543, -inf
    %2545 = vmax.xlane.f32.xlu0 %v2544
    %v2546 = vpop.xlane.xlu0 %2545
    %v2547 = vsub.f32 %v2543, %v2546
    %v2548 = vmul.f32 %v2547, 1.442695
    %v2549 = vpow.pop %v2548
    %v2550 = vsel %vm255, %v2549, 0.0
    %2551 = vadd.xlane.f32.xlu0 %v2550
    %v2552 = vpop.xlane.xlu0 %2551
    %v2553 = vrcp.pop %v2552
    %v2554 = vmul.f32 %v2549, %v2553
    %2555 = vrot.lane.b32.xlu0 %v1813, 32
    %v2556 = vpop.permute.xlu0 %2555
    %v2559 = vsel %vm255, %v2554, 0
    %2561 = vmatprep.subr.mxu0 0.0
    %2562 = vmatpush1.msra.mxu0 %v2556
    %2563 = vmatprep.subr.mxu0 0.0
    %2564 = vmatpush1.msra.mxu0 0.0
    %2565 = vmatprep.subr.mxu0 0.0
    %2566 = vmatpush1.msra.mxu0 0.0
    %2567 = vmatprep.subr.mxu0 0.0
    %2568 = vmatpush1.msra.mxu0 0.0
    %2569 = vmatprep.subr.mxu0 0.0
    %2570 = vmatpush1.msra.mxu0 0.0
    %2571 = vmatprep.subr.mxu0 0.0
    %2572 = vmatpush1.msra.mxu0 0.0
    %2573 = vmatprep.subr.mxu0 0.0
    %2574 = vmatpush1.msra.mxu0 0.0
    %2575 = vmatprep.subr.mxu0 0.0
    %2576 = vmatpush1.msra.mxu0 0.0
    %2577 = vmatprep.subr.mxu0 0.0
    %2578 = vmatpush1.msra.mxu0 0.0
    %2579 = vmatprep.subr.mxu0 0.0
    %2580 = vmatpush1.msra.mxu0 0.0
    %2581 = vmatprep.subr.mxu0 0.0
    %2582 = vmatpush1.msra.mxu0 0.0
    %2583 = vmatprep.subr.mxu0 0.0
    %2584 = vmatpush1.msra.mxu0 0.0
    %2585 = vmatprep.subr.mxu0 0.0
    %2586 = vmatpush1.msra.mxu0 0.0
    %2587 = vmatprep.subr.mxu0 0.0
    %2588 = vmatpush1.msra.mxu0 0.0
    %2589 = vmatprep.subr.mxu0 0.0
    %2590 = vmatpush1.msra.mxu0 0.0
    %2591 = vmatprep.subr.mxu0 0.0
    %2592 = vmatpush1.msra.mxu0 0.0
    %2593 = vmatprep.subr.mxu0 0.0
    %2594 = vmatpush1.msra.mxu0 0.0
    %2595 = vmatprep.subr.mxu0 0.0
    %2596 = vmatpush1.msra.mxu0 0.0
    %2597 = vmatprep.subr.mxu0 0.0
    %2598 = vmatpush1.msra.mxu0 0.0
    %2599 = vmatprep.subr.mxu0 0.0
    %2600 = vmatpush1.msra.mxu0 0.0
    %2601 = vmatprep.subr.mxu0 0.0
    %2602 = vmatpush1.msra.mxu0 0.0
    %2603 = vmatprep.subr.mxu0 0.0
    %2604 = vmatpush1.msra.mxu0 0.0
    %2605 = vmatprep.subr.mxu0 0.0
    %2606 = vmatpush1.msra.mxu0 0.0
    %2607 = vmatprep.subr.mxu0 0.0
    %2608 = vmatpush1.msra.mxu0 0.0
    %2609 = vmatprep.subr.mxu0 0.0
    %2610 = vmatpush1.msra.mxu0 0.0
    %2611 = vmatprep.subr.mxu0 0.0
    %2612 = vmatpush1.msra.mxu0 0.0
    %2613 = vmatprep.subr.mxu0 0.0
    %2614 = vmatpush1.msra.mxu0 0.0
    %2615 = vmatprep.subr.mxu0 0.0
    %2616 = vmatpush1.msra.mxu0 0.0
    %2617 = vmatprep.subr.mxu0 0.0
    %2618 = vmatpush1.msra.mxu0 0.0
    %2619 = vmatprep.subr.mxu0 0.0
    %2620 = vmatpush1.msra.mxu0 0.0
    %2621 = vmatprep.subr.mxu0 0.0
    %2622 = vmatpush1.msra.mxu0 0.0
    %2623 = vmatprep.subr.mxu0 0.0
    %2624 = vmatpush1.msra.mxu0 0.0
    %2625 = vmatprep.mubr.f32.mxu0 0.0
    %2626 = vmatmul.mubr.f32.gmra.mrb[0].mxu0 %v2559
    %v2627 = vpop.f32.mrb[0].mxu0
    %v2628 = vadd.f32 0.0, %v2627
    %v2629 = vpop.f32.mrb[0].mxu0
    %2630 = vdwg.mxu0
    %v2631 = vpack.c.bf16 %v2628, %v2628
    %2632 = vrot.lane.b32.xlu0 %v1813, 112
    %v2633 = vpop.permute.xlu0 %2632
    %2634 = vrot.lane.b32.xlu0 %v1813, 64
    %v2635 = vpop.permute.xlu0 %2634
    %v2636 = vsel %vm174, %v2633, 0
    %v2638 = vsel %vm174, %v2635, 0
    %2640 = vmatprep.subr.mxu0 0.0
    %2641 = vmatpush1.xpose.msra.mxu0 %v2638
    %2642 = vmatprep.subr.mxu0 0.0
    %2643 = vmatpush1.xpose.msra.mxu0 0.0
    %2644 = vmatprep.subr.mxu0 0.0
    %2645 = vmatpush1.xpose.msra.mxu0 0.0
    %2646 = vmatprep.subr.mxu0 0.0
    %2647 = vmatpush1.xpose.msra.mxu0 0.0
    %2648 = vmatprep.subr.mxu0 0.0
    %2649 = vmatpush1.xpose.msra.mxu0 0.0
    %2650 = vmatprep.subr.mxu0 0.0
    %2651 = vmatpush1.xpose.msra.mxu0 0.0
    %2652 = vmatprep.subr.mxu0 0.0
    %2653 = vmatpush1.xpose.msra.mxu0 0.0
    %2654 = vmatprep.subr.mxu0 0.0
    %2655 = vmatpush1.xpose.msra.mxu0 0.0
    %2656 = vmatprep.subr.mxu0 0.0
    %2657 = vmatpush1.xpose.msra.mxu0 0.0
    %2658 = vmatprep.subr.mxu0 0.0
    %2659 = vmatpush1.xpose.msra.mxu0 0.0
    %2660 = vmatprep.subr.mxu0 0.0
    %2661 = vmatpush1.xpose.msra.mxu0 0.0
    %2662 = vmatprep.subr.mxu0 0.0
    %2663 = vmatpush1.xpose.msra.mxu0 0.0
    %2664 = vmatprep.subr.mxu0 0.0
    %2665 = vmatpush1.xpose.msra.mxu0 0.0
    %2666 = vmatprep.subr.mxu0 0.0
    %2667 = vmatpush1.xpose.msra.mxu0 0.0
    %2668 = vmatprep.subr.mxu0 0.0
    %2669 = vmatpush1.xpose.msra.mxu0 0.0
    %2670 = vmatprep.subr.mxu0 0.0
    %2671 = vmatpush1.xpose.msra.mxu0 0.0
    %2672 = vmatprep.subr.mxu0 0.0
    %2673 = vmatpush1.xpose.msra.mxu0 0.0
    %2674 = vmatprep.subr.mxu0 0.0
    %2675 = vmatpush1.xpose.msra.mxu0 0.0
    %2676 = vmatprep.subr.mxu0 0.0
    %2677 = vmatpush1.xpose.msra.mxu0 0.0
    %2678 = vmatprep.subr.mxu0 0.0
    %2679 = vmatpush1.xpose.msra.mxu0 0.0
    %2680 = vmatprep.subr.mxu0 0.0
    %2681 = vmatpush1.xpose.msra.mxu0 0.0
    %2682 = vmatprep.subr.mxu0 0.0
    %2683 = vmatpush1.xpose.msra.mxu0 0.0
    %2684 = vmatprep.subr.mxu0 0.0
    %2685 = vmatpush1.xpose.msra.mxu0 0.0
    %2686 = vmatprep.subr.mxu0 0.0
    %2687 = vmatpush1.xpose.msra.mxu0 0.0
    %2688 = vmatprep.subr.mxu0 0.0
    %2689 = vmatpush1.xpose.msra.mxu0 0.0
    %2690 = vmatprep.subr.mxu0 0.0
    %2691 = vmatpush1.xpose.msra.mxu0 0.0
    %2692 = vmatprep.subr.mxu0 0.0
    %2693 = vmatpush1.xpose.msra.mxu0 0.0
    %2694 = vmatprep.subr.mxu0 0.0
    %2695 = vmatpush1.xpose.msra.mxu0 0.0
    %2696 = vmatprep.subr.mxu0 0.0
    %2697 = vmatpush1.xpose.msra.mxu0 0.0
    %2698 = vmatprep.subr.mxu0 0.0
    %2699 = vmatpush1.xpose.msra.mxu0 0.0
    %2700 = vmatprep.subr.mxu0 0.0
    %2701 = vmatpush1.xpose.msra.mxu0 0.0
    %2702 = vmatprep.subr.mxu0 0.0
    %2703 = vmatpush1.xpose.msra.mxu0 0.0
    %2704 = vmatprep.mubr.f32.mxu0 0.0
    %2705 = vmatmul.mubr.f32.gmra.mrb[0].mxu0 %v2636
    %v2706 = vpop.f32.mrb[0].mxu0
    %v2707 = vadd.f32 0.0, %v2706
    %v2708 = vpop.f32.mrb[0].mxu0
    %2709 = vdwg.mxu0
    %v2710 = vmul.f32 %v2707, 0.25
    %v2711 = vadd.f32 %v2710, %v906
    %v2712 = vsel %vm255, %v2711, -inf
    %2713 = vmax.xlane.f32.xlu0 %v2712
    %v2714 = vpop.xlane.xlu0 %2713
    %v2715 = vsub.f32 %v2711, %v2714
    %v2716 = vmul.f32 %v2715, 1.442695
    %v2717 = vpow.pop %v2716
    %v2718 = vsel %vm255, %v2717, 0.0
    %2719 = vadd.xlane.f32.xlu0 %v2718
    %v2720 = vpop.xlane.xlu0 %2719
    %v2721 = vrcp.pop %v2720
    %v2722 = vmul.f32 %v2717, %v2721
    %2723 = vrot.lane.b32.xlu0 %v1813, 16
    %v2724 = vpop.permute.xlu0 %2723
    %v2727 = vsel %vm255, %v2722, 0
    %2729 = vmatprep.subr.mxu0 0.0
    %2730 = vmatpush1.msra.mxu0 %v2724
    %2731 = vmatprep.subr.mxu0 0.0
    %2732 = vmatpush1.msra.mxu0 0.0
    %2733 = vmatprep.subr.mxu0 0.0
    %2734 = vmatpush1.msra.mxu0 0.0
    %2735 = vmatprep.subr.mxu0 0.0
    %2736 = vmatpush1.msra.mxu0 0.0
    %2737 = vmatprep.subr.mxu0 0.0
    %2738 = vmatpush1.msra.mxu0 0.0
    %2739 = vmatprep.subr.mxu0 0.0
    %2740 = vmatpush1.msra.mxu0 0.0
    %2741 = vmatprep.subr.mxu0 0.0
    %2742 = vmatpush1.msra.mxu0 0.0
    %2743 = vmatprep.subr.mxu0 0.0
    %2744 = vmatpush1.msra.mxu0 0.0
    %2745 = vmatprep.subr.mxu0 0.0
    %2746 = vmatpush1.msra.mxu0 0.0
    %2747 = vmatprep.subr.mxu0 0.0
    %2748 = vmatpush1.msra.mxu0 0.0
    %2749 = vmatprep.subr.mxu0 0.0
    %2750 = vmatpush1.msra.mxu0 0.0
    %2751 = vmatprep.subr.mxu0 0.0
    %2752 = vmatpush1.msra.mxu0 0.0
    %2753 = vmatprep.subr.mxu0 0.0
    %2754 = vmatpush1.msra.mxu0 0.0
    %2755 = vmatprep.subr.mxu0 0.0
    %2756 = vmatpush1.msra.mxu0 0.0
    %2757 = vmatprep.subr.mxu0 0.0
    %2758 = vmatpush1.msra.mxu0 0.0
    %2759 = vmatprep.subr.mxu0 0.0
    %2760 = vmatpush1.msra.mxu0 0.0
    %2761 = vmatprep.subr.mxu0 0.0
    %2762 = vmatpush1.msra.mxu0 0.0
    %2763 = vmatprep.subr.mxu0 0.0
    %2764 = vmatpush1.msra.mxu0 0.0
    %2765 = vmatprep.subr.mxu0 0.0
    %2766 = vmatpush1.msra.mxu0 0.0
    %2767 = vmatprep.subr.mxu0 0.0
    %2768 = vmatpush1.msra.mxu0 0.0
    %2769 = vmatprep.subr.mxu0 0.0
    %2770 = vmatpush1.msra.mxu0 0.0
    %2771 = vmatprep.subr.mxu0 0.0
    %2772 = vmatpush1.msra.mxu0 0.0
    %2773 = vmatprep.subr.mxu0 0.0
    %2774 = vmatpush1.msra.mxu0 0.0
    %2775 = vmatprep.subr.mxu0 0.0
    %2776 = vmatpush1.msra.mxu0 0.0
    %2777 = vmatprep.subr.mxu0 0.0
    %2778 = vmatpush1.msra.mxu0 0.0
    %2779 = vmatprep.subr.mxu0 0.0
    %2780 = vmatpush1.msra.mxu0 0.0
    %2781 = vmatprep.subr.mxu0 0.0
    %2782 = vmatpush1.msra.mxu0 0.0
    %2783 = vmatprep.subr.mxu0 0.0
    %2784 = vmatpush1.msra.mxu0 0.0
    %2785 = vmatprep.subr.mxu0 0.0
    %2786 = vmatpush1.msra.mxu0 0.0
    %2787 = vmatprep.subr.mxu0 0.0
    %2788 = vmatpush1.msra.mxu0 0.0
    %2789 = vmatprep.subr.mxu0 0.0
    %2790 = vmatpush1.msra.mxu0 0.0
    %2791 = vmatprep.subr.mxu0 0.0
    %2792 = vmatpush1.msra.mxu0 0.0
    %2793 = vmatprep.mubr.f32.mxu0 0.0
    %2794 = vmatmul.mubr.f32.gmra.mrb[0].mxu0 %v2727
    %v2795 = vpop.f32.mrb[0].mxu0
    %v2796 = vadd.f32 0.0, %v2795
    %v2797 = vpop.f32.mrb[0].mxu0
    %2798 = vdwg.mxu0
    %v2799 = vpack.c.bf16 %v2796, %v2796
    %v2801 = vsel %vm174, %v2799, 0
    %2803 = vmatprep.subr.bf16.mxu0 0
    %2804 = vmatpush1.bf16.msra.mxu0 %v2156
    %2805 = vmatprep.subr.bf16.mxu0 0
    %2806 = vmatpush1.bf16.msra.mxu0 0
    %2807 = vmatprep.subr.bf16.mxu0 0
    %2808 = vmatpush1.bf16.msra.mxu0 0
    %2809 = vmatprep.subr.bf16.mxu0 0
    %2810 = vmatpush1.bf16.msra.mxu0 0
    %2811 = vmatprep.subr.bf16.mxu0 0
    %2812 = vmatpush1.bf16.msra.mxu0 0
    %2813 = vmatprep.subr.bf16.mxu0 0
    %2814 = vmatpush1.bf16.msra.mxu0 0
    %2815 = vmatprep.subr.bf16.mxu0 0
    %2816 = vmatpush1.bf16.msra.mxu0 0
    %2817 = vmatprep.subr.bf16.mxu0 0
    %2818 = vmatpush1.bf16.msra.mxu0 0
    %2819 = vmatprep.subr.bf16.mxu0 0
    %2820 = vmatpush1.bf16.msra.mxu0 0
    %2821 = vmatprep.subr.bf16.mxu0 0
    %2822 = vmatpush1.bf16.msra.mxu0 0
    %2823 = vmatprep.subr.bf16.mxu0 0
    %2824 = vmatpush1.bf16.msra.mxu0 0
    %2825 = vmatprep.subr.bf16.mxu0 0
    %2826 = vmatpush1.bf16.msra.mxu0 0
    %2827 = vmatprep.subr.bf16.mxu0 0
    %2828 = vmatpush1.bf16.msra.mxu0 0
    %2829 = vmatprep.subr.bf16.mxu0 0
    %2830 = vmatpush1.bf16.msra.mxu0 0
    %2831 = vmatprep.subr.bf16.mxu0 0
    %2832 = vmatpush1.bf16.msra.mxu0 0
    %2833 = vmatprep.subr.bf16.mxu0 0
    %2834 = vmatpush1.bf16.msra.mxu0 0
    %2835 = vmatprep.mubr.bf16.mxu0 0
    %2836 = vmatmul.mubr.bf16.gmra.mrb[0].mxu0 %v2801
    %v2837 = vpop.f32.mrb[0].mxu0
    %v2838 = vadd.f32 0.0, %v2837
    %v2839 = vpop.f32.mrb[0].mxu0
    %v2840 = vpop.f32.mrb[0].mxu0
    %v2841 = vpop.f32.mrb[0].mxu0
    %2842 = vdwg.mxu0
    %v2844 = vsel %vm174, %v2631, 0
    %2846 = vmatprep.subr.bf16.mxu0 0
    %2847 = vmatpush1.bf16.msra.mxu0 %v2205
    %2848 = vmatprep.subr.bf16.mxu0 0
    %2849 = vmatpush1.bf16.msra.mxu0 0
    %2850 = vmatprep.subr.bf16.mxu0 0
    %2851 = vmatpush1.bf16.msra.mxu0 0
    %2852 = vmatprep.subr.bf16.mxu0 0
    %2853 = vmatpush1.bf16.msra.mxu0 0
    %2854 = vmatprep.subr.bf16.mxu0 0
    %2855 = vmatpush1.bf16.msra.mxu0 0
    %2856 = vmatprep.subr.bf16.mxu0 0
    %2857 = vmatpush1.bf16.msra.mxu0 0
    %2858 = vmatprep.subr.bf16.mxu0 0
    %2859 = vmatpush1.bf16.msra.mxu0 0
    %2860 = vmatprep.subr.bf16.mxu0 0
    %2861 = vmatpush1.bf16.msra.mxu0 0
    %2862 = vmatprep.subr.bf16.mxu0 0
    %2863 = vmatpush1.bf16.msra.mxu0 0
    %2864 = vmatprep.subr.bf16.mxu0 0
    %2865 = vmatpush1.bf16.msra.mxu0 0
    %2866 = vmatprep.subr.bf16.mxu0 0
    %2867 = vmatpush1.bf16.msra.mxu0 0
    %2868 = vmatprep.subr.bf16.mxu0 0
    %2869 = vmatpush1.bf16.msra.mxu0 0
    %2870 = vmatprep.subr.bf16.mxu0 0
    %2871 = vmatpush1.bf16.msra.mxu0 0
    %2872 = vmatprep.subr.bf16.mxu0 0
    %2873 = vmatpush1.bf16.msra.mxu0 0
    %2874 = vmatprep.subr.bf16.mxu0 0
    %2875 = vmatpush1.bf16.msra.mxu0 0
    %2876 = vmatprep.subr.bf16.mxu0 0
    %2877 = vmatpush1.bf16.msra.mxu0 0
    %2878 = vmatprep.mubr.bf16.mxu0 0
    %2879 = vmatmul.mubr.bf16.gmra.mrb[0].mxu0 %v2844
    %v2880 = vpop.f32.mrb[0].mxu0
    %v2881 = vadd.f32 %v2838, %v2880
    %v2882 = vpop.f32.mrb[0].mxu0
    %v2883 = vpop.f32.mrb[0].mxu0
    %v2884 = vpop.f32.mrb[0].mxu0
    %2885 = vdwg.mxu0
    %2886 = vrot.lane.b32.xlu0 %v1813, 96
    %v2887 = vpop.permute.xlu0 %2886
    %2888 = vrot.lane.b32.xlu0 %v1813, 48
    %v2889 = vpop.permute.xlu0 %2888
    %v2890 = vsel %vm174, %v2887, 0
    %v2892 = vsel %vm174, %v2889, 0
    %2894 = vmatprep.subr.mxu0 0.0
    %2895 = vmatpush1.xpose.msra.mxu0 %v2892
    %2896 = vmatprep.subr.mxu0 0.0
    %2897 = vmatpush1.xpose.msra.mxu0 0.0
    %2898 = vmatprep.subr.mxu0 0.0
    %2899 = vmatpush1.xpose.msra.mxu0 0.0
    %2900 = vmatprep.subr.mxu0 0.0
    %2901 = vmatpush1.xpose.msra.mxu0 0.0
    %2902 = vmatprep.subr.mxu0 0.0
    %2903 = vmatpush1.xpose.msra.mxu0 0.0
    %2904 = vmatprep.subr.mxu0 0.0
    %2905 = vmatpush1.xpose.msra.mxu0 0.0
    %2906 = vmatprep.subr.mxu0 0.0
    %2907 = vmatpush1.xpose.msra.mxu0 0.0
    %2908 = vmatprep.subr.mxu0 0.0
    %2909 = vmatpush1.xpose.msra.mxu0 0.0
    %2910 = vmatprep.subr.mxu0 0.0
    %2911 = vmatpush1.xpose.msra.mxu0 0.0
    %2912 = vmatprep.subr.mxu0 0.0
    %2913 = vmatpush1.xpose.msra.mxu0 0.0
    %2914 = vmatprep.subr.mxu0 0.0
    %2915 = vmatpush1.xpose.msra.mxu0 0.0
    %2916 = vmatprep.subr.mxu0 0.0
    %2917 = vmatpush1.xpose.msra.mxu0 0.0
    %2918 = vmatprep.subr.mxu0 0.0
    %2919 = vmatpush1.xpose.msra.mxu0 0.0
    %2920 = vmatprep.subr.mxu0 0.0
    %2921 = vmatpush1.xpose.msra.mxu0 0.0
    %2922 = vmatprep.subr.mxu0 0.0
    %2923 = vmatpush1.xpose.msra.mxu0 0.0
    %2924 = vmatprep.subr.mxu0 0.0
    %2925 = vmatpush1.xpose.msra.mxu0 0.0
    %2926 = vmatprep.subr.mxu0 0.0
    %2927 = vmatpush1.xpose.msra.mxu0 0.0
    %2928 = vmatprep.subr.mxu0 0.0
    %2929 = vmatpush1.xpose.msra.mxu0 0.0
    %2930 = vmatprep.subr.mxu0 0.0
    %2931 = vmatpush1.xpose.msra.mxu0 0.0
    %2932 = vmatprep.subr.mxu0 0.0
    %2933 = vmatpush1.xpose.msra.mxu0 0.0
    %2934 = vmatprep.subr.mxu0 0.0
    %2935 = vmatpush1.xpose.msra.mxu0 0.0
    %2936 = vmatprep.subr.mxu0 0.0
    %2937 = vmatpush1.xpose.msra.mxu0 0.0
    %2938 = vmatprep.subr.mxu0 0.0
    %2939 = vmatpush1.xpose.msra.mxu0 0.0
    %2940 = vmatprep.subr.mxu0 0.0
    %2941 = vmatpush1.xpose.msra.mxu0 0.0
    %2942 = vmatprep.subr.mxu0 0.0
    %2943 = vmatpush1.xpose.msra.mxu0 0.0
    %2944 = vmatprep.subr.mxu0 0.0
    %2945 = vmatpush1.xpose.msra.mxu0 0.0
    %2946 = vmatprep.subr.mxu0 0.0
    %2947 = vmatpush1.xpose.msra.mxu0 0.0
    %2948 = vmatprep.subr.mxu0 0.0
    %2949 = vmatpush1.xpose.msra.mxu0 0.0
    %2950 = vmatprep.subr.mxu0 0.0
    %2951 = vmatpush1.xpose.msra.mxu0 0.0
    %2952 = vmatprep.subr.mxu0 0.0
    %2953 = vmatpush1.xpose.msra.mxu0 0.0
    %2954 = vmatprep.subr.mxu0 0.0
    %2955 = vmatpush1.xpose.msra.mxu0 0.0
    %2956 = vmatprep.subr.mxu0 0.0
    %2957 = vmatpush1.xpose.msra.mxu0 0.0
    %2958 = vmatprep.mubr.f32.mxu0 0.0
    %2959 = vmatmul.mubr.f32.gmra.mrb[0].mxu0 %v2890
    %v2960 = vpop.f32.mrb[0].mxu0
    %v2961 = vadd.f32 0.0, %v2960
    %v2962 = vpop.f32.mrb[0].mxu0
    %2963 = vdwg.mxu0
    %v2964 = vmul.f32 %v2961, 0.25
    %v2965 = vadd.f32 %v2964, %v906
    %v2966 = vsel %vm255, %v2965, -inf
    %2967 = vmax.xlane.f32.xlu0 %v2966
    %v2968 = vpop.xlane.xlu0 %2967
    %v2969 = vsub.f32 %v2965, %v2968
    %v2970 = vmul.f32 %v2969, 1.442695
    %v2971 = vpow.pop %v2970
    %v2972 = vsel %vm255, %v2971, 0.0
    %2973 = vadd.xlane.f32.xlu0 %v2972
    %v2974 = vpop.xlane.xlu0 %2973
    %v2975 = vrcp.pop %v2974
    %v2976 = vmul.f32 %v2971, %v2975
    %v2978 = vsel %vm255, %v2976, 0
    %2980 = vmatprep.subr.mxu0 0.0
    %2981 = vmatpush1.msra.mxu0 %v1815
    %2982 = vmatprep.subr.mxu0 0.0
    %2983 = vmatpush1.msra.mxu0 0.0
    %2984 = vmatprep.subr.mxu0 0.0
    %2985 = vmatpush1.msra.mxu0 0.0
    %2986 = vmatprep.subr.mxu0 0.0
    %2987 = vmatpush1.msra.mxu0 0.0
    %2988 = vmatprep.subr.mxu0 0.0
    %2989 = vmatpush1.msra.mxu0 0.0
    %2990 = vmatprep.subr.mxu0 0.0
    %2991 = vmatpush1.msra.mxu0 0.0
    %2992 = vmatprep.subr.mxu0 0.0
    %2993 = vmatpush1.msra.mxu0 0.0
    %2994 = vmatprep.subr.mxu0 0.0
    %2995 = vmatpush1.msra.mxu0 0.0
    %2996 = vmatprep.subr.mxu0 0.0
    %2997 = vmatpush1.msra.mxu0 0.0
    %2998 = vmatprep.subr.mxu0 0.0
    %2999 = vmatpush1.msra.mxu0 0.0
    %3000 = vmatprep.subr.mxu0 0.0
    %3001 = vmatpush1.msra.mxu0 0.0
    %3002 = vmatprep.subr.mxu0 0.0
    %3003 = vmatpush1.msra.mxu0 0.0
    %3004 = vmatprep.subr.mxu0 0.0
    %3005 = vmatpush1.msra.mxu0 0.0
    %3006 = vmatprep.subr.mxu0 0.0
    %3007 = vmatpush1.msra.mxu0 0.0
    %3008 = vmatprep.subr.mxu0 0.0
    %3009 = vmatpush1.msra.mxu0 0.0
    %3010 = vmatprep.subr.mxu0 0.0
    %3011 = vmatpush1.msra.mxu0 0.0
    %3012 = vmatprep.subr.mxu0 0.0
    %3013 = vmatpush1.msra.mxu0 0.0
    %3014 = vmatprep.subr.mxu0 0.0
    %3015 = vmatpush1.msra.mxu0 0.0
    %3016 = vmatprep.subr.mxu0 0.0
    %3017 = vmatpush1.msra.mxu0 0.0
    %3018 = vmatprep.subr.mxu0 0.0
    %3019 = vmatpush1.msra.mxu0 0.0
    %3020 = vmatprep.subr.mxu0 0.0
    %3021 = vmatpush1.msra.mxu0 0.0
    %3022 = vmatprep.subr.mxu0 0.0
    %3023 = vmatpush1.msra.mxu0 0.0
    %3024 = vmatprep.subr.mxu0 0.0
    %3025 = vmatpush1.msra.mxu0 0.0
    %3026 = vmatprep.subr.mxu0 0.0
    %3027 = vmatpush1.msra.mxu0 0.0
    %3028 = vmatprep.subr.mxu0 0.0
    %3029 = vmatpush1.msra.mxu0 0.0
    %3030 = vmatprep.subr.mxu0 0.0
    %3031 = vmatpush1.msra.mxu0 0.0
    %3032 = vmatprep.subr.mxu0 0.0
    %3033 = vmatpush1.msra.mxu0 0.0
    %3034 = vmatprep.subr.mxu0 0.0
    %3035 = vmatpush1.msra.mxu0 0.0
    %3036 = vmatprep.subr.mxu0 0.0
    %3037 = vmatpush1.msra.mxu0 0.0
    %3038 = vmatprep.subr.mxu0 0.0
    %3039 = vmatpush1.msra.mxu0 0.0
    %3040 = vmatprep.subr.mxu0 0.0
    %3041 = vmatpush1.msra.mxu0 0.0
    %3042 = vmatprep.subr.mxu0 0.0
    %3043 = vmatpush1.msra.mxu0 0.0
    %3044 = vmatprep.mubr.f32.mxu0 0.0
    %3045 = vmatmul.mubr.f32.gmra.mrb[0].mxu0 %v2978
    %v3046 = vpop.f32.mrb[0].mxu0
    %v3047 = vadd.f32 0.0, %v3046
    %v3048 = vpop.f32.mrb[0].mxu0
    %3049 = vdwg.mxu0
    %v3050 = vpack.c.bf16 %v3047, %v3047
    %v3052 = vsel %vm174, %v3050, 0
    %3054 = vmatprep.subr.bf16.mxu0 0
    %3055 = vmatpush1.bf16.msra.mxu0 %v2419
    %3056 = vmatprep.subr.bf16.mxu0 0
    %3057 = vmatpush1.bf16.msra.mxu0 0
    %3058 = vmatprep.subr.bf16.mxu0 0
    %3059 = vmatpush1.bf16.msra.mxu0 0
    %3060 = vmatprep.subr.bf16.mxu0 0
    %3061 = vmatpush1.bf16.msra.mxu0 0
    %3062 = vmatprep.subr.bf16.mxu0 0
    %3063 = vmatpush1.bf16.msra.mxu0 0
    %3064 = vmatprep.subr.bf16.mxu0 0
    %3065 = vmatpush1.bf16.msra.mxu0 0
    %3066 = vmatprep.subr.bf16.mxu0 0
    %3067 = vmatpush1.bf16.msra.mxu0 0
    %3068 = vmatprep.subr.bf16.mxu0 0
    %3069 = vmatpush1.bf16.msra.mxu0 0
    %3070 = vmatprep.subr.bf16.mxu0 0
    %3071 = vmatpush1.bf16.msra.mxu0 0
    %3072 = vmatprep.subr.bf16.mxu0 0
    %3073 = vmatpush1.bf16.msra.mxu0 0
    %3074 = vmatprep.subr.bf16.mxu0 0
    %3075 = vmatpush1.bf16.msra.mxu0 0
    %3076 = vmatprep.subr.bf16.mxu0 0
    %3077 = vmatpush1.bf16.msra.mxu0 0
    %3078 = vmatprep.subr.bf16.mxu0 0
    %3079 = vmatpush1.bf16.msra.mxu0 0
    %3080 = vmatprep.subr.bf16.mxu0 0
    %3081 = vmatpush1.bf16.msra.mxu0 0
    %3082 = vmatprep.subr.bf16.mxu0 0
    %3083 = vmatpush1.bf16.msra.mxu0 0
    %3084 = vmatprep.subr.bf16.mxu0 0
    %3085 = vmatpush1.bf16.msra.mxu0 0
    %3086 = vmatprep.mubr.bf16.mxu0 0
    %3087 = vmatmul.mubr.bf16.gmra.mrb[0].mxu0 %v3052
    %v3088 = vpop.f32.mrb[0].mxu0
    %v3089 = vadd.f32 0.0, %v3088
    %v3090 = vpop.f32.mrb[0].mxu0
    %v3091 = vpop.f32.mrb[0].mxu0
    %v3092 = vpop.f32.mrb[0].mxu0
    %3093 = vdwg.mxu0
    %v3094 = vadd.f32 %v2881, %v3089
    %v3095 = vlaneseq
    %v3096 = vshrl.u32 %v3095, 7
    %v3097 = vsub.s32 1, %v3096
    %v3098 = vrot.slane %v1730, %v3097
    %v3099 = vadd.f32 %v2464, %v3098
    %v3100 = vadd.f32 %v3094, %v3098
    %v3101 = vadd.f32 %v41, %v3099
    %v3102 = vadd.f32 %v42, %v3100
    %v3103 = vsel %vm124, %v3101, 0.0
    %3104 = vadd.xlane.f32.xlu0 %v3103
    %v3105 = vpop.xlane.xlu0 %3104
    %v3106 = vsel %vm124, %v3102, 0.0
    %3107 = vadd.xlane.f32.xlu0 %v3106
    %v3108 = vpop.xlane.xlu0 %3107
    %v3109 = vmul.f32 %v3105, %v1473
    %v3110 = vmul.f32 %v3108, %v1473
    %v3111 = vsub.f32 %v3101, %v3109
    %v3112 = vsub.f32 %v3102, %v3110
    %v3113 = vmul.f32 %v3111, %v3111
    %v3114 = vmul.f32 %v3112, %v3112
    %v3115 = vsel %vm124, %v3113, 0.0
    %3116 = vadd.xlane.f32.xlu0 %v3115
    %v3117 = vpop.xlane.xlu0 %3116
    %v3118 = vsel %vm124, %v3114, 0.0
    %3119 = vadd.xlane.f32.xlu0 %v3118
    %v3120 = vpop.xlane.xlu0 %3119
    %v3121 = vmul.f32 %v3117, %v1473
    %v3122 = vmul.f32 %v3120, %v1473
    %v3123 = vadd.f32 %v3121, 1e-05
    %v3124 = vadd.f32 %v3122, 1e-05
    %v3125 = vrsqrt.pop %v3123
    %v3126 = vrsqrt.pop %v3124
    %v3127 = vmul.f32 %v3111, %v3125
    %v3128 = vmul.f32 %v3112, %v3126
    %v3129 = vlaneseq
    %v3130 = vshrl.u32 %v3129, 7
    %v3131 = vsub.s32 4, %v3130
    %v3132 = vrot.slane %v1730, %v3131
    %v3133 = vmul.f32 %v3127, %v3132
    %v3134 = vmul.f32 %v3128, %v3132
    %v3135 = vlaneseq
    %v3136 = vshrl.u32 %v3135, 7
    %v3137 = vsub.s32 5, %v3136
    %v3138 = vrot.slane %v1730, %v3137
    %v3139 = vadd.f32 %v3133, %v3138
    %v3140 = vadd.f32 %v3134, %v3138
    %v3141 = vpack.c.bf16 %v3140, %v3139
    %v3142 = vlaneseq
    %v3143 = vshrl.u32 %v3142, 7
    %v3144 = vsub.s32 2, %v3143
    %v3145 = vrot.slane %v1730, %v3144
    %v3152 = vunpack.c.l.b16 %v1710
    %v3153 = vunpack.c.l.b16 %v1711
    %v3154 = vunpack.c.l.b16 %v1712
    %v3155 = vunpack.c.l.b16 %v1713
    %v3156 = vunpack.c.l.b16 %v1714
    %v3157 = vunpack.c.l.b16 %v1715
    %v3158 = vpack.c.b16 %v3153, %v3152
    %v3159 = vpack.c.b16 %v3155, %v3154
    %v3160 = vpack.c.b16 %v3157, %v3156
    %v3165 = vsel %vm124, %v3141, 0
    %3167 = vmatprep.subr.bf16.mxu0 0
    %3168 = vmatpush1.bf16.msra.mxu0 %v3158
    %3169 = vmatprep.subr.bf16.mxu0 0
    %3170 = vmatpush1.bf16.msra.mxu0 %v3159
    %3171 = vmatprep.subr.bf16.mxu0 0
    %3172 = vmatpush1.bf16.msra.mxu0 %v3160
    %3173 = vmatprep.subr.bf16.mxu0 0
    %3174 = vmatpush1.bf16.msra.mxu0 0
    %3175 = vmatprep.subr.bf16.mxu0 0
    %3176 = vmatpush1.bf16.msra.mxu0 0
    %3177 = vmatprep.subr.bf16.mxu0 0
    %3178 = vmatpush1.bf16.msra.mxu0 0
    %3179 = vmatprep.subr.bf16.mxu0 0
    %3180 = vmatpush1.bf16.msra.mxu0 0
    %3181 = vmatprep.subr.bf16.mxu0 0
    %3182 = vmatpush1.bf16.msra.mxu0 0
    %3183 = vmatprep.subr.bf16.mxu0 0
    %3184 = vmatpush1.bf16.msra.mxu0 0
    %3185 = vmatprep.subr.bf16.mxu0 0
    %3186 = vmatpush1.bf16.msra.mxu0 0
    %3187 = vmatprep.subr.bf16.mxu0 0
    %3188 = vmatpush1.bf16.msra.mxu0 0
    %3189 = vmatprep.subr.bf16.mxu0 0
    %3190 = vmatpush1.bf16.msra.mxu0 0
    %3191 = vmatprep.subr.bf16.mxu0 0
    %3192 = vmatpush1.bf16.msra.mxu0 0
    %3193 = vmatprep.subr.bf16.mxu0 0
    %3194 = vmatpush1.bf16.msra.mxu0 0
    %3195 = vmatprep.subr.bf16.mxu0 0
    %3196 = vmatpush1.bf16.msra.mxu0 0
    %3197 = vmatprep.subr.bf16.mxu0 0
    %3198 = vmatpush1.bf16.msra.mxu0 0
    %3199 = vmatprep.mubr.bf16.mxu0 0
    %3200 = vmatmul.mubr.bf16.gmra.mrb[0].mxu0 %v3165
    %v3201 = vpop.f32.mrb[0].mxu0
    %v3202 = vadd.f32 %v3145, %v3201
    %v3203 = vpop.f32.mrb[0].mxu0
    %v3204 = vpop.f32.mrb[0].mxu0
    %v3205 = vadd.f32 %v3145, %v3204
    %v3206 = vpop.f32.mrb[0].mxu0
    %3207 = vdwg.mxu0
    %v3208 = vmax.f32 %v3202, 0.0
    %v3209 = vmax.f32 %v3205, 0.0
    %v3210 = vpack.c.bf16 %v3209, %v3208
    %v3211 = vlaneseq
    %v3212 = vshrl.u32 %v3211, 7
    %v3213 = vsub.s32 3, %v3212
    %v3214 = vrot.slane %v1730, %v3213
    %v3223 = vunpack.c.l.b16 %v1719
    %v3224 = vunpack.c.l.b16 %v1720
    %v3225 = vunpack.c.l.b16 %v1721
    %v3226 = vunpack.c.l.b16 %v1722
    %v3227 = vunpack.c.l.b16 %v1723
    %v3228 = vunpack.c.l.b16 %v1724
    %v3229 = vunpack.c.l.b16 %v1725
    %v3230 = vunpack.c.l.b16 %v1726
    %v3231 = vpack.c.b16 %v3224, %v3223
    %v3232 = vpack.c.b16 %v3226, %v3225
    %v3233 = vpack.c.b16 %v3228, %v3227
    %v3234 = vpack.c.b16 %v3230, %v3229
    %v3240 = vsel %vm1604, %v3210, 0
    %3242 = vmatprep.subr.bf16.mxu0 0
    %3243 = vmatpush1.bf16.msra.mxu0 %v3231
    %3244 = vmatprep.subr.bf16.mxu0 0
    %3245 = vmatpush1.bf16.msra.mxu0 %v3232
    %3246 = vmatprep.subr.bf16.mxu0 0
    %3247 = vmatpush1.bf16.msra.mxu0 %v3233
    %3248 = vmatprep.subr.bf16.mxu0 0
    %3249 = vmatpush1.bf16.msra.mxu0 %v3234
    %3250 = vmatprep.subr.bf16.mxu0 0
    %3251 = vmatpush1.bf16.msra.mxu0 0
    %3252 = vmatprep.subr.bf16.mxu0 0
    %3253 = vmatpush1.bf16.msra.mxu0 0
    %3254 = vmatprep.subr.bf16.mxu0 0
    %3255 = vmatpush1.bf16.msra.mxu0 0
    %3256 = vmatprep.subr.bf16.mxu0 0
    %3257 = vmatpush1.bf16.msra.mxu0 0
    %3258 = vmatprep.subr.bf16.mxu0 0
    %3259 = vmatpush1.bf16.msra.mxu0 0
    %3260 = vmatprep.subr.bf16.mxu0 0
    %3261 = vmatpush1.bf16.msra.mxu0 0
    %3262 = vmatprep.subr.bf16.mxu0 0
    %3263 = vmatpush1.bf16.msra.mxu0 0
    %3264 = vmatprep.subr.bf16.mxu0 0
    %3265 = vmatpush1.bf16.msra.mxu0 0
    %3266 = vmatprep.subr.bf16.mxu0 0
    %3267 = vmatpush1.bf16.msra.mxu0 0
    %3268 = vmatprep.subr.bf16.mxu0 0
    %3269 = vmatpush1.bf16.msra.mxu0 0
    %3270 = vmatprep.subr.bf16.mxu0 0
    %3271 = vmatpush1.bf16.msra.mxu0 0
    %3272 = vmatprep.subr.bf16.mxu0 0
    %3273 = vmatpush1.bf16.msra.mxu0 0
    %3274 = vmatprep.mubr.bf16.mxu0 0
    %3275 = vmatmul.mubr.bf16.gmra.mrb[0].mxu0 %v3240
    %v3276 = vpop.f32.mrb[0].mxu0
    %v3277 = vadd.f32 %v3214, %v3276
    %v3278 = vpop.f32.mrb[0].mxu0
    %v3279 = vpop.f32.mrb[0].mxu0
    %v3280 = vadd.f32 %v3214, %v3279
    %v3281 = vpop.f32.mrb[0].mxu0
    %3282 = vdwg.mxu0
    %v3283 = vadd.f32 %v3139, %v3277
    %v3284 = vadd.f32 %v3140, %v3280
    %v3285 = vsel %vm124, %v3283, 0.0
    %3286 = vadd.xlane.f32.xlu0 %v3285
    %v3287 = vpop.xlane.xlu0 %3286
    %v3288 = vsel %vm124, %v3284, 0.0
    %3289 = vadd.xlane.f32.xlu0 %v3288
    %v3290 = vpop.xlane.xlu0 %3289
    %v3291 = vmul.f32 %v3287, %v1473
    %v3292 = vmul.f32 %v3290, %v1473
    %v3293 = vsub.f32 %v3283, %v3291
    %v3294 = vsub.f32 %v3284, %v3292
    %v3295 = vmul.f32 %v3293, %v3293
    %v3296 = vmul.f32 %v3294, %v3294
    %v3297 = vsel %vm124, %v3295, 0.0
    %3298 = vadd.xlane.f32.xlu0 %v3297
    %v3299 = vpop.xlane.xlu0 %3298
    %v3300 = vsel %vm124, %v3296, 0.0
    %3301 = vadd.xlane.f32.xlu0 %v3300
    %v3302 = vpop.xlane.xlu0 %3301
    %v3303 = vmul.f32 %v3299, %v1473
    %v3304 = vmul.f32 %v3302, %v1473
    %v3305 = vadd.f32 %v3303, 1e-05
    %v3306 = vadd.f32 %v3304, 1e-05
    %v3307 = vrsqrt.pop %v3305
    %v3308 = vrsqrt.pop %v3306
    %v3309 = vmul.f32 %v3293, %v3307
    %v3310 = vmul.f32 %v3294, %v3308
    %v3311 = vlaneseq
    %v3312 = vshrl.u32 %v3311, 7
    %v3313 = vsub.s32 6, %v3312
    %v3314 = vrot.slane %v1730, %v3313
    %v3315 = vmul.f32 %v3309, %v3314
    %v3316 = vmul.f32 %v3310, %v3314
    %v3317 = vlaneseq
    %v3318 = vshrl.u32 %v3317, 7
    %v3319 = vsub.s32 7, %v3318
    %v3320 = vrot.slane %v1730, %v3319
    %v3321 = vadd.f32 %v3315, %v3320
    %v3322 = vadd.f32 %v3316, %v3320
  $region38: #{_lambda_.1} parent=0 // loop_footer
    %s38 = sadd.s32 1, %s34
  $region39: #{_lambda_.1} parent=0 // loop_footer_branch
    %33 = sbr.rel target = $region35
  $region40: #{_lambda_.1} parent=0 // loop_exit
    _
  %vm3323 = vcmask 392192
  %v3324 = vsel %vm3323, %v39, 0.0
  %v3325 = vrot.slane %v3324, 4
  %v3326 = vadd.f32 %v3324, %v3325
  %v3327 = vrot.slane %v3326, 2
  %v3328 = vadd.f32 %v3326, %v3327
  %v3329 = vrot.slane %v3328, 1
  %v3330 = vadd.f32 %v3328, %v3329
  %v3331 = vrcp.pop 8.0
  %v3332 = vmul.f32 %v3330, %v3331
  %v3333 = vsel %vm3323, %v40, 0.0
  %v3334 = vrot.slane %v3333, 4
  %v3335 = vadd.f32 %v3333, %v3334
  %v3336 = vrot.slane %v3335, 2
  %v3337 = vadd.f32 %v3335, %v3336
  %v3338 = vrot.slane %v3337, 1
  %v3339 = vadd.f32 %v3337, %v3338
  %v3340 = vmul.f32 %v3339, %v3331
  %vm3341 = vcmask 1040384
  %v3342 = vsel %vm3341, %v3332, %v3340
  %v3343 = vsel %vm3323, %v41, 0.0
  %v3344 = vrot.slane %v3343, 4
  %v3345 = vadd.f32 %v3343, %v3344
  %v3346 = vrot.slane %v3345, 2
  %v3347 = vadd.f32 %v3345, %v3346
  %v3348 = vrot.slane %v3347, 1
  %v3349 = vadd.f32 %v3347, %v3348
  %v3350 = vmul.f32 %v3349, %v3331
  %v3351 = vsel %vm3323, %v42, 0.0
  %v3352 = vrot.slane %v3351, 4
  %v3353 = vadd.f32 %v3351, %v3352
  %v3354 = vrot.slane %v3353, 2
  %v3355 = vadd.f32 %v3353, %v3354
  %v3356 = vrot.slane %v3355, 1
  %v3357 = vadd.f32 %v3355, %v3356
  %v3358 = vmul.f32 %v3357, %v3331
  %v3359 = vsel %vm3341, %v3350, %v3358
  %v3360 = vld [vmem:[%s7] sm:$0xff]
  %v3361 = vld [vmem:[%s7 + $0x8] sm:$0xff]
  %v3362 = vld [vmem:[%s7 + $0x10] sm:$0xff]
  %v3363 = vld [vmem:[%s7 + $0x18] sm:$0xff]
  %v3364 = vld [vmem:[%s7 + $0x20] sm:$0xff]
  %v3365 = vld [vmem:[%s7 + $0x28] sm:$0xff]
  %v3366 = vld [vmem:[%s7 + $0x30] sm:$0x1]
  %v3367 = vlaneseq
  %v3368 = vshrl.u32 %v3367, 7
  %v3369 = vsub.s32 0, %v3368
  %v3370 = vrot.slane %v3366, %v3369
  %3377 = vrot.lane.b32.xlu0 %v3360, 28
  %v3378 = vpop.permute.xlu0 %3377
  %3379 = vrot.lane.b32.xlu0 %v3361, 28
  %v3380 = vpop.permute.xlu0 %3379
  %3381 = vrot.lane.b32.xlu0 %v3362, 28
  %v3382 = vpop.permute.xlu0 %3381
  %3383 = vrot.lane.b32.xlu0 %v3363, 28
  %v3384 = vpop.permute.xlu0 %3383
  %3385 = vrot.lane.b32.xlu0 %v3364, 28
  %v3386 = vpop.permute.xlu0 %3385
  %3387 = vrot.lane.b32.xlu0 %v3365, 28
  %v3388 = vpop.permute.xlu0 %3387
  %3396 = vrot.lane.b32.xlu0 %v3370, 28
  %v3397 = vpop.permute.xlu0 %3396
  %v3400 = vsel %vm3323, %v3342, 0
  %3402 = vmatprep.subr.mxu0 0.0
  %3403 = vmatpush1.msra.mxu0 %v3378
  %3404 = vmatprep.subr.mxu0 0.0
  %3405 = vmatpush1.msra.mxu0 %v3380
  %3406 = vmatprep.subr.mxu0 0.0
  %3407 = vmatpush1.msra.mxu0 %v3382
  %3408 = vmatprep.subr.mxu0 0.0
  %3409 = vmatpush1.msra.mxu0 %v3384
  %3410 = vmatprep.subr.mxu0 0.0
  %3411 = vmatpush1.msra.mxu0 %v3386
  %3412 = vmatprep.subr.mxu0 0.0
  %3413 = vmatpush1.msra.mxu0 %v3388
  %3414 = vmatprep.subr.mxu0 0.0
  %3415 = vmatpush1.msra.mxu0 0.0
  %3416 = vmatprep.subr.mxu0 0.0
  %3417 = vmatpush1.msra.mxu0 0.0
  %3418 = vmatprep.subr.mxu0 0.0
  %3419 = vmatpush1.msra.mxu0 0.0
  %3420 = vmatprep.subr.mxu0 0.0
  %3421 = vmatpush1.msra.mxu0 0.0
  %3422 = vmatprep.subr.mxu0 0.0
  %3423 = vmatpush1.msra.mxu0 0.0
  %3424 = vmatprep.subr.mxu0 0.0
  %3425 = vmatpush1.msra.mxu0 0.0
  %3426 = vmatprep.subr.mxu0 0.0
  %3427 = vmatpush1.msra.mxu0 0.0
  %3428 = vmatprep.subr.mxu0 0.0
  %3429 = vmatpush1.msra.mxu0 0.0
  %3430 = vmatprep.subr.mxu0 0.0
  %3431 = vmatpush1.msra.mxu0 0.0
  %3432 = vmatprep.subr.mxu0 0.0
  %3433 = vmatpush1.msra.mxu0 0.0
  %3434 = vmatprep.subr.mxu0 0.0
  %3435 = vmatpush1.msra.mxu0 0.0
  %3436 = vmatprep.subr.mxu0 0.0
  %3437 = vmatpush1.msra.mxu0 0.0
  %3438 = vmatprep.subr.mxu0 0.0
  %3439 = vmatpush1.msra.mxu0 0.0
  %3440 = vmatprep.subr.mxu0 0.0
  %3441 = vmatpush1.msra.mxu0 0.0
  %3442 = vmatprep.subr.mxu0 0.0
  %3443 = vmatpush1.msra.mxu0 0.0
  %3444 = vmatprep.subr.mxu0 0.0
  %3445 = vmatpush1.msra.mxu0 0.0
  %3446 = vmatprep.subr.mxu0 0.0
  %3447 = vmatpush1.msra.mxu0 0.0
  %3448 = vmatprep.subr.mxu0 0.0
  %3449 = vmatpush1.msra.mxu0 0.0
  %3450 = vmatprep.subr.mxu0 0.0
  %3451 = vmatpush1.msra.mxu0 0.0
  %3452 = vmatprep.subr.mxu0 0.0
  %3453 = vmatpush1.msra.mxu0 0.0
  %3454 = vmatprep.subr.mxu0 0.0
  %3455 = vmatpush1.msra.mxu0 0.0
  %3456 = vmatprep.subr.mxu0 0.0
  %3457 = vmatpush1.msra.mxu0 0.0
  %3458 = vmatprep.subr.mxu0 0.0
  %3459 = vmatpush1.msra.mxu0 0.0
  %3460 = vmatprep.subr.mxu0 0.0
  %3461 = vmatpush1.msra.mxu0 0.0
  %3462 = vmatprep.subr.mxu0 0.0
  %3463 = vmatpush1.msra.mxu0 0.0
  %3464 = vmatprep.subr.mxu0 0.0
  %3465 = vmatpush1.msra.mxu0 0.0
  %3466 = vmatprep.mubr.f32.mxu0 0.0
  %3467 = vmatmul.mubr.f32.gmra.mrb[0].mxu0 %v3400
  %v3468 = vpop.f32.mrb[0].mxu0
  %v3469 = vadd.f32 %v3397, %v3468
  %v3470 = vpop.f32.mrb[0].mxu0
  %3471 = vdwg.mxu0
  %v3473 = vsel %vm3323, %v3359, 0
  %3475 = vmatprep.subr.mxu0 0.0
  %3476 = vmatpush1.msra.mxu0 %v3360
  %3477 = vmatprep.subr.mxu0 0.0
  %3478 = vmatpush1.msra.mxu0 %v3361
  %3479 = vmatprep.subr.mxu0 0.0
  %3480 = vmatpush1.msra.mxu0 %v3362
  %3481 = vmatprep.subr.mxu0 0.0
  %3482 = vmatpush1.msra.mxu0 %v3363
  %3483 = vmatprep.subr.mxu0 0.0
  %3484 = vmatpush1.msra.mxu0 %v3364
  %3485 = vmatprep.subr.mxu0 0.0
  %3486 = vmatpush1.msra.mxu0 %v3365
  %3487 = vmatprep.subr.mxu0 0.0
  %3488 = vmatpush1.msra.mxu0 0.0
  %3489 = vmatprep.subr.mxu0 0.0
  %3490 = vmatpush1.msra.mxu0 0.0
  %3491 = vmatprep.subr.mxu0 0.0
  %3492 = vmatpush1.msra.mxu0 0.0
  %3493 = vmatprep.subr.mxu0 0.0
  %3494 = vmatpush1.msra.mxu0 0.0
  %3495 = vmatprep.subr.mxu0 0.0
  %3496 = vmatpush1.msra.mxu0 0.0
  %3497 = vmatprep.subr.mxu0 0.0
  %3498 = vmatpush1.msra.mxu0 0.0
  %3499 = vmatprep.subr.mxu0 0.0
  %3500 = vmatpush1.msra.mxu0 0.0
  %3501 = vmatprep.subr.mxu0 0.0
  %3502 = vmatpush1.msra.mxu0 0.0
  %3503 = vmatprep.subr.mxu0 0.0
  %3504 = vmatpush1.msra.mxu0 0.0
  %3505 = vmatprep.subr.mxu0 0.0
  %3506 = vmatpush1.msra.mxu0 0.0
  %3507 = vmatprep.subr.mxu0 0.0
  %3508 = vmatpush1.msra.mxu0 0.0
  %3509 = vmatprep.subr.mxu0 0.0
  %3510 = vmatpush1.msra.mxu0 0.0
  %3511 = vmatprep.subr.mxu0 0.0
  %3512 = vmatpush1.msra.mxu0 0.0
  %3513 = vmatprep.subr.mxu0 0.0
  %3514 = vmatpush1.msra.mxu0 0.0
  %3515 = vmatprep.subr.mxu0 0.0
  %3516 = vmatpush1.msra.mxu0 0.0
  %3517 = vmatprep.subr.mxu0 0.0
  %3518 = vmatpush1.msra.mxu0 0.0
  %3519 = vmatprep.subr.mxu0 0.0
  %3520 = vmatpush1.msra.mxu0 0.0
  %3521 = vmatprep.subr.mxu0 0.0
  %3522 = vmatpush1.msra.mxu0 0.0
  %3523 = vmatprep.subr.mxu0 0.0
  %3524 = vmatpush1.msra.mxu0 0.0
  %3525 = vmatprep.subr.mxu0 0.0
  %3526 = vmatpush1.msra.mxu0 0.0
  %3527 = vmatprep.subr.mxu0 0.0
  %3528 = vmatpush1.msra.mxu0 0.0
  %3529 = vmatprep.subr.mxu0 0.0
  %3530 = vmatpush1.msra.mxu0 0.0
  %3531 = vmatprep.subr.mxu0 0.0
  %3532 = vmatpush1.msra.mxu0 0.0
  %3533 = vmatprep.subr.mxu0 0.0
  %3534 = vmatpush1.msra.mxu0 0.0
  %3535 = vmatprep.subr.mxu0 0.0
  %3536 = vmatpush1.msra.mxu0 0.0
  %3537 = vmatprep.subr.mxu0 0.0
  %3538 = vmatpush1.msra.mxu0 0.0
  %3539 = vmatprep.mubr.f32.mxu0 0.0
  %3540 = vmatmul.mubr.f32.gmra.mrb[0].mxu0 %v3473
  %v3541 = vpop.f32.mrb[0].mxu0
  %v3542 = vadd.f32 %v3370, %v3541
  %v3543 = vpop.f32.mrb[0].mxu0
  %3544 = vdwg.mxu0
  %v3545 = vtanh.pop %v3542
  %3546 = vrot.lane.b32.xlu0 %v3360, 32
  %v3547 = vpop.permute.xlu0 %3546
  %3548 = vrot.lane.b32.xlu0 %v3361, 32
  %v3549 = vpop.permute.xlu0 %3548
  %3550 = vrot.lane.b32.xlu0 %v3362, 32
  %v3551 = vpop.permute.xlu0 %3550
  %3552 = vrot.lane.b32.xlu0 %v3363, 32
  %v3553 = vpop.permute.xlu0 %3552
  %3554 = vrot.lane.b32.xlu0 %v3364, 32
  %v3555 = vpop.permute.xlu0 %3554
  %3556 = vrot.lane.b32.xlu0 %v3365, 32
  %v3557 = vpop.permute.xlu0 %3556
  %v3565 = vsel %vm3323, %v3545, 0
  %3567 = vmatprep.subr.mxu0 0.0
  %3568 = vmatpush1.msra.mxu0 %v3547
  %3569 = vmatprep.subr.mxu0 0.0
  %3570 = vmatpush1.msra.mxu0 %v3549
  %3571 = vmatprep.subr.mxu0 0.0
  %3572 = vmatpush1.msra.mxu0 %v3551
  %3573 = vmatprep.subr.mxu0 0.0
  %3574 = vmatpush1.msra.mxu0 %v3553
  %3575 = vmatprep.subr.mxu0 0.0
  %3576 = vmatpush1.msra.mxu0 %v3555
  %3577 = vmatprep.subr.mxu0 0.0
  %3578 = vmatpush1.msra.mxu0 %v3557
  %3579 = vmatprep.subr.mxu0 0.0
  %3580 = vmatpush1.msra.mxu0 0.0
  %3581 = vmatprep.subr.mxu0 0.0
  %3582 = vmatpush1.msra.mxu0 0.0
  %3583 = vmatprep.subr.mxu0 0.0
  %3584 = vmatpush1.msra.mxu0 0.0
  %3585 = vmatprep.subr.mxu0 0.0
  %3586 = vmatpush1.msra.mxu0 0.0
  %3587 = vmatprep.subr.mxu0 0.0
  %3588 = vmatpush1.msra.mxu0 0.0
  %3589 = vmatprep.subr.mxu0 0.0
  %3590 = vmatpush1.msra.mxu0 0.0
  %3591 = vmatprep.subr.mxu0 0.0
  %3592 = vmatpush1.msra.mxu0 0.0
  %3593 = vmatprep.subr.mxu0 0.0
  %3594 = vmatpush1.msra.mxu0 0.0
  %3595 = vmatprep.subr.mxu0 0.0
  %3596 = vmatpush1.msra.mxu0 0.0
  %3597 = vmatprep.subr.mxu0 0.0
  %3598 = vmatpush1.msra.mxu0 0.0
  %3599 = vmatprep.subr.mxu0 0.0
  %3600 = vmatpush1.msra.mxu0 0.0
  %3601 = vmatprep.subr.mxu0 0.0
  %3602 = vmatpush1.msra.mxu0 0.0
  %3603 = vmatprep.subr.mxu0 0.0
  %3604 = vmatpush1.msra.mxu0 0.0
  %3605 = vmatprep.subr.mxu0 0.0
  %3606 = vmatpush1.msra.mxu0 0.0
  %3607 = vmatprep.subr.mxu0 0.0
  %3608 = vmatpush1.msra.mxu0 0.0
  %3609 = vmatprep.subr.mxu0 0.0
  %3610 = vmatpush1.msra.mxu0 0.0
  %3611 = vmatprep.subr.mxu0 0.0
  %3612 = vmatpush1.msra.mxu0 0.0
  %3613 = vmatprep.subr.mxu0 0.0
  %3614 = vmatpush1.msra.mxu0 0.0
  %3615 = vmatprep.subr.mxu0 0.0
  %3616 = vmatpush1.msra.mxu0 0.0
  %3617 = vmatprep.subr.mxu0 0.0
  %3618 = vmatpush1.msra.mxu0 0.0
  %3619 = vmatprep.subr.mxu0 0.0
  %3620 = vmatpush1.msra.mxu0 0.0
  %3621 = vmatprep.subr.mxu0 0.0
  %3622 = vmatpush1.msra.mxu0 0.0
  %3623 = vmatprep.subr.mxu0 0.0
  %3624 = vmatpush1.msra.mxu0 0.0
  %3625 = vmatprep.subr.mxu0 0.0
  %3626 = vmatpush1.msra.mxu0 0.0
  %3627 = vmatprep.subr.mxu0 0.0
  %3628 = vmatpush1.msra.mxu0 0.0
  %3629 = vmatprep.subr.mxu0 0.0
  %3630 = vmatpush1.msra.mxu0 0.0
  %3631 = vmatprep.mubr.f32.mxu0 0.0
  %3632 = vmatmul.mubr.f32.gmra.mrb[0].mxu0 %v3565
  %v3633 = vpop.f32.mrb[0].mxu0
  %v3634 = vadd.f32 0.0, %v3633
  %v3635 = vpop.f32.mrb[0].mxu0
  %3636 = vdwg.mxu0
  %3637 = vrot.lane.b32.xlu0 %v3545, 80
  %v3638 = vpop.permute.xlu0 %3637
  %3639 = vrot.lane.b32.xlu0 %v3360, 30
  %v3640 = vpop.permute.xlu0 %3639
  %3641 = vrot.lane.b32.xlu0 %v3361, 30
  %v3642 = vpop.permute.xlu0 %3641
  %3643 = vrot.lane.b32.xlu0 %v3362, 30
  %v3644 = vpop.permute.xlu0 %3643
  %3645 = vrot.lane.b32.xlu0 %v3363, 30
  %v3646 = vpop.permute.xlu0 %3645
  %3647 = vrot.lane.b32.xlu0 %v3364, 30
  %v3648 = vpop.permute.xlu0 %3647
  %3649 = vrot.lane.b32.xlu0 %v3365, 30
  %v3650 = vpop.permute.xlu0 %3649
  %v3657 = vsel %vm3323, %v3638, 0
  %3659 = vmatprep.subr.mxu0 0.0
  %3660 = vmatpush1.msra.mxu0 %v3640
  %3661 = vmatprep.subr.mxu0 0.0
  %3662 = vmatpush1.msra.mxu0 %v3642
  %3663 = vmatprep.subr.mxu0 0.0
  %3664 = vmatpush1.msra.mxu0 %v3644
  %3665 = vmatprep.subr.mxu0 0.0
  %3666 = vmatpush1.msra.mxu0 %v3646
  %3667 = vmatprep.subr.mxu0 0.0
  %3668 = vmatpush1.msra.mxu0 %v3648
  %3669 = vmatprep.subr.mxu0 0.0
  %3670 = vmatpush1.msra.mxu0 %v3650
  %3671 = vmatprep.subr.mxu0 0.0
  %3672 = vmatpush1.msra.mxu0 0.0
  %3673 = vmatprep.subr.mxu0 0.0
  %3674 = vmatpush1.msra.mxu0 0.0
  %3675 = vmatprep.subr.mxu0 0.0
  %3676 = vmatpush1.msra.mxu0 0.0
  %3677 = vmatprep.subr.mxu0 0.0
  %3678 = vmatpush1.msra.mxu0 0.0
  %3679 = vmatprep.subr.mxu0 0.0
  %3680 = vmatpush1.msra.mxu0 0.0
  %3681 = vmatprep.subr.mxu0 0.0
  %3682 = vmatpush1.msra.mxu0 0.0
  %3683 = vmatprep.subr.mxu0 0.0
  %3684 = vmatpush1.msra.mxu0 0.0
  %3685 = vmatprep.subr.mxu0 0.0
  %3686 = vmatpush1.msra.mxu0 0.0
  %3687 = vmatprep.subr.mxu0 0.0
  %3688 = vmatpush1.msra.mxu0 0.0
  %3689 = vmatprep.subr.mxu0 0.0
  %3690 = vmatpush1.msra.mxu0 0.0
  %3691 = vmatprep.subr.mxu0 0.0
  %3692 = vmatpush1.msra.mxu0 0.0
  %3693 = vmatprep.subr.mxu0 0.0
  %3694 = vmatpush1.msra.mxu0 0.0
  %3695 = vmatprep.subr.mxu0 0.0
  %3696 = vmatpush1.msra.mxu0 0.0
  %3697 = vmatprep.subr.mxu0 0.0
  %3698 = vmatpush1.msra.mxu0 0.0
  %3699 = vmatprep.subr.mxu0 0.0
  %3700 = vmatpush1.msra.mxu0 0.0
  %3701 = vmatprep.subr.mxu0 0.0
  %3702 = vmatpush1.msra.mxu0 0.0
  %3703 = vmatprep.subr.mxu0 0.0
  %3704 = vmatpush1.msra.mxu0 0.0
  %3705 = vmatprep.subr.mxu0 0.0
  %3706 = vmatpush1.msra.mxu0 0.0
  %3707 = vmatprep.subr.mxu0 0.0
  %3708 = vmatpush1.msra.mxu0 0.0
  %3709 = vmatprep.subr.mxu0 0.0
  %3710 = vmatpush1.msra.mxu0 0.0
  %3711 = vmatprep.subr.mxu0 0.0
  %3712 = vmatpush1.msra.mxu0 0.0
  %3713 = vmatprep.subr.mxu0 0.0
  %3714 = vmatpush1.msra.mxu0 0.0
  %3715 = vmatprep.subr.mxu0 0.0
  %3716 = vmatpush1.msra.mxu0 0.0
  %3717 = vmatprep.subr.mxu0 0.0
  %3718 = vmatpush1.msra.mxu0 0.0
  %3719 = vmatprep.subr.mxu0 0.0
  %3720 = vmatpush1.msra.mxu0 0.0
  %3721 = vmatprep.subr.mxu0 0.0
  %3722 = vmatpush1.msra.mxu0 0.0
  %3723 = vmatprep.mubr.f32.mxu0 0.0
  %3724 = vmatmul.mubr.f32.gmra.mrb[0].mxu0 %v3657
  %v3725 = vpop.f32.mrb[0].mxu0
  %v3726 = vadd.f32 0.0, %v3725
  %v3727 = vpop.f32.mrb[0].mxu0
  %3728 = vdwg.mxu0
  %v3729 = vmul.f32 %v3634, 1.442695
  %v3730 = vpow.pop %v3729
  %vm3731 = vcmask 9216
  %v3732 = vsel %vm3731, %v3730, 0.0
  %3733 = vadd.xlane.f32.xlu0 %v3732
  %v3734 = vpop.xlane.xlu0 %3733
  %v3735 = vadd.f32 %v3734, 1e-09
  %v3736 = vrcp.pop %v3735
  %v3737 = vmul.f32 %v3730, %v3736
  %v3738 = vmul.f32 %v3726, 1.442695
  %v3739 = vpow.pop %v3738
  %v3740 = vsel %vm3731, %v3739, 0.0
  %3741 = vadd.xlane.f32.xlu0 %v3740
  %v3742 = vpop.xlane.xlu0 %3741
  %v3743 = vadd.f32 %v3742, 1e-09
  %v3744 = vrcp.pop %v3743
  %v3745 = vmul.f32 %v3739, %v3744
  %v3746 = vmul.f32 %v3469, %v3737
  %v3747 = vsel %vm3731, %v3746, 0.0
  %3748 = vadd.xlane.f32.xlu0 %v3747
  %v3749 = vpop.xlane.xlu0 %3748
  %v3750 = vmul.f32 %v3469, %v3745
  %v3751 = vsel %vm3731, %v3750, 0.0
  %3752 = vadd.xlane.f32.xlu0 %v3751
  %v3753 = vpop.xlane.xlu0 %3752
  %vm3754 = vcmask 7168
  %v3755 = vsel %vm3754, %v3749, %v3753
  %v3757 = vrot.slane %v3469, 6
  %vm3759 = vcmask 1041408
  %v3760 = vsel %vm3759, %v3755, %v3757
  %vm3761 = vcmask 11264
  %3762 = vst.msk [vmem:[%s8] sm:$0xf] %vm3761, %v3760
  // Predicated region
  $region41: #{_lambda_.1} parent=0 // pred_check
    _
  $region42: #{_lambda_.1} parent=0 // pred_check_branch
    %3764 = sbr.rel (0) target = $region44
  $region43: #{_lambda_.1} parent=0 // pred_region
    _
  $region44: #{_lambda_.1} parent=0 // pred_fallthru
    _
  // Predicated region
  $region45: #{_lambda_.1} parent=0 // pred_check
    _
  $region46: #{_lambda_.1} parent=0 // pred_check_branch
    %3766 = sbr.rel (0) target = $region48
  $region47: #{_lambda_.1} parent=0 // pred_region
    _
  $region48: #{_lambda_.1} parent=0 // pred_fallthru
    _

</llo_original>
